<compile_context>
chip_gen: v5e
topology: v5e:2x2
jax: 0.10.0
libtpu: 0.0.40
codegen_flags: <defaults>
</compile_context>

<pallas_src>
import functools

import jax
import jax.numpy as jnp
from jax.experimental import pallas as pl
from jax.experimental.pallas import tpu as pltpu

DIM = 8          # padded Hilbert-space dimension (sublane friendly)
REP = 2 * DIM    # real-representation matrix size: [[Re, -Im], [Im, Re]]
OUT_LANES = 128  # lane-dense output width (unmasked full-vreg store)


# ----------------------------------------------------------------------------
# In-kernel gate construction (iota masks + EUP trig, all shapes static)
# ----------------------------------------------------------------------------
def _masks16(kind):
    """(16,16) f32 mask planes for one embedded 2x2 gate in the real representation.

    kind 0: gate acts on qubit 0 of the 2-qubit value circuit   (kron(I2, g))
    kind 1: gate acts on qubit 1 of the 2-qubit value circuit   (kron(g, I2))
    kind 2: gate acts on the single qubit of the policy circuit (g at rows/cols 0:2)

    Returns {(a, b): (re_mask, im_mask)} such that the real-representation
    matrix of the embedded gate is  sum_ab Re(g[a,b])*re_mask + Im(g[a,b])*im_mask.
    """
    row = jax.lax.broadcasted_iota(jnp.int32, (REP, REP), 0)
    col = jax.lax.broadcasted_iota(jnp.int32, (REP, REP), 1)
    r, c = row & (DIM - 1), col & (DIM - 1)          # position inside a quadrant
    qr, qc = row >> 3, col >> 3                      # quadrant index
    re_quad = jnp.where(qr == qc, 1.0, 0.0)          # [[Re, .], [., Re]]
    im_quad = (jnp.where((qr == 1) & (qc == 0), 1.0, 0.0)
               - jnp.where((qr == 0) & (qc == 1), 1.0, 0.0))   # [[., -Im], [Im, .]]
    if kind == 0:        # kron(I2, g): rows/cols < 4, same high bit
        act = (r < 4) & (c < 4) & ((r >> 1) == (c >> 1))
        ga, gb = r & 1, c & 1
    elif kind == 1:      # kron(g, I2): rows/cols < 4, same low bit
        act = (r < 4) & (c < 4) & ((r & 1) == (c & 1))
        ga, gb = r >> 1, c >> 1
    else:                # 1-qubit policy circuit: g in the top-left 2x2
        act = (r < 2) & (c < 2)
        ga, gb = r, c
    masks = {}
    for a in range(2):
        for b in range(2):
            hit = jnp.where(act & (ga == a) & (gb == b), 1.0, 0.0)
            masks[(a, b)] = (hit * re_quad, hit * im_quad)
    return masks


def _cnot16():
    """CNOT (control = qubit 1, target = qubit 0); real, both diagonal quadrants."""
    row = jax.lax.broadcasted_iota(jnp.int32, (REP, REP), 0)
    col = jax.lax.broadcasted_iota(jnp.int32, (REP, REP), 1)
    r, c = row & (DIM - 1), col & (DIM - 1)
    diag_quad = (row >> 3) == (col >> 3)
    hit = ((r == c) & (r < 2)) | ((r == 2) & (c == 3)) | ((r == 3) & (c == 2))
    return jnp.where(hit & diag_quad, 1.0, 0.0)


def _u16_planes(ct, st, cp, sp, m):
    """qiskit U(theta, phi, 0) = [[ct, -st], [e^{i phi} st, e^{i phi} ct]]."""
    return (ct * m[(0, 0)][0] - st * m[(0, 1)][0]
            + (cp * st) * m[(1, 0)][0] + (cp * ct) * m[(1, 1)][0]
            + (sp * st) * m[(1, 0)][1] + (sp * ct) * m[(1, 1)][1])


def _u16(theta, phi, m):
    return _u16_planes(jnp.cos(0.5 * theta), jnp.sin(0.5 * theta),
                       jnp.cos(phi), jnp.sin(phi), m)


def _rx16(theta, m):
    c, s = jnp.cos(0.5 * theta), jnp.sin(0.5 * theta)
    return c * (m[(0, 0)][0] + m[(1, 1)][0]) - s * (m[(0, 1)][1] + m[(1, 0)][1])


def _rz16(theta, m):
    c, s = jnp.cos(0.5 * theta), jnp.sin(0.5 * theta)
    return c * (m[(0, 0)][0] + m[(1, 1)][0]) + s * (m[(1, 1)][1] - m[(0, 0)][1])


def _tail16(b, off, q0m, q1m, cnot):
    """Theta-only part of parametrized_circuit(num_qubits=2, reps=2): 14 gates."""
    gs = []
    for rep in range(2):
        base = off + 6 * rep
        for q, m in ((0, q0m), (1, q1m)):
            gs.append(_rx16(b(base + q), m))
            gs.append(_rz16(b(base + q + 2), m))
            gs.append(_rx16(b(base + q + 4), m))
        gs.append(cnot)                    # qc.cnot(qr[-1], qr[0]) for 2 qubits
    return gs


def _compose_tree(mats):
    """Compose (mats[0] applied first) -> M_{n-1} @ ... @ M_0.

    Balanced tree: serial MXU dependency depth is ceil(log2(n)); each combine
    is ONE real (16,16) matmul since gates live in the real representation of
    complex matrices, which is closed under multiplication.
    """
    while len(mats) > 1:
        nxt = [jnp.dot(mats[i + 1], mats[i], preferred_element_type=jnp.float32)
               for i in range(0, len(mats) - 1, 2)]
        if len(mats) % 2 == 1:
            nxt.append(mats[-1])
        mats = nxt
    return mats[0]


def _probs_slab(u):
    """|column 0|^2 of the composed unitary, broadcast to a lane-dense slab."""
    re = u[0:DIM, 0:1]
    im = u[DIM:2 * DIM, 0:1]
    return jnp.broadcast_to(re * re + im * im, (DIM, OUT_LANES))


# ----------------------------------------------------------------------------
# Kernels
# ----------------------------------------------------------------------------
def _value_kernel(par_ref, out_ref):
    """currentq=True: full 16-gate value circuit, built and composed in-kernel.

    par_ref (SMEM f32[16]) = [ang_s0, ang_s1, ang_a0, ang_a1, value_theta[0:12]].
    """
    b = lambda i: jnp.full((REP, REP), par_ref[i], jnp.float32)
    q0m, q1m = _masks16(0), _masks16(1)
    gates = [_u16(b(0), b(1), q0m),           # encoding U(ang_s) on qubit 0
             _u16(b(2), b(3), q1m)]           # encoding U(ang_a) on qubit 1
    gates += _tail16(b, 4, q0m, q1m, _cnot16())
    out_ref[...] = _probs_slab(_compose_tree(gates))


def _fused_kernel(par_ref, out_ref):
    """currentq=False: policy circuit + getangle + value circuit, one launch.

    par_ref (SMEM f32[20]) = [ang_s0, ang_s1, policy_theta[0:6], value_theta[0:12]].
    The policy tree and the value-theta tail compose independently; only two
    matmuls sit behind the policy -> value data dependency.
    """
    b = lambda i: jnp.full((REP, REP), par_ref[i], jnp.float32)
    q0m, q1m, sm = _masks16(0), _masks16(1), _masks16(2)

    # encoding trig of ang_s, shared by the policy circuit and value qubit-0 gate
    ct = jnp.cos(0.5 * b(0))
    st = jnp.sin(0.5 * b(0))
    cp = jnp.cos(b(1))
    sp = jnp.sin(b(1))

    # --- policy circuit (1 qubit, reps=2): 7 gates, depth-3 tree --------------
    pgates = [_u16_planes(ct, st, cp, sp, sm)]
    for rep in range(2):
        base = 2 + 3 * rep
        pgates.append(_rx16(b(base + 0), sm))
        pgates.append(_rz16(b(base + 1), sm))
        pgates.append(_rx16(b(base + 2), sm))
    p_u = _compose_tree(pgates)

    # --- value-circuit pieces that do NOT depend on the policy output ---------
    tail = _compose_tree(_tail16(b, 8, q0m, q1m, _cnot16()))   # 14 theta gates
    g0 = _u16_planes(ct, st, cp, sp, q0m)                      # U(ang_s) on qubit 0

    # --- getangle(policy probabilities) -> U(ang0, 0, 0) on qubit 1 -----------
    # The probabilities are real and >= 0, so getangle simplifies exactly:
    #   ang0 = 2*acos(p0) -> cos(ang0/2) = p0, sin(ang0/2) = sqrt(1 - p0^2)
    #   ang1 = atan2(0, p1) - atan2(0, p0) = 0
    # p0 is clipped to [0, 1] so FP overshoot cannot NaN the sqrt.
    re00 = p_u[0:1, 0:1]
    im00 = p_u[DIM:DIM + 1, 0:1]
    c = jnp.clip(re00 * re00 + im00 * im00, 0.0, 1.0)          # (1,1) cos(theta/2)
    s = jnp.sqrt(jnp.maximum(1.0 - c * c, 0.0))                # (1,1) sin(theta/2)
    c16 = jnp.broadcast_to(c, (REP, REP))
    s16 = jnp.broadcast_to(s, (REP, REP))
    g1 = (c16 * (q1m[(0, 0)][0] + q1m[(1, 1)][0])
          + s16 * (q1m[(1, 0)][0] - q1m[(0, 1)][0]))           # real gate on qubit 1

    # --- only two MXU matmuls behind the data dependency ----------------------
    u = jnp.dot(tail, jnp.dot(g1, g0, preferred_element_type=jnp.float32),
                preferred_element_type=jnp.float32)
    out_ref[...] = _probs_slab(u)


# ----------------------------------------------------------------------------
# pallas_call wrappers (no grid: single invocation, scalar-only inputs)
# ----------------------------------------------------------------------------
_SMEM_SPEC = pl.BlockSpec(memory_space=pltpu.MemorySpace.SMEM)
_VMEM_SPEC = pl.BlockSpec(memory_space=pltpu.MemorySpace.VMEM)


def _run_value(params16):
    return pl.pallas_call(
        _value_kernel,
        out_shape=jax.ShapeDtypeStruct((DIM, OUT_LANES), jnp.float32),
        in_specs=[_SMEM_SPEC],
        out_specs=_VMEM_SPEC,
    )(params16)


def _run_fused(params20):
    return pl.pallas_call(
        _fused_kernel,
        out_shape=jax.ShapeDtypeStruct((DIM, OUT_LANES), jnp.float32),
        in_specs=[_SMEM_SPEC],
        out_specs=_VMEM_SPEC,
    )(params20)


# ----------------------------------------------------------------------------
# Host-side glue: getangle on the complex inputs (a handful of scalars)
# ----------------------------------------------------------------------------
def getangle(s):
    """torch: [2*acos(|s0|), atan2(Im s1, Re s1) - atan2(Im s0, Re s0)]."""
    s = s.astype(jnp.complex64)
    mag0 = jnp.abs(s[0])
    ang0 = 2.0 * jnp.arccos(jnp.clip(mag0, -1.0, 1.0))
    ang1 = (jnp.arctan2(jnp.imag(s[1]), jnp.real(s[1]))
            - jnp.arctan2(jnp.imag(s[0]), jnp.real(s[0])))
    return jnp.stack([ang0, ang1]).astype(jnp.float32)


# ----------------------------------------------------------------------------
# diffQ.forward
# ----------------------------------------------------------------------------
# TODO(synk): the original script's parameter slicing (value_params = params[2:],
# policy_params = params[1:]) overlaps weight and input parameters; the
# canonical theta-only weight vectors (12 for value, 6 for policy) are used.
@functools.partial(jax.jit, static_argnames=("currentq",))
def diffq_forward(s, a, value_theta, policy_theta, currentq=True):
    ang_s = getangle(s)
    if currentq:
        ang_a = getangle(a)
        params = jnp.concatenate([ang_s, ang_a,
                                  value_theta.astype(jnp.float32)])      # (16,)
        probs = _run_value(params)                    # one pallas_call
    else:
        params = jnp.concatenate([ang_s,
                                  policy_theta.astype(jnp.float32),
                                  value_theta.astype(jnp.float32)])      # (20,)
        probs = _run_fused(params)                    # one fused pallas_call
    return probs[:4, 0]                               # (4,) float32


if __name__ == "__main__":
    key = jax.random.PRNGKey(0)
    ks = jax.random.split(key, 6)

    # deterministic parameter init (mirrors 0.1 * (2*rand - 1))
    policy_theta = 0.1 * (2.0 * jax.random.uniform(ks[0], (6,), jnp.float32) - 1.0)
    value_theta = 0.1 * (2.0 * jax.random.uniform(ks[1], (12,), jnp.float32) - 1.0)

    def rand_state(k_re, k_im):
        v = jax.random.normal(k_re, (2,)) + 1j * jax.random.normal(k_im, (2,))
        v = v.astype(jnp.complex64)
        return v / jnp.linalg.norm(v)

    s = rand_state(ks[2], ks[3])   # environment state (1-qubit statevector)
    a = rand_state(ks[4], ks[5])   # action           (1-qubit statevector)

    q_current = diffq_forward(s, a, value_theta, policy_theta, currentq=True)
    q_policy = diffq_forward(s, a, value_theta, policy_theta, currentq=False)
    jax.block_until_ready((q_current, q_policy))

    assert q_current.shape == (4,) and q_current.dtype == jnp.float32
    assert q_policy.shape == (4,) and q_policy.dtype == jnp.float32
    # measurement probabilities of the 2-qubit value circuit must sum to ~1
    assert abs(float(jnp.sum(q_current)) - 1.0) < 1e-2
    assert abs(float(jnp.sum(q_policy)) - 1.0) < 1e-2
    print("KERNEL_OK")
</pallas_src>

<mosaic_0001>
module attributes {stable_mosaic.version = 11 : i64} {
  func.func @_value_kernel(%arg0: memref<16xf32, #tpu.memory_space<smem>>, %arg1: memref<8x128xf32, #tpu.memory_space<vmem>>) attributes {dimension_semantics = [], scalar_prefetch = 0 : i64, scratch_operands = 0 : i64, tpu.core_type = #tpu.core_type<tc>} {
    %0 = tpu.iota {dimensions = array<i32: 0>} : vector<16x16xi32>
    %1 = tpu.iota {dimensions = array<i32: 1>} : vector<16x16xi32>
    %c7_i32 = arith.constant 7 : i32
    %2 = vector.broadcast %c7_i32 : i32 to vector<16x16xi32>
    %3 = arith.andi %0, %2 : vector<16x16xi32>
    %c7_i32_0 = arith.constant 7 : i32
    %4 = vector.broadcast %c7_i32_0 : i32 to vector<16x16xi32>
    %5 = arith.andi %1, %4 : vector<16x16xi32>
    %c3_i32 = arith.constant 3 : i32
    %6 = vector.broadcast %c3_i32 : i32 to vector<16x16xi32>
    %7 = arith.shrsi %0, %6 : vector<16x16xi32>
    %c3_i32_1 = arith.constant 3 : i32
    %8 = vector.broadcast %c3_i32_1 : i32 to vector<16x16xi32>
    %9 = arith.shrsi %1, %8 : vector<16x16xi32>
    %10 = arith.cmpi eq, %7, %9 : vector<16x16xi32>
    %cst = arith.constant 1.000000e+00 : f32
    %cst_2 = arith.constant 0.000000e+00 : f32
    %11 = vector.broadcast %cst : f32 to vector<16x16xf32>
    %12 = vector.broadcast %cst_2 : f32 to vector<16x16xf32>
    %13 = arith.select %10, %11, %12 : vector<16x16xi1>, vector<16x16xf32>
    %c1_i32 = arith.constant 1 : i32
    %14 = vector.broadcast %c1_i32 : i32 to vector<16x16xi32>
    %15 = arith.cmpi eq, %7, %14 : vector<16x16xi32>
    %c0_i32 = arith.constant 0 : i32
    %16 = vector.broadcast %c0_i32 : i32 to vector<16x16xi32>
    %17 = arith.cmpi eq, %9, %16 : vector<16x16xi32>
    %18 = arith.andi %15, %17 : vector<16x16xi1>
    %cst_3 = arith.constant 1.000000e+00 : f32
    %cst_4 = arith.constant 0.000000e+00 : f32
    %19 = vector.broadcast %cst_3 : f32 to vector<16x16xf32>
    %20 = vector.broadcast %cst_4 : f32 to vector<16x16xf32>
    %21 = arith.select %18, %19, %20 : vector<16x16xi1>, vector<16x16xf32>
    %c0_i32_5 = arith.constant 0 : i32
    %22 = vector.broadcast %c0_i32_5 : i32 to vector<16x16xi32>
    %23 = arith.cmpi eq, %7, %22 : vector<16x16xi32>
    %c1_i32_6 = arith.constant 1 : i32
    %24 = vector.broadcast %c1_i32_6 : i32 to vector<16x16xi32>
    %25 = arith.cmpi eq, %9, %24 : vector<16x16xi32>
    %26 = arith.andi %23, %25 : vector<16x16xi1>
    %cst_7 = arith.constant 1.000000e+00 : f32
    %cst_8 = arith.constant 0.000000e+00 : f32
    %27 = vector.broadcast %cst_7 : f32 to vector<16x16xf32>
    %28 = vector.broadcast %cst_8 : f32 to vector<16x16xf32>
    %29 = arith.select %26, %27, %28 : vector<16x16xi1>, vector<16x16xf32>
    %30 = arith.subf %21, %29 : vector<16x16xf32>
    %c4_i32 = arith.constant 4 : i32
    %31 = vector.broadcast %c4_i32 : i32 to vector<16x16xi32>
    %32 = arith.cmpi slt, %3, %31 : vector<16x16xi32>
    %c4_i32_9 = arith.constant 4 : i32
    %33 = vector.broadcast %c4_i32_9 : i32 to vector<16x16xi32>
    %34 = arith.cmpi slt, %5, %33 : vector<16x16xi32>
    %35 = arith.andi %32, %34 : vector<16x16xi1>
    %c1_i32_10 = arith.constant 1 : i32
    %36 = vector.broadcast %c1_i32_10 : i32 to vector<16x16xi32>
    %37 = arith.shrsi %3, %36 : vector<16x16xi32>
    %c1_i32_11 = arith.constant 1 : i32
    %38 = vector.broadcast %c1_i32_11 : i32 to vector<16x16xi32>
    %39 = arith.shrsi %5, %38 : vector<16x16xi32>
    %40 = arith.cmpi eq, %37, %39 : vector<16x16xi32>
    %41 = arith.andi %35, %40 : vector<16x16xi1>
    %c1_i32_12 = arith.constant 1 : i32
    %42 = vector.broadcast %c1_i32_12 : i32 to vector<16x16xi32>
    %43 = arith.andi %3, %42 : vector<16x16xi32>
    %c1_i32_13 = arith.constant 1 : i32
    %44 = vector.broadcast %c1_i32_13 : i32 to vector<16x16xi32>
    %45 = arith.andi %5, %44 : vector<16x16xi32>
    %c0_i32_14 = arith.constant 0 : i32
    %46 = vector.broadcast %c0_i32_14 : i32 to vector<16x16xi32>
    %47 = arith.cmpi eq, %43, %46 : vector<16x16xi32>
    %48 = arith.andi %41, %47 : vector<16x16xi1>
    %c0_i32_15 = arith.constant 0 : i32
    %49 = vector.broadcast %c0_i32_15 : i32 to vector<16x16xi32>
    %50 = arith.cmpi eq, %45, %49 : vector<16x16xi32>
    %51 = arith.andi %48, %50 : vector<16x16xi1>
    %cst_16 = arith.constant 1.000000e+00 : f32
    %cst_17 = arith.constant 0.000000e+00 : f32
    %52 = vector.broadcast %cst_16 : f32 to vector<16x16xf32>
    %53 = vector.broadcast %cst_17 : f32 to vector<16x16xf32>
    %54 = arith.select %51, %52, %53 : vector<16x16xi1>, vector<16x16xf32>
    %55 = arith.mulf %54, %13 : vector<16x16xf32>
    %56 = arith.mulf %54, %30 : vector<16x16xf32>
    %c0_i32_18 = arith.constant 0 : i32
    %57 = vector.broadcast %c0_i32_18 : i32 to vector<16x16xi32>
    %58 = arith.cmpi eq, %43, %57 : vector<16x16xi32>
    %59 = arith.andi %41, %58 : vector<16x16xi1>
    %c1_i32_19 = arith.constant 1 : i32
    %60 = vector.broadcast %c1_i32_19 : i32 to vector<16x16xi32>
    %61 = arith.cmpi eq, %45, %60 : vector<16x16xi32>
    %62 = arith.andi %59, %61 : vector<16x16xi1>
    %cst_20 = arith.constant 1.000000e+00 : f32
    %cst_21 = arith.constant 0.000000e+00 : f32
    %63 = vector.broadcast %cst_20 : f32 to vector<16x16xf32>
    %64 = vector.broadcast %cst_21 : f32 to vector<16x16xf32>
    %65 = arith.select %62, %63, %64 : vector<16x16xi1>, vector<16x16xf32>
    %66 = arith.mulf %65, %13 : vector<16x16xf32>
    %67 = arith.mulf %65, %30 : vector<16x16xf32>
    %c1_i32_22 = arith.constant 1 : i32
    %68 = vector.broadcast %c1_i32_22 : i32 to vector<16x16xi32>
    %69 = arith.cmpi eq, %43, %68 : vector<16x16xi32>
    %70 = arith.andi %41, %69 : vector<16x16xi1>
    %c0_i32_23 = arith.constant 0 : i32
    %71 = vector.broadcast %c0_i32_23 : i32 to vector<16x16xi32>
    %72 = arith.cmpi eq, %45, %71 : vector<16x16xi32>
    %73 = arith.andi %70, %72 : vector<16x16xi1>
    %cst_24 = arith.constant 1.000000e+00 : f32
    %cst_25 = arith.constant 0.000000e+00 : f32
    %74 = vector.broadcast %cst_24 : f32 to vector<16x16xf32>
    %75 = vector.broadcast %cst_25 : f32 to vector<16x16xf32>
    %76 = arith.select %73, %74, %75 : vector<16x16xi1>, vector<16x16xf32>
    %77 = arith.mulf %76, %13 : vector<16x16xf32>
    %78 = arith.mulf %76, %30 : vector<16x16xf32>
    %c1_i32_26 = arith.constant 1 : i32
    %79 = vector.broadcast %c1_i32_26 : i32 to vector<16x16xi32>
    %80 = arith.cmpi eq, %43, %79 : vector<16x16xi32>
    %81 = arith.andi %41, %80 : vector<16x16xi1>
    %c1_i32_27 = arith.constant 1 : i32
    %82 = vector.broadcast %c1_i32_27 : i32 to vector<16x16xi32>
    %83 = arith.cmpi eq, %45, %82 : vector<16x16xi32>
    %84 = arith.andi %81, %83 : vector<16x16xi1>
    %cst_28 = arith.constant 1.000000e+00 : f32
    %cst_29 = arith.constant 0.000000e+00 : f32
    %85 = vector.broadcast %cst_28 : f32 to vector<16x16xf32>
    %86 = vector.broadcast %cst_29 : f32 to vector<16x16xf32>
    %87 = arith.select %84, %85, %86 : vector<16x16xi1>, vector<16x16xf32>
    %88 = arith.mulf %87, %13 : vector<16x16xf32>
    %89 = arith.mulf %87, %30 : vector<16x16xf32>
    %90 = tpu.iota {dimensions = array<i32: 0>} : vector<16x16xi32>
    %91 = tpu.iota {dimensions = array<i32: 1>} : vector<16x16xi32>
    %c7_i32_30 = arith.constant 7 : i32
    %92 = vector.broadcast %c7_i32_30 : i32 to vector<16x16xi32>
    %93 = arith.andi %90, %92 : vector<16x16xi32>
    %c7_i32_31 = arith.constant 7 : i32
    %94 = vector.broadcast %c7_i32_31 : i32 to vector<16x16xi32>
    %95 = arith.andi %91, %94 : vector<16x16xi32>
    %c3_i32_32 = arith.constant 3 : i32
    %96 = vector.broadcast %c3_i32_32 : i32 to vector<16x16xi32>
    %97 = arith.shrsi %90, %96 : vector<16x16xi32>
    %c3_i32_33 = arith.constant 3 : i32
    %98 = vector.broadcast %c3_i32_33 : i32 to vector<16x16xi32>
    %99 = arith.shrsi %91, %98 : vector<16x16xi32>
    %100 = arith.cmpi eq, %97, %99 : vector<16x16xi32>
    %cst_34 = arith.constant 1.000000e+00 : f32
    %cst_35 = arith.constant 0.000000e+00 : f32
    %101 = vector.broadcast %cst_34 : f32 to vector<16x16xf32>
    %102 = vector.broadcast %cst_35 : f32 to vector<16x16xf32>
    %103 = arith.select %100, %101, %102 : vector<16x16xi1>, vector<16x16xf32>
    %c1_i32_36 = arith.constant 1 : i32
    %104 = vector.broadcast %c1_i32_36 : i32 to vector<16x16xi32>
    %105 = arith.cmpi eq, %97, %104 : vector<16x16xi32>
    %c0_i32_37 = arith.constant 0 : i32
    %106 = vector.broadcast %c0_i32_37 : i32 to vector<16x16xi32>
    %107 = arith.cmpi eq, %99, %106 : vector<16x16xi32>
    %108 = arith.andi %105, %107 : vector<16x16xi1>
    %cst_38 = arith.constant 1.000000e+00 : f32
    %cst_39 = arith.constant 0.000000e+00 : f32
    %109 = vector.broadcast %cst_38 : f32 to vector<16x16xf32>
    %110 = vector.broadcast %cst_39 : f32 to vector<16x16xf32>
    %111 = arith.select %108, %109, %110 : vector<16x16xi1>, vector<16x16xf32>
    %c0_i32_40 = arith.constant 0 : i32
    %112 = vector.broadcast %c0_i32_40 : i32 to vector<16x16xi32>
    %113 = arith.cmpi eq, %97, %112 : vector<16x16xi32>
    %c1_i32_41 = arith.constant 1 : i32
    %114 = vector.broadcast %c1_i32_41 : i32 to vector<16x16xi32>
    %115 = arith.cmpi eq, %99, %114 : vector<16x16xi32>
    %116 = arith.andi %113, %115 : vector<16x16xi1>
    %cst_42 = arith.constant 1.000000e+00 : f32
    %cst_43 = arith.constant 0.000000e+00 : f32
    %117 = vector.broadcast %cst_42 : f32 to vector<16x16xf32>
    %118 = vector.broadcast %cst_43 : f32 to vector<16x16xf32>
    %119 = arith.select %116, %117, %118 : vector<16x16xi1>, vector<16x16xf32>
    %120 = arith.subf %111, %119 : vector<16x16xf32>
    %c4_i32_44 = arith.constant 4 : i32
    %121 = vector.broadcast %c4_i32_44 : i32 to vector<16x16xi32>
    %122 = arith.cmpi slt, %93, %121 : vector<16x16xi32>
    %c4_i32_45 = arith.constant 4 : i32
    %123 = vector.broadcast %c4_i32_45 : i32 to vector<16x16xi32>
    %124 = arith.cmpi slt, %95, %123 : vector<16x16xi32>
    %125 = arith.andi %122, %124 : vector<16x16xi1>
    %c1_i32_46 = arith.constant 1 : i32
    %126 = vector.broadcast %c1_i32_46 : i32 to vector<16x16xi32>
    %127 = arith.andi %93, %126 : vector<16x16xi32>
    %c1_i32_47 = arith.constant 1 : i32
    %128 = vector.broadcast %c1_i32_47 : i32 to vector<16x16xi32>
    %129 = arith.andi %95, %128 : vector<16x16xi32>
    %130 = arith.cmpi eq, %127, %129 : vector<16x16xi32>
    %131 = arith.andi %125, %130 : vector<16x16xi1>
    %c1_i32_48 = arith.constant 1 : i32
    %132 = vector.broadcast %c1_i32_48 : i32 to vector<16x16xi32>
    %133 = arith.shrsi %93, %132 : vector<16x16xi32>
    %c1_i32_49 = arith.constant 1 : i32
    %134 = vector.broadcast %c1_i32_49 : i32 to vector<16x16xi32>
    %135 = arith.shrsi %95, %134 : vector<16x16xi32>
    %c0_i32_50 = arith.constant 0 : i32
    %136 = vector.broadcast %c0_i32_50 : i32 to vector<16x16xi32>
    %137 = arith.cmpi eq, %133, %136 : vector<16x16xi32>
    %138 = arith.andi %131, %137 : vector<16x16xi1>
    %c0_i32_51 = arith.constant 0 : i32
    %139 = vector.broadcast %c0_i32_51 : i32 to vector<16x16xi32>
    %140 = arith.cmpi eq, %135, %139 : vector<16x16xi32>
    %141 = arith.andi %138, %140 : vector<16x16xi1>
    %cst_52 = arith.constant 1.000000e+00 : f32
    %cst_53 = arith.constant 0.000000e+00 : f32
    %142 = vector.broadcast %cst_52 : f32 to vector<16x16xf32>
    %143 = vector.broadcast %cst_53 : f32 to vector<16x16xf32>
    %144 = arith.select %141, %142, %143 : vector<16x16xi1>, vector<16x16xf32>
    %145 = arith.mulf %144, %103 : vector<16x16xf32>
    %146 = arith.mulf %144, %120 : vector<16x16xf32>
    %c0_i32_54 = arith.constant 0 : i32
    %147 = vector.broadcast %c0_i32_54 : i32 to vector<16x16xi32>
    %148 = arith.cmpi eq, %133, %147 : vector<16x16xi32>
    %149 = arith.andi %131, %148 : vector<16x16xi1>
    %c1_i32_55 = arith.constant 1 : i32
    %150 = vector.broadcast %c1_i32_55 : i32 to vector<16x16xi32>
    %151 = arith.cmpi eq, %135, %150 : vector<16x16xi32>
    %152 = arith.andi %149, %151 : vector<16x16xi1>
    %cst_56 = arith.constant 1.000000e+00 : f32
    %cst_57 = arith.constant 0.000000e+00 : f32
    %153 = vector.broadcast %cst_56 : f32 to vector<16x16xf32>
    %154 = vector.broadcast %cst_57 : f32 to vector<16x16xf32>
    %155 = arith.select %152, %153, %154 : vector<16x16xi1>, vector<16x16xf32>
    %156 = arith.mulf %155, %103 : vector<16x16xf32>
    %157 = arith.mulf %155, %120 : vector<16x16xf32>
    %c1_i32_58 = arith.constant 1 : i32
    %158 = vector.broadcast %c1_i32_58 : i32 to vector<16x16xi32>
    %159 = arith.cmpi eq, %133, %158 : vector<16x16xi32>
    %160 = arith.andi %131, %159 : vector<16x16xi1>
    %c0_i32_59 = arith.constant 0 : i32
    %161 = vector.broadcast %c0_i32_59 : i32 to vector<16x16xi32>
    %162 = arith.cmpi eq, %135, %161 : vector<16x16xi32>
    %163 = arith.andi %160, %162 : vector<16x16xi1>
    %cst_60 = arith.constant 1.000000e+00 : f32
    %cst_61 = arith.constant 0.000000e+00 : f32
    %164 = vector.broadcast %cst_60 : f32 to vector<16x16xf32>
    %165 = vector.broadcast %cst_61 : f32 to vector<16x16xf32>
    %166 = arith.select %163, %164, %165 : vector<16x16xi1>, vector<16x16xf32>
    %167 = arith.mulf %166, %103 : vector<16x16xf32>
    %168 = arith.mulf %166, %120 : vector<16x16xf32>
    %c1_i32_62 = arith.constant 1 : i32
    %169 = vector.broadcast %c1_i32_62 : i32 to vector<16x16xi32>
    %170 = arith.cmpi eq, %133, %169 : vector<16x16xi32>
    %171 = arith.andi %131, %170 : vector<16x16xi1>
    %c1_i32_63 = arith.constant 1 : i32
    %172 = vector.broadcast %c1_i32_63 : i32 to vector<16x16xi32>
    %173 = arith.cmpi eq, %135, %172 : vector<16x16xi32>
    %174 = arith.andi %171, %173 : vector<16x16xi1>
    %cst_64 = arith.constant 1.000000e+00 : f32
    %cst_65 = arith.constant 0.000000e+00 : f32
    %175 = vector.broadcast %cst_64 : f32 to vector<16x16xf32>
    %176 = vector.broadcast %cst_65 : f32 to vector<16x16xf32>
    %177 = arith.select %174, %175, %176 : vector<16x16xi1>, vector<16x16xf32>
    %178 = arith.mulf %177, %103 : vector<16x16xf32>
    %179 = arith.mulf %177, %120 : vector<16x16xf32>
    %c0 = arith.constant 0 : index
    %180 = memref.load %arg0[%c0] : memref<16xf32, #tpu.memory_space<smem>>
    %181 = vector.broadcast %180 : f32 to vector<16x16xf32>
    %c1 = arith.constant 1 : index
    %182 = memref.load %arg0[%c1] : memref<16xf32, #tpu.memory_space<smem>>
    %183 = vector.broadcast %182 : f32 to vector<16x16xf32>
    %cst_66 = arith.constant 5.000000e-01 : f32
    %184 = vector.broadcast %cst_66 : f32 to vector<16x16xf32>
    %185 = arith.mulf %184, %181 : vector<16x16xf32>
    %186 = math.cos %185 : vector<16x16xf32>
    %cst_67 = arith.constant 5.000000e-01 : f32
    %187 = vector.broadcast %cst_67 : f32 to vector<16x16xf32>
    %188 = arith.mulf %187, %181 : vector<16x16xf32>
    %189 = math.sin %188 : vector<16x16xf32>
    %190 = math.cos %183 : vector<16x16xf32>
    %191 = math.sin %183 : vector<16x16xf32>
    %192 = arith.mulf %186, %55 : vector<16x16xf32>
    %193 = arith.mulf %189, %66 : vector<16x16xf32>
    %194 = arith.subf %192, %193 : vector<16x16xf32>
    %195 = arith.mulf %190, %189 : vector<16x16xf32>
    %196 = arith.mulf %195, %77 : vector<16x16xf32>
    %197 = arith.addf %194, %196 : vector<16x16xf32>
    %198 = arith.mulf %190, %186 : vector<16x16xf32>
    %199 = arith.mulf %198, %88 : vector<16x16xf32>
    %200 = arith.addf %197, %199 : vector<16x16xf32>
    %201 = arith.mulf %191, %189 : vector<16x16xf32>
    %202 = arith.mulf %201, %78 : vector<16x16xf32>
    %203 = arith.addf %200, %202 : vector<16x16xf32>
    %204 = arith.mulf %191, %186 : vector<16x16xf32>
    %205 = arith.mulf %204, %89 : vector<16x16xf32>
    %206 = arith.addf %203, %205 : vector<16x16xf32>
    %c2 = arith.constant 2 : index
    %207 = memref.load %arg0[%c2] : memref<16xf32, #tpu.memory_space<smem>>
    %208 = vector.broadcast %207 : f32 to vector<16x16xf32>
    %c3 = arith.constant 3 : index
    %209 = memref.load %arg0[%c3] : memref<16xf32, #tpu.memory_space<smem>>
    %210 = vector.broadcast %209 : f32 to vector<16x16xf32>
    %cst_68 = arith.constant 5.000000e-01 : f32
    %211 = vector.broadcast %cst_68 : f32 to vector<16x16xf32>
    %212 = arith.mulf %211, %208 : vector<16x16xf32>
    %213 = math.cos %212 : vector<16x16xf32>
    %cst_69 = arith.constant 5.000000e-01 : f32
    %214 = vector.broadcast %cst_69 : f32 to vector<16x16xf32>
    %215 = arith.mulf %214, %208 : vector<16x16xf32>
    %216 = math.sin %215 : vector<16x16xf32>
    %217 = math.cos %210 : vector<16x16xf32>
    %218 = math.sin %210 : vector<16x16xf32>
    %219 = arith.mulf %213, %145 : vector<16x16xf32>
    %220 = arith.mulf %216, %156 : vector<16x16xf32>
    %221 = arith.subf %219, %220 : vector<16x16xf32>
    %222 = arith.mulf %217, %216 : vector<16x16xf32>
    %223 = arith.mulf %222, %167 : vector<16x16xf32>
    %224 = arith.addf %221, %223 : vector<16x16xf32>
    %225 = arith.mulf %217, %213 : vector<16x16xf32>
    %226 = arith.mulf %225, %178 : vector<16x16xf32>
    %227 = arith.addf %224, %226 : vector<16x16xf32>
    %228 = arith.mulf %218, %216 : vector<16x16xf32>
    %229 = arith.mulf %228, %168 : vector<16x16xf32>
    %230 = arith.addf %227, %229 : vector<16x16xf32>
    %231 = arith.mulf %218, %213 : vector<16x16xf32>
    %232 = arith.mulf %231, %179 : vector<16x16xf32>
    %233 = arith.addf %230, %232 : vector<16x16xf32>
    %234 = tpu.iota {dimensions = array<i32: 0>} : vector<16x16xi32>
    %235 = tpu.iota {dimensions = array<i32: 1>} : vector<16x16xi32>
    %c7_i32_70 = arith.constant 7 : i32
    %236 = vector.broadcast %c7_i32_70 : i32 to vector<16x16xi32>
    %237 = arith.andi %234, %236 : vector<16x16xi32>
    %c7_i32_71 = arith.constant 7 : i32
    %238 = vector.broadcast %c7_i32_71 : i32 to vector<16x16xi32>
    %239 = arith.andi %235, %238 : vector<16x16xi32>
    %c3_i32_72 = arith.constant 3 : i32
    %240 = vector.broadcast %c3_i32_72 : i32 to vector<16x16xi32>
    %241 = arith.shrsi %234, %240 : vector<16x16xi32>
    %c3_i32_73 = arith.constant 3 : i32
    %242 = vector.broadcast %c3_i32_73 : i32 to vector<16x16xi32>
    %243 = arith.shrsi %235, %242 : vector<16x16xi32>
    %244 = arith.cmpi eq, %241, %243 : vector<16x16xi32>
    %245 = arith.cmpi eq, %237, %239 : vector<16x16xi32>
    %c2_i32 = arith.constant 2 : i32
    %246 = vector.broadcast %c2_i32 : i32 to vector<16x16xi32>
    %247 = arith.cmpi slt, %237, %246 : vector<16x16xi32>
    %248 = arith.andi %245, %247 : vector<16x16xi1>
    %c2_i32_74 = arith.constant 2 : i32
    %249 = vector.broadcast %c2_i32_74 : i32 to vector<16x16xi32>
    %250 = arith.cmpi eq, %237, %249 : vector<16x16xi32>
    %c3_i32_75 = arith.constant 3 : i32
    %251 = vector.broadcast %c3_i32_75 : i32 to vector<16x16xi32>
    %252 = arith.cmpi eq, %239, %251 : vector<16x16xi32>
    %253 = arith.andi %250, %252 : vector<16x16xi1>
    %254 = arith.ori %248, %253 : vector<16x16xi1>
    %c3_i32_76 = arith.constant 3 : i32
    %255 = vector.broadcast %c3_i32_76 : i32 to vector<16x16xi32>
    %256 = arith.cmpi eq, %237, %255 : vector<16x16xi32>
    %c2_i32_77 = arith.constant 2 : i32
    %257 = vector.broadcast %c2_i32_77 : i32 to vector<16x16xi32>
    %258 = arith.cmpi eq, %239, %257 : vector<16x16xi32>
    %259 = arith.andi %256, %258 : vector<16x16xi1>
    %260 = arith.ori %254, %259 : vector<16x16xi1>
    %261 = arith.andi %260, %244 : vector<16x16xi1>
    %cst_78 = arith.constant 1.000000e+00 : f32
    %cst_79 = arith.constant 0.000000e+00 : f32
    %262 = vector.broadcast %cst_78 : f32 to vector<16x16xf32>
    %263 = vector.broadcast %cst_79 : f32 to vector<16x16xf32>
    %264 = arith.select %261, %262, %263 : vector<16x16xi1>, vector<16x16xf32>
    %c4 = arith.constant 4 : index
    %265 = memref.load %arg0[%c4] : memref<16xf32, #tpu.memory_space<smem>>
    %266 = vector.broadcast %265 : f32 to vector<16x16xf32>
    %cst_80 = arith.constant 5.000000e-01 : f32
    %267 = vector.broadcast %cst_80 : f32 to vector<16x16xf32>
    %268 = arith.mulf %267, %266 : vector<16x16xf32>
    %269 = math.cos %268 : vector<16x16xf32>
    %cst_81 = arith.constant 5.000000e-01 : f32
    %270 = vector.broadcast %cst_81 : f32 to vector<16x16xf32>
    %271 = arith.mulf %270, %266 : vector<16x16xf32>
    %272 = math.sin %271 : vector<16x16xf32>
    %273 = arith.addf %55, %88 : vector<16x16xf32>
    %274 = arith.mulf %269, %273 : vector<16x16xf32>
    %275 = arith.addf %67, %78 : vector<16x16xf32>
    %276 = arith.mulf %272, %275 : vector<16x16xf32>
    %277 = arith.subf %274, %276 : vector<16x16xf32>
    %c6 = arith.constant 6 : index
    %278 = memref.load %arg0[%c6] : memref<16xf32, #tpu.memory_space<smem>>
    %279 = vector.broadcast %278 : f32 to vector<16x16xf32>
    %cst_82 = arith.constant 5.000000e-01 : f32
    %280 = vector.broadcast %cst_82 : f32 to vector<16x16xf32>
    %281 = arith.mulf %280, %279 : vector<16x16xf32>
    %282 = math.cos %281 : vector<16x16xf32>
    %cst_83 = arith.constant 5.000000e-01 : f32
    %283 = vector.broadcast %cst_83 : f32 to vector<16x16xf32>
    %284 = arith.mulf %283, %279 : vector<16x16xf32>
    %285 = math.sin %284 : vector<16x16xf32>
    %286 = arith.addf %55, %88 : vector<16x16xf32>
    %287 = arith.mulf %282, %286 : vector<16x16xf32>
    %288 = arith.subf %89, %56 : vector<16x16xf32>
    %289 = arith.mulf %285, %288 : vector<16x16xf32>
    %290 = arith.addf %287, %289 : vector<16x16xf32>
    %c8 = arith.constant 8 : index
    %291 = memref.load %arg0[%c8] : memref<16xf32, #tpu.memory_space<smem>>
    %292 = vector.broadcast %291 : f32 to vector<16x16xf32>
    %cst_84 = arith.constant 5.000000e-01 : f32
    %293 = vector.broadcast %cst_84 : f32 to vector<16x16xf32>
    %294 = arith.mulf %293, %292 : vector<16x16xf32>
    %295 = math.cos %294 : vector<16x16xf32>
    %cst_85 = arith.constant 5.000000e-01 : f32
    %296 = vector.broadcast %cst_85 : f32 to vector<16x16xf32>
    %297 = arith.mulf %296, %292 : vector<16x16xf32>
    %298 = math.sin %297 : vector<16x16xf32>
    %299 = arith.addf %55, %88 : vector<16x16xf32>
    %300 = arith.mulf %295, %299 : vector<16x16xf32>
    %301 = arith.addf %67, %78 : vector<16x16xf32>
    %302 = arith.mulf %298, %301 : vector<16x16xf32>
    %303 = arith.subf %300, %302 : vector<16x16xf32>
    %c5 = arith.constant 5 : index
    %304 = memref.load %arg0[%c5] : memref<16xf32, #tpu.memory_space<smem>>
    %305 = vector.broadcast %304 : f32 to vector<16x16xf32>
    %cst_86 = arith.constant 5.000000e-01 : f32
    %306 = vector.broadcast %cst_86 : f32 to vector<16x16xf32>
    %307 = arith.mulf %306, %305 : vector<16x16xf32>
    %308 = math.cos %307 : vector<16x16xf32>
    %cst_87 = arith.constant 5.000000e-01 : f32
    %309 = vector.broadcast %cst_87 : f32 to vector<16x16xf32>
    %310 = arith.mulf %309, %305 : vector<16x16xf32>
    %311 = math.sin %310 : vector<16x16xf32>
    %312 = arith.addf %145, %178 : vector<16x16xf32>
    %313 = arith.mulf %308, %312 : vector<16x16xf32>
    %314 = arith.addf %157, %168 : vector<16x16xf32>
    %315 = arith.mulf %311, %314 : vector<16x16xf32>
    %316 = arith.subf %313, %315 : vector<16x16xf32>
    %c7 = arith.constant 7 : index
    %317 = memref.load %arg0[%c7] : memref<16xf32, #tpu.memory_space<smem>>
    %318 = vector.broadcast %317 : f32 to vector<16x16xf32>
    %cst_88 = arith.constant 5.000000e-01 : f32
    %319 = vector.broadcast %cst_88 : f32 to vector<16x16xf32>
    %320 = arith.mulf %319, %318 : vector<16x16xf32>
    %321 = math.cos %320 : vector<16x16xf32>
    %cst_89 = arith.constant 5.000000e-01 : f32
    %322 = vector.broadcast %cst_89 : f32 to vector<16x16xf32>
    %323 = arith.mulf %322, %318 : vector<16x16xf32>
    %324 = math.sin %323 : vector<16x16xf32>
    %325 = arith.addf %145, %178 : vector<16x16xf32>
    %326 = arith.mulf %321, %325 : vector<16x16xf32>
    %327 = arith.subf %179, %146 : vector<16x16xf32>
    %328 = arith.mulf %324, %327 : vector<16x16xf32>
    %329 = arith.addf %326, %328 : vector<16x16xf32>
    %c9 = arith.constant 9 : index
    %330 = memref.load %arg0[%c9] : memref<16xf32, #tpu.memory_space<smem>>
    %331 = vector.broadcast %330 : f32 to vector<16x16xf32>
    %cst_90 = arith.constant 5.000000e-01 : f32
    %332 = vector.broadcast %cst_90 : f32 to vector<16x16xf32>
    %333 = arith.mulf %332, %331 : vector<16x16xf32>
    %334 = math.cos %333 : vector<16x16xf32>
    %cst_91 = arith.constant 5.000000e-01 : f32
    %335 = vector.broadcast %cst_91 : f32 to vector<16x16xf32>
    %336 = arith.mulf %335, %331 : vector<16x16xf32>
    %337 = math.sin %336 : vector<16x16xf32>
    %338 = arith.addf %145, %178 : vector<16x16xf32>
    %339 = arith.mulf %334, %338 : vector<16x16xf32>
    %340 = arith.addf %157, %168 : vector<16x16xf32>
    %341 = arith.mulf %337, %340 : vector<16x16xf32>
    %342 = arith.subf %339, %341 : vector<16x16xf32>
    %c10 = arith.constant 10 : index
    %343 = memref.load %arg0[%c10] : memref<16xf32, #tpu.memory_space<smem>>
    %344 = vector.broadcast %343 : f32 to vector<16x16xf32>
    %cst_92 = arith.constant 5.000000e-01 : f32
    %345 = vector.broadcast %cst_92 : f32 to vector<16x16xf32>
    %346 = arith.mulf %345, %344 : vector<16x16xf32>
    %347 = math.cos %346 : vector<16x16xf32>
    %cst_93 = arith.constant 5.000000e-01 : f32
    %348 = vector.broadcast %cst_93 : f32 to vector<16x16xf32>
    %349 = arith.mulf %348, %344 : vector<16x16xf32>
    %350 = math.sin %349 : vector<16x16xf32>
    %351 = arith.addf %55, %88 : vector<16x16xf32>
    %352 = arith.mulf %347, %351 : vector<16x16xf32>
    %353 = arith.addf %67, %78 : vector<16x16xf32>
    %354 = arith.mulf %350, %353 : vector<16x16xf32>
    %355 = arith.subf %352, %354 : vector<16x16xf32>
    %c12 = arith.constant 12 : index
    %356 = memref.load %arg0[%c12] : memref<16xf32, #tpu.memory_space<smem>>
    %357 = vector.broadcast %356 : f32 to vector<16x16xf32>
    %cst_94 = arith.constant 5.000000e-01 : f32
    %358 = vector.broadcast %cst_94 : f32 to vector<16x16xf32>
    %359 = arith.mulf %358, %357 : vector<16x16xf32>
    %360 = math.cos %359 : vector<16x16xf32>
    %cst_95 = arith.constant 5.000000e-01 : f32
    %361 = vector.broadcast %cst_95 : f32 to vector<16x16xf32>
    %362 = arith.mulf %361, %357 : vector<16x16xf32>
    %363 = math.sin %362 : vector<16x16xf32>
    %364 = arith.addf %55, %88 : vector<16x16xf32>
    %365 = arith.mulf %360, %364 : vector<16x16xf32>
    %366 = arith.subf %89, %56 : vector<16x16xf32>
    %367 = arith.mulf %363, %366 : vector<16x16xf32>
    %368 = arith.addf %365, %367 : vector<16x16xf32>
    %c14 = arith.constant 14 : index
    %369 = memref.load %arg0[%c14] : memref<16xf32, #tpu.memory_space<smem>>
    %370 = vector.broadcast %369 : f32 to vector<16x16xf32>
    %cst_96 = arith.constant 5.000000e-01 : f32
    %371 = vector.broadcast %cst_96 : f32 to vector<16x16xf32>
    %372 = arith.mulf %371, %370 : vector<16x16xf32>
    %373 = math.cos %372 : vector<16x16xf32>
    %cst_97 = arith.constant 5.000000e-01 : f32
    %374 = vector.broadcast %cst_97 : f32 to vector<16x16xf32>
    %375 = arith.mulf %374, %370 : vector<16x16xf32>
    %376 = math.sin %375 : vector<16x16xf32>
    %377 = arith.addf %55, %88 : vector<16x16xf32>
    %378 = arith.mulf %373, %377 : vector<16x16xf32>
    %379 = arith.addf %67, %78 : vector<16x16xf32>
    %380 = arith.mulf %376, %379 : vector<16x16xf32>
    %381 = arith.subf %378, %380 : vector<16x16xf32>
    %c11 = arith.constant 11 : index
    %382 = memref.load %arg0[%c11] : memref<16xf32, #tpu.memory_space<smem>>
    %383 = vector.broadcast %382 : f32 to vector<16x16xf32>
    %cst_98 = arith.constant 5.000000e-01 : f32
    %384 = vector.broadcast %cst_98 : f32 to vector<16x16xf32>
    %385 = arith.mulf %384, %383 : vector<16x16xf32>
    %386 = math.cos %385 : vector<16x16xf32>
    %cst_99 = arith.constant 5.000000e-01 : f32
    %387 = vector.broadcast %cst_99 : f32 to vector<16x16xf32>
    %388 = arith.mulf %387, %383 : vector<16x16xf32>
    %389 = math.sin %388 : vector<16x16xf32>
    %390 = arith.addf %145, %178 : vector<16x16xf32>
    %391 = arith.mulf %386, %390 : vector<16x16xf32>
    %392 = arith.addf %157, %168 : vector<16x16xf32>
    %393 = arith.mulf %389, %392 : vector<16x16xf32>
    %394 = arith.subf %391, %393 : vector<16x16xf32>
    %c13 = arith.constant 13 : index
    %395 = memref.load %arg0[%c13] : memref<16xf32, #tpu.memory_space<smem>>
    %396 = vector.broadcast %395 : f32 to vector<16x16xf32>
    %cst_100 = arith.constant 5.000000e-01 : f32
    %397 = vector.broadcast %cst_100 : f32 to vector<16x16xf32>
    %398 = arith.mulf %397, %396 : vector<16x16xf32>
    %399 = math.cos %398 : vector<16x16xf32>
    %cst_101 = arith.constant 5.000000e-01 : f32
    %400 = vector.broadcast %cst_101 : f32 to vector<16x16xf32>
    %401 = arith.mulf %400, %396 : vector<16x16xf32>
    %402 = math.sin %401 : vector<16x16xf32>
    %403 = arith.addf %145, %178 : vector<16x16xf32>
    %404 = arith.mulf %399, %403 : vector<16x16xf32>
    %405 = arith.subf %179, %146 : vector<16x16xf32>
    %406 = arith.mulf %402, %405 : vector<16x16xf32>
    %407 = arith.addf %404, %406 : vector<16x16xf32>
    %c15 = arith.constant 15 : index
    %408 = memref.load %arg0[%c15] : memref<16xf32, #tpu.memory_space<smem>>
    %409 = vector.broadcast %408 : f32 to vector<16x16xf32>
    %cst_102 = arith.constant 5.000000e-01 : f32
    %410 = vector.broadcast %cst_102 : f32 to vector<16x16xf32>
    %411 = arith.mulf %410, %409 : vector<16x16xf32>
    %412 = math.cos %411 : vector<16x16xf32>
    %cst_103 = arith.constant 5.000000e-01 : f32
    %413 = vector.broadcast %cst_103 : f32 to vector<16x16xf32>
    %414 = arith.mulf %413, %409 : vector<16x16xf32>
    %415 = math.sin %414 : vector<16x16xf32>
    %416 = arith.addf %145, %178 : vector<16x16xf32>
    %417 = arith.mulf %412, %416 : vector<16x16xf32>
    %418 = arith.addf %157, %168 : vector<16x16xf32>
    %419 = arith.mulf %415, %418 : vector<16x16xf32>
    %420 = arith.subf %417, %419 : vector<16x16xf32>
    %cst_104 = arith.constant dense<0.000000e+00> : vector<16x16xf32>
    %421 = tpu.matmul %233, %206, %cst_104 {dimension_numbers = #tpu.dot_dimension_numbers<[1], [0], [0], [1], [0, 0, 1, 1], [], []>} : vector<16x16xf32>, vector<16x16xf32>, vector<16x16xf32> -> vector<16x16xf32>
    %cst_105 = arith.constant dense<0.000000e+00> : vector<16x16xf32>
    %422 = tpu.matmul %290, %277, %cst_105 {dimension_numbers = #tpu.dot_dimension_numbers<[1], [0], [0], [1], [0, 0, 1, 1], [], []>} : vector<16x16xf32>, vector<16x16xf32>, vector<16x16xf32> -> vector<16x16xf32>
    %cst_106 = arith.constant dense<0.000000e+00> : vector<16x16xf32>
    %423 = tpu.matmul %316, %303, %cst_106 {dimension_numbers = #tpu.dot_dimension_numbers<[1], [0], [0], [1], [0, 0, 1, 1], [], []>} : vector<16x16xf32>, vector<16x16xf32>, vector<16x16xf32> -> vector<16x16xf32>
    %cst_107 = arith.constant dense<0.000000e+00> : vector<16x16xf32>
    %424 = tpu.matmul %342, %329, %cst_107 {dimension_numbers = #tpu.dot_dimension_numbers<[1], [0], [0], [1], [0, 0, 1, 1], [], []>} : vector<16x16xf32>, vector<16x16xf32>, vector<16x16xf32> -> vector<16x16xf32>
    %cst_108 = arith.constant dense<0.000000e+00> : vector<16x16xf32>
    %425 = tpu.matmul %355, %264, %cst_108 {dimension_numbers = #tpu.dot_dimension_numbers<[1], [0], [0], [1], [0, 0, 1, 1], [], []>} : vector<16x16xf32>, vector<16x16xf32>, vector<16x16xf32> -> vector<16x16xf32>
    %cst_109 = arith.constant dense<0.000000e+00> : vector<16x16xf32>
    %426 = tpu.matmul %381, %368, %cst_109 {dimension_numbers = #tpu.dot_dimension_numbers<[1], [0], [0], [1], [0, 0, 1, 1], [], []>} : vector<16x16xf32>, vector<16x16xf32>, vector<16x16xf32> -> vector<16x16xf32>
    %cst_110 = arith.constant dense<0.000000e+00> : vector<16x16xf32>
    %427 = tpu.matmul %407, %394, %cst_110 {dimension_numbers = #tpu.dot_dimension_numbers<[1], [0], [0], [1], [0, 0, 1, 1], [], []>} : vector<16x16xf32>, vector<16x16xf32>, vector<16x16xf32> -> vector<16x16xf32>
    %cst_111 = arith.constant dense<0.000000e+00> : vector<16x16xf32>
    %428 = tpu.matmul %264, %420, %cst_111 {dimension_numbers = #tpu.dot_dimension_numbers<[1], [0], [0], [1], [0, 0, 1, 1], [], []>} : vector<16x16xf32>, vector<16x16xf32>, vector<16x16xf32> -> vector<16x16xf32>
    %cst_112 = arith.constant dense<0.000000e+00> : vector<16x16xf32>
    %429 = tpu.matmul %422, %421, %cst_112 {dimension_numbers = #tpu.dot_dimension_numbers<[1], [0], [0], [1], [0, 0, 1, 1], [], []>} : vector<16x16xf32>, vector<16x16xf32>, vector<16x16xf32> -> vector<16x16xf32>
    %cst_113 = arith.constant dense<0.000000e+00> : vector<16x16xf32>
    %430 = tpu.matmul %424, %423, %cst_113 {dimension_numbers = #tpu.dot_dimension_numbers<[1], [0], [0], [1], [0, 0, 1, 1], [], []>} : vector<16x16xf32>, vector<16x16xf32>, vector<16x16xf32> -> vector<16x16xf32>
    %cst_114 = arith.constant dense<0.000000e+00> : vector<16x16xf32>
    %431 = tpu.matmul %426, %425, %cst_114 {dimension_numbers = #tpu.dot_dimension_numbers<[1], [0], [0], [1], [0, 0, 1, 1], [], []>} : vector<16x16xf32>, vector<16x16xf32>, vector<16x16xf32> -> vector<16x16xf32>
    %cst_115 = arith.constant dense<0.000000e+00> : vector<16x16xf32>
    %432 = tpu.matmul %428, %427, %cst_115 {dimension_numbers = #tpu.dot_dimension_numbers<[1], [0], [0], [1], [0, 0, 1, 1], [], []>} : vector<16x16xf32>, vector<16x16xf32>, vector<16x16xf32> -> vector<16x16xf32>
    %cst_116 = arith.constant dense<0.000000e+00> : vector<16x16xf32>
    %433 = tpu.matmul %430, %429, %cst_116 {dimension_numbers = #tpu.dot_dimension_numbers<[1], [0], [0], [1], [0, 0, 1, 1], [], []>} : vector<16x16xf32>, vector<16x16xf32>, vector<16x16xf32> -> vector<16x16xf32>
    %cst_117 = arith.constant dense<0.000000e+00> : vector<16x16xf32>
    %434 = tpu.matmul %432, %431, %cst_117 {dimension_numbers = #tpu.dot_dimension_numbers<[1], [0], [0], [1], [0, 0, 1, 1], [], []>} : vector<16x16xf32>, vector<16x16xf32>, vector<16x16xf32> -> vector<16x16xf32>
    %cst_118 = arith.constant dense<0.000000e+00> : vector<16x16xf32>
    %435 = tpu.matmul %434, %433, %cst_118 {dimension_numbers = #tpu.dot_dimension_numbers<[1], [0], [0], [1], [0, 0, 1, 1], [], []>} : vector<16x16xf32>, vector<16x16xf32>, vector<16x16xf32> -> vector<16x16xf32>
    %436 = vector.extract_strided_slice %435 {offsets = [0, 0], sizes = [8, 1], strides = [1, 1]} : vector<16x16xf32> to vector<8x1xf32>
    %437 = vector.extract_strided_slice %435 {offsets = [8, 0], sizes = [8, 1], strides = [1, 1]} : vector<16x16xf32> to vector<8x1xf32>
    %438 = arith.mulf %436, %436 : vector<8x1xf32>
    %439 = arith.mulf %437, %437 : vector<8x1xf32>
    %440 = arith.addf %438, %439 : vector<8x1xf32>
    %441 = vector.shape_cast %440 : vector<8x1xf32> to vector<8x1xf32>
    %442 = vector.broadcast %441 : vector<8x1xf32> to vector<8x128xf32>
    %c0_119 = arith.constant 0 : index
    %c0_120 = arith.constant 0 : index
    %443 = vector.load %arg1[%c0_119, %c0_120] : memref<8x128xf32, #tpu.memory_space<vmem>>, vector<8x128xf32>
    tpu.vector_store %arg1[%c0_119, %c0_120], %442 {strides = array<i32>} : memref<8x128xf32, #tpu.memory_space<vmem>>, vector<8x128xf32>,
    return
  }
}

</mosaic_0001>

<llo_original>
// kernel: custom-call
$region0: #{custom-call}
  %s0 = inlined_call_operand.hbm [shape: c64[2], index: 0, kind: input, shape index: {}]
  %s1 = inlined_call_operand.vmem [shape: f32[2], index: 1, kind: output, shape index: {}]
  $region1: #{custom-call} parent=0
    #allocation0 [shape = 's32[1]{0}', space=sflag, size = 0x4, scoped, tag = 'scoped memory for custom-call']
    %2 = vsyncpa [#allocation0], 0
    %s4 = sshll.u32 %s0, 4
    %s5 = int_to_ptr.hbm [resolvable:$true] %s4
    %s6 = sshll.u32 %s1, 4
    %s7 = int_to_ptr.vmem [resolvable:$true] %s6
    %9 = dma.hbm_to_vmem [thread:$0]  %s5, 16, %s7, [#allocation0]
    %11 = dma.done [#allocation0], 16
    %12 = vsyncpa [#allocation0], 1

// kernel: custom-call.1
$region0: #{custom-call.1}
  %s0 = inlined_call_operand.hbm [shape: c64[2], index: 0, kind: input, shape index: {}]
  %s1 = inlined_call_operand.vmem [shape: f32[2], index: 1, kind: output, shape index: {}]
  %s2 = scalar_lea.hbm %s0, 1
  $region1: #{custom-call.1} parent=0
    #allocation0 [shape = 's32[1]{0}', space=sflag, size = 0x4, scoped, tag = 'scoped memory for custom-call.1']
    %3 = vsyncpa [#allocation0], 0
    %s5 = sshll.u32 %s2, 4
    %s6 = int_to_ptr.hbm [resolvable:$true] %s5
    %s7 = sshll.u32 %s1, 4
    %s8 = int_to_ptr.vmem [resolvable:$true] %s7
    %10 = dma.hbm_to_vmem [thread:$0]  %s6, 16, %s8, [#allocation0]
    %12 = dma.done [#allocation0], 16
    %13 = vsyncpa [#allocation0], 1

// kernel: diffq_forward.1
$region0: #{diffq_forward.1}
  #allocation0 [shape = 'u32[]', space=smem, size = 0x4, offset = 0x4, fixed_abs, tag = 'smem constant byte address 0x4 - core index']
  #allocation1 [shape = 'u32[72,128]{1,0:T(1,128)}', space=vmem, size = 0x9000, scoped, tag = 'internal scratch']
  %s0 = inlined_call_operand.vmem [shape: f32[16], index: 0, kind: input, shape index: {}]
  %s1 = inlined_call_operand.vmem [shape: f32[8,128], index: 1, kind: output, shape index: {}]
  %s2 = sld [smem:[#allocation0]]
  $region18: #{diffq_forward.1} parent=0
    _
  %s4 = ssub.s32 1, %s2
  %s5 = scalar_select 0, %s4, %s2
  $region1: #{diffq_forward.1} parent=0
    #allocation2 [shape = 'u8[512]{0}', space=smem, size = 0x200, scoped, tag = 'input window, operand 0, single buffered']
    #allocation3 [shape = 's32[1]{0}', space=sflag, size = 0x4, scoped, tag = 'scoped memory for diffq_forward.1']
    %6 = vsyncpa [#allocation3], 0
    // Predicated region
    $region2: #{diffq_forward.1} parent=1 // pred_check
      _
    $region3: #{diffq_forward.1} parent=1 // pred_check_branch
      %8 = sbr.rel (0) target = $region5
    $region4: #{diffq_forward.1} parent=1 // pred_region
      %10 = vsyncadd [#allocation3], 0
      %s12 = sshll.u32 %s0, 4
      %s13 = int_to_ptr.vmem [resolvable:$true] %s12
      %15 = dma.vmem_to_smem %s13, 16, [#allocation2], [#allocation3]
    $region5: #{diffq_forward.1} parent=1 // pred_fallthru
      _
    // Predicated region
    $region6: #{diffq_forward.1} parent=1 // pred_check
      _
    $region7: #{diffq_forward.1} parent=1 // pred_check_branch
      %17 = sbr.rel (0) target = $region9
    $region8: #{diffq_forward.1} parent=1 // pred_region
      %19 = dma.done [#allocation3], 16
    $region9: #{diffq_forward.1} parent=1 // pred_fallthru
      _
    %20 = sfence
    %v21 = vlaneseq
    %v22 = vshrl.u32 %v21, 7
    %v23 = vadd.s32 %v22, 8
    %v24 = vlaneseq
    %v25 = vand.u32 %v24, 127
    %v26 = vand.u32 %v22, 7
    %v27 = vand.u32 %v23, 7
    %v28 = vand.u32 %v25, 7
    %v29 = vshra.s32 %v22, 3
    %v30 = vshra.s32 %v23, 3
    %v31 = vshra.s32 %v25, 3
    %vm32 = vcmp.eq.s32.totalorder %v29, %v31
    %vm33 = vcmp.eq.s32.totalorder %v30, %v31
    %v34 = vsel %vm32, 1.0, 0.0
    %v35 = vsel %vm33, 1.0, 0.0
    %vm36 = vcmp.eq.s32.totalorder %v29, 1
    %vm37 = vcmp.eq.s32.totalorder %v30, 1
    %vm38 = vcmp.eq.s32.totalorder %v31, 0
    %vm39 = vmand %vm36, %vm38
    %vm40 = vmand %vm37, %vm38
    %v41 = vsel %vm39, 1.0, 0.0
    %v42 = vsel %vm40, 1.0, 0.0
    %vm43 = vcmp.eq.s32.totalorder %v29, 0
    %vm44 = vcmp.eq.s32.totalorder %v30, 0
    %vm45 = vcmp.eq.s32.totalorder %v31, 1
    %vm46 = vmand %vm43, %vm45
    %vm47 = vmand %vm44, %vm45
    %v48 = vsel %vm46, 1.0, 0.0
    %v49 = vsel %vm47, 1.0, 0.0
    %v50 = vsub.f32 %v41, %v48
    %v51 = vsub.f32 %v42, %v49
    %vm52 = vcmp.lt.s32.totalorder %v26, 4
    %vm53 = vcmp.lt.s32.totalorder %v27, 4
    %vm54 = vcmp.lt.s32.totalorder %v28, 4
    %vm55 = vmand %vm52, %vm54
    %vm56 = vmand %vm53, %vm54
    %v57 = vshra.s32 %v26, 1
    %v58 = vshra.s32 %v27, 1
    %v59 = vshra.s32 %v28, 1
    %vm60 = vcmp.eq.s32.totalorder %v57, %v59
    %vm61 = vcmp.eq.s32.totalorder %v58, %v59
    %vm62 = vmand %vm55, %vm60
    %vm63 = vmand %vm56, %vm61
    %v64 = vand.u32 %v26, 1
    %v65 = vand.u32 %v27, 1
    %v66 = vand.u32 %v28, 1
    %vm67 = vcmp.eq.s32.totalorder %v64, 0
    %vm68 = vcmp.eq.s32.totalorder %v65, 0
    %vm69 = vmand %vm62, %vm67
    %vm70 = vmand %vm63, %vm68
    %vm71 = vcmp.eq.s32.totalorder %v66, 0
    %vm72 = vmand %vm69, %vm71
    %vm73 = vmand %vm70, %vm71
    %v74 = vsel %vm72, 1.0, 0.0
    %v75 = vsel %vm73, 1.0, 0.0
    %v76 = vmul.f32 %v74, %v34
    %v77 = vmul.f32 %v75, %v35
    %v78 = vmul.f32 %v74, %v50
    %v79 = vmul.f32 %v75, %v51
    %vm80 = vcmp.eq.s32.totalorder %v66, 1
    %vm81 = vmand %vm69, %vm80
    %vm82 = vmand %vm70, %vm80
    %v83 = vsel %vm81, 1.0, 0.0
    %v84 = vsel %vm82, 1.0, 0.0
    %v85 = vmul.f32 %v83, %v34
    %v86 = vmul.f32 %v84, %v35
    %v87 = vmul.f32 %v83, %v50
    %v88 = vmul.f32 %v84, %v51
    %vm89 = vcmp.eq.s32.totalorder %v64, 1
    %vm90 = vcmp.eq.s32.totalorder %v65, 1
    %vm91 = vmand %vm62, %vm89
    %vm92 = vmand %vm63, %vm90
    %vm93 = vmand %vm91, %vm71
    %vm94 = vmand %vm92, %vm71
    %v95 = vsel %vm93, 1.0, 0.0
    %v96 = vsel %vm94, 1.0, 0.0
    %v97 = vmul.f32 %v95, %v34
    %v98 = vmul.f32 %v96, %v35
    %v99 = vmul.f32 %v95, %v50
    %v100 = vmul.f32 %v96, %v51
    %vm101 = vmand %vm91, %vm80
    %vm102 = vmand %vm92, %vm80
    %v103 = vsel %vm101, 1.0, 0.0
    %v104 = vsel %vm102, 1.0, 0.0
    %v105 = vmul.f32 %v103, %v34
    %v106 = vmul.f32 %v104, %v35
    %v107 = vmul.f32 %v103, %v50
    %v108 = vmul.f32 %v104, %v51
    %vm109 = vcmp.eq.s32.totalorder %v64, %v66
    %vm110 = vcmp.eq.s32.totalorder %v65, %v66
    %vm111 = vmand %vm55, %vm109
    %vm112 = vmand %vm56, %vm110
    %vm113 = vcmp.eq.s32.totalorder %v57, 0
    %vm114 = vcmp.eq.s32.totalorder %v58, 0
    %vm115 = vmand %vm111, %vm113
    %vm116 = vmand %vm112, %vm114
    %vm117 = vcmp.eq.s32.totalorder %v59, 0
    %vm118 = vmand %vm115, %vm117
    %vm119 = vmand %vm116, %vm117
    %v120 = vsel %vm118, 1.0, 0.0
    %v121 = vsel %vm119, 1.0, 0.0
    %v122 = vmul.f32 %v120, %v34
    %v123 = vmul.f32 %v121, %v35
    %v124 = vmul.f32 %v120, %v50
    %v125 = vmul.f32 %v121, %v51
    %vm126 = vcmp.eq.s32.totalorder %v59, 1
    %vm127 = vmand %vm115, %vm126
    %vm128 = vmand %vm116, %vm126
    %v129 = vsel %vm127, 1.0, 0.0
    %v130 = vsel %vm128, 1.0, 0.0
    %v131 = vmul.f32 %v129, %v34
    %v132 = vmul.f32 %v130, %v35
    %v133 = vmul.f32 %v129, %v50
    %v134 = vmul.f32 %v130, %v51
    %vm135 = vcmp.eq.s32.totalorder %v57, 1
    %vm136 = vcmp.eq.s32.totalorder %v58, 1
    %vm137 = vmand %vm111, %vm135
    %vm138 = vmand %vm112, %vm136
    %vm139 = vmand %vm137, %vm117
    %vm140 = vmand %vm138, %vm117
    %v141 = vsel %vm139, 1.0, 0.0
    %v142 = vsel %vm140, 1.0, 0.0
    %v143 = vmul.f32 %v141, %v34
    %v144 = vmul.f32 %v142, %v35
    %v145 = vmul.f32 %v141, %v50
    %v146 = vmul.f32 %v142, %v51
    %vm147 = vmand %vm137, %vm126
    %vm148 = vmand %vm138, %vm126
    %v149 = vsel %vm147, 1.0, 0.0
    %v150 = vsel %vm148, 1.0, 0.0
    %v151 = vmul.f32 %v149, %v34
    %v152 = vmul.f32 %v150, %v35
    %v153 = vmul.f32 %v149, %v50
    %v154 = vmul.f32 %v150, %v51
    %s155 = sld [smem:[#allocation2]]
    %v156 = vstv %s155
    %s157 = sld [smem:[#allocation2 + $0x1]]
    %v158 = vstv %s157
    %v159 = vmul.f32 %v156, 0.5
    %v160 = vand.u32 2147483647, %v159
    %vm161 = vcmp.le.f32.partialorder %v160, 0.7853982
    %vm162 = vcmp.lt.s32.totalorder %v159, 0
    %v163 = vand.u32 %v159, 2139095040
    %v164 = vshrl.u32 %v163, 23
    %v165 = vsub.s32 %v164, 127
    %v166 = vand.u32 2147483647, %v159
    %v167 = vand.u32 %v166, 8388607
    %v168 = vor.u32 %v167, 8388608
    %v169 = vsub.s32 0, %v168
    %v170 = vadd.s32 %v165, 1
    %vm171 = vcmp.gt.s32.totalorder %v170, 0
    %v172 = vsel %vm171, %v170, 0
    %v173 = vshrl.u32 %v172, 5
    %v174 = vand.u32 %v172, 31
    %v175 = vsub.s32 32, %v174
    %v176 = vshrl.u32 683565275, %v175
    %v177 = vshll.u32 683565275, %v174
    %v178 = vshrl.u32 2475754826, %v175
    %v179 = vor.u32 %v177, %v178
    %v180 = vshll.u32 2475754826, %v174
    %v181 = vshrl.u32 2131351028, %v175
    %v182 = vor.u32 %v180, %v181
    %v183 = vshll.u32 2131351028, %v174
    %v184 = vshrl.u32 2102212464, %v175
    %v185 = vor.u32 %v183, %v184
    %v186 = vshll.u32 2102212464, %v174
    %v187 = vshrl.u32 920167782, %v175
    %v188 = vor.u32 %v186, %v187
    %v189 = vshll.u32 920167782, %v174
    %v190 = vshrl.u32 1326507024, %v175
    %v191 = vor.u32 %v189, %v190
    %vm192 = vcmp.lt.s32.totalorder %v173, 1
    %vm193 = vcmp.lt.s32.totalorder %v173, 2
    %vm194 = vcmp.lt.s32.totalorder %v173, 3
    %vm195 = vcmp.lt.s32.totalorder %v173, 4
    %v196 = vsel %vm192, %v176, %v179
    %v197 = vsel %vm195, %v185, 2102212464
    %v198 = vsel %vm194, %v182, %v197
    %v199 = vsel %vm193, %v196, %v198
    %v200 = vsel %vm192, %v179, %v182
    %v201 = vsel %vm195, %v188, 920167782
    %v202 = vsel %vm194, %v185, %v201
    %v203 = vsel %vm193, %v200, %v202
    %v204 = vsel %vm192, %v182, %v185
    %v205 = vsel %vm195, %v191, 1326507024
    %v206 = vsel %vm194, %v188, %v205
    %v207 = vsel %vm193, %v204, %v206
    %v208 = vshll.u32 %v168, 8
    %v209 = vand.u32 %v208, 65535
    %v210 = vshrl.u32 %v208, 16
    %v211 = vand.u32 %v207, 65535
    %v212 = vshrl.u32 %v207, 16
    %v213 = vmul.u32 %v209, %v211
    %v214 = vmul.u32 %v209, %v212
    %v215 = vmul.u32 %v210, %v211
    %v216 = vmul.u32 %v210, %v212
    %v217 = vshll.u32 %v214, 16
    %v218 = vshrl.u32 %v214, 16
    %v219 = vshll.u32 %v215, 16
    %v220 = vshrl.u32 %v215, 16
    %vm221 = vc.u32 %v213, %v217
    %v222 = vsel %vm221, 1, 0
    %v223 = vadd.s32 %v213, %v217
    %v224 = vadd.s32 %v216, %v222
    %vm225 = vc.u32 %v223, %v219
    %v226 = vsel %vm225, 1, 0
    %v227 = vadd.s32 %v223, %v219
    %v228 = vadd.s32 %v224, %v226
    %v229 = vadd.s32 %v228, %v218
    %v230 = vadd.s32 %v229, %v220
    %v231 = vand.u32 %v208, 65535
    %v232 = vshrl.u32 %v208, 16
    %v233 = vand.u32 %v203, 65535
    %v234 = vshrl.u32 %v203, 16
    %v235 = vmul.u32 %v231, %v233
    %v236 = vmul.u32 %v231, %v234
    %v237 = vmul.u32 %v232, %v233
    %v238 = vmul.u32 %v232, %v234
    %v239 = vshll.u32 %v236, 16
    %v240 = vshrl.u32 %v236, 16
    %v241 = vshll.u32 %v237, 16
    %v242 = vshrl.u32 %v237, 16
    %vm243 = vc.u32 %v235, %v239
    %v244 = vsel %vm243, 1, 0
    %v245 = vadd.s32 %v235, %v239
    %v246 = vadd.s32 %v238, %v244
    %vm247 = vc.u32 %v245, %v241
    %v248 = vsel %vm247, 1, 0
    %v249 = vadd.s32 %v245, %v241
    %v250 = vadd.s32 %v246, %v248
    %v251 = vadd.s32 %v250, %v240
    %v252 = vadd.s32 %v251, %v242
    %v253 = vmul.u32 %v208, %v199
    %v254 = vadd.s32 %v230, %v249
    %vm255 = vc.u32 %v230, %v249
    %v256 = vadd.s32 %v252, 1
    %v257 = vsel %vm255, %v256, %v252
    %v258 = vadd.s32 %v253, %v257
    %v259 = vadd.s32 %v258, 536870912
    %v260 = vshrl.u32 %v259, 30
    %v261 = vshll.u32 %v260, 30
    %v262 = vsub.s32 %v258, %v261
    %vm263 = vcmp.lt.s32.totalorder %v262, 0
    %v264 = vsub.s32 0, %v262
    %v265 = vsel %vm263, %v264, %v262
    %v266 = vclz %v265
    %v267 = vsub.s32 %v266, 2
    %vm268 = vcmp.gt.s32.totalorder 0, %v267
    %v269 = vsel %vm268, 0, %v267
    %v270 = vsub.s32 32, %v269
    %v271 = vshll.u32 %v262, %v269
    %v272 = vshrl.u32 %v254, %v270
    %v273 = vor.u32 %v271, %v272
    %v274 = vsub.s32 4294967266, %v269
    %v275 = vadd.s32 %v274, 127
    %v276 = vshll.u32 %v275, 23
    %v277 = vor.u32 4788187, %v276
    %v278 = vand.u32 2147483647, %v277
    %v280 = vcvt.s32.f32 %v273
    %v281 = vmul.f32 %v280, %v278
    %v282 = vxor.u32 %v281, 2147483648
    %v283 = vsel %vm162, %v282, %v281
    %v284 = vsub.s32 4, %v260
    %v285 = vsel %vm162, %v284, %v260
    %v286 = vsel %vm161, %v159, %v283
    %v287 = vsel %vm161, 0, %v285
    %v288 = vmul.f32 %v286, %v286
    %v289 = vmul.f32 %v288, -0.001358992
    %v290 = vadd.f32 %v289, 0.041655596
    %v291 = vmul.f32 %v288, %v290
    %v292 = vadd.f32 %v291, -0.4999988
    %v293 = vmul.f32 %v288, %v292
    %v294 = vadd.f32 1.0, %v293
    %v295 = vmul.f32 %v286, %v286
    %v296 = vmul.f32 %v295, -0.00019511016
    %v297 = vadd.f32 %v296, 0.008332121
    %v298 = vmul.f32 %v295, %v297
    %v299 = vadd.f32 %v298, -0.16666654
    %v300 = vmul.f32 %v295, %v299
    %v301 = vadd.f32 %v300, 1.0
    %v302 = vmul.f32 %v301, %v286
    %vm303 = vweird.f32 %v159
    %v304 = vand.u32 %v287, 3
    %vm305 = vcmp.lt.s32.totalorder %v304, 2
    %vm306 = vcmp.eq.s32.totalorder %v304, 0
    %v307 = vxor.u32 %v302, 2147483648
    %v308 = vsel %vm306, %v294, %v307
    %vm309 = vcmp.eq.s32.totalorder %v304, 2
    %v310 = vxor.u32 %v294, 2147483648
    %v311 = vsel %vm309, %v310, %v302
    %v312 = vsel %vm305, %v308, %v311
    %v313 = vsel %vm303, nan, %v312
    %v314 = vand.u32 2147483647, %v159
    %vm315 = vcmp.le.f32.partialorder %v314, 0.7853982
    %vm316 = vcmp.lt.s32.totalorder %v159, 0
    %v317 = vand.u32 %v159, 2139095040
    %v318 = vshrl.u32 %v317, 23
    %v319 = vsub.s32 %v318, 127
    %v320 = vand.u32 2147483647, %v159
    %v321 = vand.u32 %v320, 8388607
    %v322 = vor.u32 %v321, 8388608
    %v323 = vsub.s32 0, %v322
    %v324 = vadd.s32 %v319, 1
    %vm325 = vcmp.gt.s32.totalorder %v324, 0
    %v326 = vsel %vm325, %v324, 0
    %v327 = vshrl.u32 %v326, 5
    %v328 = vand.u32 %v326, 31
    %v329 = vsub.s32 32, %v328
    %v330 = vshrl.u32 683565275, %v329
    %v331 = vshll.u32 683565275, %v328
    %v332 = vshrl.u32 2475754826, %v329
    %v333 = vor.u32 %v331, %v332
    %v334 = vshll.u32 2475754826, %v328
    %v335 = vshrl.u32 2131351028, %v329
    %v336 = vor.u32 %v334, %v335
    %v337 = vshll.u32 2131351028, %v328
    %v338 = vshrl.u32 2102212464, %v329
    %v339 = vor.u32 %v337, %v338
    %v340 = vshll.u32 2102212464, %v328
    %v341 = vshrl.u32 920167782, %v329
    %v342 = vor.u32 %v340, %v341
    %v343 = vshll.u32 920167782, %v328
    %v344 = vshrl.u32 1326507024, %v329
    %v345 = vor.u32 %v343, %v344
    %vm346 = vcmp.lt.s32.totalorder %v327, 1
    %vm347 = vcmp.lt.s32.totalorder %v327, 2
    %vm348 = vcmp.lt.s32.totalorder %v327, 3
    %vm349 = vcmp.lt.s32.totalorder %v327, 4
    %v350 = vsel %vm346, %v330, %v333
    %v351 = vsel %vm349, %v339, 2102212464
    %v352 = vsel %vm348, %v336, %v351
    %v353 = vsel %vm347, %v350, %v352
    %v354 = vsel %vm346, %v333, %v336
    %v355 = vsel %vm349, %v342, 920167782
    %v356 = vsel %vm348, %v339, %v355
    %v357 = vsel %vm347, %v354, %v356
    %v358 = vsel %vm346, %v336, %v339
    %v359 = vsel %vm349, %v345, 1326507024
    %v360 = vsel %vm348, %v342, %v359
    %v361 = vsel %vm347, %v358, %v360
    %v362 = vshll.u32 %v322, 8
    %v363 = vand.u32 %v362, 65535
    %v364 = vshrl.u32 %v362, 16
    %v365 = vand.u32 %v361, 65535
    %v366 = vshrl.u32 %v361, 16
    %v367 = vmul.u32 %v363, %v365
    %v368 = vmul.u32 %v363, %v366
    %v369 = vmul.u32 %v364, %v365
    %v370 = vmul.u32 %v364, %v366
    %v371 = vshll.u32 %v368, 16
    %v372 = vshrl.u32 %v368, 16
    %v373 = vshll.u32 %v369, 16
    %v374 = vshrl.u32 %v369, 16
    %vm375 = vc.u32 %v367, %v371
    %v376 = vsel %vm375, 1, 0
    %v377 = vadd.s32 %v367, %v371
    %v378 = vadd.s32 %v370, %v376
    %vm379 = vc.u32 %v377, %v373
    %v380 = vsel %vm379, 1, 0
    %v381 = vadd.s32 %v377, %v373
    %v382 = vadd.s32 %v378, %v380
    %v383 = vadd.s32 %v382, %v372
    %v384 = vadd.s32 %v383, %v374
    %v385 = vand.u32 %v362, 65535
    %v386 = vshrl.u32 %v362, 16
    %v387 = vand.u32 %v357, 65535
    %v388 = vshrl.u32 %v357, 16
    %v389 = vmul.u32 %v385, %v387
    %v390 = vmul.u32 %v385, %v388
    %v391 = vmul.u32 %v386, %v387
    %v392 = vmul.u32 %v386, %v388
    %v393 = vshll.u32 %v390, 16
    %v394 = vshrl.u32 %v390, 16
    %v395 = vshll.u32 %v391, 16
    %v396 = vshrl.u32 %v391, 16
    %vm397 = vc.u32 %v389, %v393
    %v398 = vsel %vm397, 1, 0
    %v399 = vadd.s32 %v389, %v393
    %v400 = vadd.s32 %v392, %v398
    %vm401 = vc.u32 %v399, %v395
    %v402 = vsel %vm401, 1, 0
    %v403 = vadd.s32 %v399, %v395
    %v404 = vadd.s32 %v400, %v402
    %v405 = vadd.s32 %v404, %v394
    %v406 = vadd.s32 %v405, %v396
    %v407 = vmul.u32 %v362, %v353
    %v408 = vadd.s32 %v384, %v403
    %vm409 = vc.u32 %v384, %v403
    %v410 = vadd.s32 %v406, 1
    %v411 = vsel %vm409, %v410, %v406
    %v412 = vadd.s32 %v407, %v411
    %v413 = vadd.s32 %v412, 536870912
    %v414 = vshrl.u32 %v413, 30
    %v415 = vshll.u32 %v414, 30
    %v416 = vsub.s32 %v412, %v415
    %vm417 = vcmp.lt.s32.totalorder %v416, 0
    %v418 = vsub.s32 0, %v416
    %v419 = vsel %vm417, %v418, %v416
    %v420 = vclz %v419
    %v421 = vsub.s32 %v420, 2
    %vm422 = vcmp.gt.s32.totalorder 0, %v421
    %v423 = vsel %vm422, 0, %v421
    %v424 = vsub.s32 32, %v423
    %v425 = vshll.u32 %v416, %v423
    %v426 = vshrl.u32 %v408, %v424
    %v427 = vor.u32 %v425, %v426
    %v428 = vsub.s32 4294967266, %v423
    %v429 = vadd.s32 %v428, 127
    %v430 = vshll.u32 %v429, 23
    %v431 = vor.u32 4788187, %v430
    %v432 = vand.u32 2147483647, %v431
    %v434 = vcvt.s32.f32 %v427
    %v435 = vmul.f32 %v434, %v432
    %v436 = vxor.u32 %v435, 2147483648
    %v437 = vsel %vm316, %v436, %v435
    %v438 = vsub.s32 4, %v414
    %v439 = vsel %vm316, %v438, %v414
    %v440 = vsel %vm315, %v159, %v437
    %v441 = vsel %vm315, 0, %v439
    %v442 = vmul.f32 %v440, %v440
    %v443 = vmul.f32 %v442, -0.001358992
    %v444 = vadd.f32 %v443, 0.041655596
    %v445 = vmul.f32 %v442, %v444
    %v446 = vadd.f32 %v445, -0.4999988
    %v447 = vmul.f32 %v442, %v446
    %v448 = vadd.f32 1.0, %v447
    %v449 = vmul.f32 %v440, %v440
    %v450 = vmul.f32 %v449, -0.00019511016
    %v451 = vadd.f32 %v450, 0.008332121
    %v452 = vmul.f32 %v449, %v451
    %v453 = vadd.f32 %v452, -0.16666654
    %v454 = vmul.f32 %v449, %v453
    %v455 = vadd.f32 %v454, 1.0
    %v456 = vmul.f32 %v455, %v440
    %vm457 = vweird.f32 %v159
    %v458 = vadd.s32 %v441, 3
    %v459 = vand.u32 %v458, 3
    %vm460 = vcmp.lt.s32.totalorder %v459, 2
    %vm461 = vcmp.eq.s32.totalorder %v459, 0
    %v462 = vxor.u32 %v456, 2147483648
    %v463 = vsel %vm461, %v448, %v462
    %vm464 = vcmp.eq.s32.totalorder %v459, 2
    %v465 = vxor.u32 %v448, 2147483648
    %v466 = vsel %vm464, %v465, %v456
    %v467 = vsel %vm460, %v463, %v466
    %v468 = vsel %vm457, nan, %v467
    %v469 = vand.u32 2147483647, %v158
    %vm470 = vcmp.le.f32.partialorder %v469, 0.7853982
    %vm471 = vcmp.lt.s32.totalorder %v158, 0
    %v472 = vand.u32 %v158, 2139095040
    %v473 = vshrl.u32 %v472, 23
    %v474 = vsub.s32 %v473, 127
    %v475 = vand.u32 2147483647, %v158
    %v476 = vand.u32 %v475, 8388607
    %v477 = vor.u32 %v476, 8388608
    %v478 = vsub.s32 0, %v477
    %v479 = vadd.s32 %v474, 1
    %vm480 = vcmp.gt.s32.totalorder %v479, 0
    %v481 = vsel %vm480, %v479, 0
    %v482 = vshrl.u32 %v481, 5
    %v483 = vand.u32 %v481, 31
    %v484 = vsub.s32 32, %v483
    %v485 = vshrl.u32 683565275, %v484
    %v486 = vshll.u32 683565275, %v483
    %v487 = vshrl.u32 2475754826, %v484
    %v488 = vor.u32 %v486, %v487
    %v489 = vshll.u32 2475754826, %v483
    %v490 = vshrl.u32 2131351028, %v484
    %v491 = vor.u32 %v489, %v490
    %v492 = vshll.u32 2131351028, %v483
    %v493 = vshrl.u32 2102212464, %v484
    %v494 = vor.u32 %v492, %v493
    %v495 = vshll.u32 2102212464, %v483
    %v496 = vshrl.u32 920167782, %v484
    %v497 = vor.u32 %v495, %v496
    %v498 = vshll.u32 920167782, %v483
    %v499 = vshrl.u32 1326507024, %v484
    %v500 = vor.u32 %v498, %v499
    %vm501 = vcmp.lt.s32.totalorder %v482, 1
    %vm502 = vcmp.lt.s32.totalorder %v482, 2
    %vm503 = vcmp.lt.s32.totalorder %v482, 3
    %vm504 = vcmp.lt.s32.totalorder %v482, 4
    %v505 = vsel %vm501, %v485, %v488
    %v506 = vsel %vm504, %v494, 2102212464
    %v507 = vsel %vm503, %v491, %v506
    %v508 = vsel %vm502, %v505, %v507
    %v509 = vsel %vm501, %v488, %v491
    %v510 = vsel %vm504, %v497, 920167782
    %v511 = vsel %vm503, %v494, %v510
    %v512 = vsel %vm502, %v509, %v511
    %v513 = vsel %vm501, %v491, %v494
    %v514 = vsel %vm504, %v500, 1326507024
    %v515 = vsel %vm503, %v497, %v514
    %v516 = vsel %vm502, %v513, %v515
    %v517 = vshll.u32 %v477, 8
    %v518 = vand.u32 %v517, 65535
    %v519 = vshrl.u32 %v517, 16
    %v520 = vand.u32 %v516, 65535
    %v521 = vshrl.u32 %v516, 16
    %v522 = vmul.u32 %v518, %v520
    %v523 = vmul.u32 %v518, %v521
    %v524 = vmul.u32 %v519, %v520
    %v525 = vmul.u32 %v519, %v521
    %v526 = vshll.u32 %v523, 16
    %v527 = vshrl.u32 %v523, 16
    %v528 = vshll.u32 %v524, 16
    %v529 = vshrl.u32 %v524, 16
    %vm530 = vc.u32 %v522, %v526
    %v531 = vsel %vm530, 1, 0
    %v532 = vadd.s32 %v522, %v526
    %v533 = vadd.s32 %v525, %v531
    %vm534 = vc.u32 %v532, %v528
    %v535 = vsel %vm534, 1, 0
    %v536 = vadd.s32 %v532, %v528
    %v537 = vadd.s32 %v533, %v535
    %v538 = vadd.s32 %v537, %v527
    %v539 = vadd.s32 %v538, %v529
    %v540 = vand.u32 %v517, 65535
    %v541 = vshrl.u32 %v517, 16
    %v542 = vand.u32 %v512, 65535
    %v543 = vshrl.u32 %v512, 16
    %v544 = vmul.u32 %v540, %v542
    %v545 = vmul.u32 %v540, %v543
    %v546 = vmul.u32 %v541, %v542
    %v547 = vmul.u32 %v541, %v543
    %v548 = vshll.u32 %v545, 16
    %v549 = vshrl.u32 %v545, 16
    %v550 = vshll.u32 %v546, 16
    %v551 = vshrl.u32 %v546, 16
    %vm552 = vc.u32 %v544, %v548
    %v553 = vsel %vm552, 1, 0
    %v554 = vadd.s32 %v544, %v548
    %v555 = vadd.s32 %v547, %v553
    %vm556 = vc.u32 %v554, %v550
    %v557 = vsel %vm556, 1, 0
    %v558 = vadd.s32 %v554, %v550
    %v559 = vadd.s32 %v555, %v557
    %v560 = vadd.s32 %v559, %v549
    %v561 = vadd.s32 %v560, %v551
    %v562 = vmul.u32 %v517, %v508
    %v563 = vadd.s32 %v539, %v558
    %vm564 = vc.u32 %v539, %v558
    %v565 = vadd.s32 %v561, 1
    %v566 = vsel %vm564, %v565, %v561
    %v567 = vadd.s32 %v562, %v566
    %v568 = vadd.s32 %v567, 536870912
    %v569 = vshrl.u32 %v568, 30
    %v570 = vshll.u32 %v569, 30
    %v571 = vsub.s32 %v567, %v570
    %vm572 = vcmp.lt.s32.totalorder %v571, 0
    %v573 = vsub.s32 0, %v571
    %v574 = vsel %vm572, %v573, %v571
    %v575 = vclz %v574
    %v576 = vsub.s32 %v575, 2
    %vm577 = vcmp.gt.s32.totalorder 0, %v576
    %v578 = vsel %vm577, 0, %v576
    %v579 = vsub.s32 32, %v578
    %v580 = vshll.u32 %v571, %v578
    %v581 = vshrl.u32 %v563, %v579
    %v582 = vor.u32 %v580, %v581
    %v583 = vsub.s32 4294967266, %v578
    %v584 = vadd.s32 %v583, 127
    %v585 = vshll.u32 %v584, 23
    %v586 = vor.u32 4788187, %v585
    %v587 = vand.u32 2147483647, %v586
    %v589 = vcvt.s32.f32 %v582
    %v590 = vmul.f32 %v589, %v587
    %v591 = vxor.u32 %v590, 2147483648
    %v592 = vsel %vm471, %v591, %v590
    %v593 = vsub.s32 4, %v569
    %v594 = vsel %vm471, %v593, %v569
    %v595 = vsel %vm470, %v158, %v592
    %v596 = vsel %vm470, 0, %v594
    %v597 = vmul.f32 %v595, %v595
    %v598 = vmul.f32 %v597, -0.001358992
    %v599 = vadd.f32 %v598, 0.041655596
    %v600 = vmul.f32 %v597, %v599
    %v601 = vadd.f32 %v600, -0.4999988
    %v602 = vmul.f32 %v597, %v601
    %v603 = vadd.f32 1.0, %v602
    %v604 = vmul.f32 %v595, %v595
    %v605 = vmul.f32 %v604, -0.00019511016
    %v606 = vadd.f32 %v605, 0.008332121
    %v607 = vmul.f32 %v604, %v606
    %v608 = vadd.f32 %v607, -0.16666654
    %v609 = vmul.f32 %v604, %v608
    %v610 = vadd.f32 %v609, 1.0
    %v611 = vmul.f32 %v610, %v595
    %vm612 = vweird.f32 %v158
    %v613 = vand.u32 %v596, 3
    %vm614 = vcmp.lt.s32.totalorder %v613, 2
    %vm615 = vcmp.eq.s32.totalorder %v613, 0
    %v616 = vxor.u32 %v611, 2147483648
    %v617 = vsel %vm615, %v603, %v616
    %vm618 = vcmp.eq.s32.totalorder %v613, 2
    %v619 = vxor.u32 %v603, 2147483648
    %v620 = vsel %vm618, %v619, %v611
    %v621 = vsel %vm614, %v617, %v620
    %v622 = vsel %vm612, nan, %v621
    %v623 = vand.u32 2147483647, %v158
    %vm624 = vcmp.le.f32.partialorder %v623, 0.7853982
    %vm625 = vcmp.lt.s32.totalorder %v158, 0
    %v626 = vand.u32 %v158, 2139095040
    %v627 = vshrl.u32 %v626, 23
    %v628 = vsub.s32 %v627, 127
    %v629 = vand.u32 2147483647, %v158
    %v630 = vand.u32 %v629, 8388607
    %v631 = vor.u32 %v630, 8388608
    %v632 = vsub.s32 0, %v631
    %v633 = vadd.s32 %v628, 1
    %vm634 = vcmp.gt.s32.totalorder %v633, 0
    %v635 = vsel %vm634, %v633, 0
    %v636 = vshrl.u32 %v635, 5
    %v637 = vand.u32 %v635, 31
    %v638 = vsub.s32 32, %v637
    %v639 = vshrl.u32 683565275, %v638
    %v640 = vshll.u32 683565275, %v637
    %v641 = vshrl.u32 2475754826, %v638
    %v642 = vor.u32 %v640, %v641
    %v643 = vshll.u32 2475754826, %v637
    %v644 = vshrl.u32 2131351028, %v638
    %v645 = vor.u32 %v643, %v644
    %v646 = vshll.u32 2131351028, %v637
    %v647 = vshrl.u32 2102212464, %v638
    %v648 = vor.u32 %v646, %v647
    %v649 = vshll.u32 2102212464, %v637
    %v650 = vshrl.u32 920167782, %v638
    %v651 = vor.u32 %v649, %v650
    %v652 = vshll.u32 920167782, %v637
    %v653 = vshrl.u32 1326507024, %v638
    %v654 = vor.u32 %v652, %v653
    %vm655 = vcmp.lt.s32.totalorder %v636, 1
    %vm656 = vcmp.lt.s32.totalorder %v636, 2
    %vm657 = vcmp.lt.s32.totalorder %v636, 3
    %vm658 = vcmp.lt.s32.totalorder %v636, 4
    %v659 = vsel %vm655, %v639, %v642
    %v660 = vsel %vm658, %v648, 2102212464
    %v661 = vsel %vm657, %v645, %v660
    %v662 = vsel %vm656, %v659, %v661
    %v663 = vsel %vm655, %v642, %v645
    %v664 = vsel %vm658, %v651, 920167782
    %v665 = vsel %vm657, %v648, %v664
    %v666 = vsel %vm656, %v663, %v665
    %v667 = vsel %vm655, %v645, %v648
    %v668 = vsel %vm658, %v654, 1326507024
    %v669 = vsel %vm657, %v651, %v668
    %v670 = vsel %vm656, %v667, %v669
    %v671 = vshll.u32 %v631, 8
    %v672 = vand.u32 %v671, 65535
    %v673 = vshrl.u32 %v671, 16
    %v674 = vand.u32 %v670, 65535
    %v675 = vshrl.u32 %v670, 16
    %v676 = vmul.u32 %v672, %v674
    %v677 = vmul.u32 %v672, %v675
    %v678 = vmul.u32 %v673, %v674
    %v679 = vmul.u32 %v673, %v675
    %v680 = vshll.u32 %v677, 16
    %v681 = vshrl.u32 %v677, 16
    %v682 = vshll.u32 %v678, 16
    %v683 = vshrl.u32 %v678, 16
    %vm684 = vc.u32 %v676, %v680
    %v685 = vsel %vm684, 1, 0
    %v686 = vadd.s32 %v676, %v680
    %v687 = vadd.s32 %v679, %v685
    %vm688 = vc.u32 %v686, %v682
    %v689 = vsel %vm688, 1, 0
    %v690 = vadd.s32 %v686, %v682
    %v691 = vadd.s32 %v687, %v689
    %v692 = vadd.s32 %v691, %v681
    %v693 = vadd.s32 %v692, %v683
    %v694 = vand.u32 %v671, 65535
    %v695 = vshrl.u32 %v671, 16
    %v696 = vand.u32 %v666, 65535
    %v697 = vshrl.u32 %v666, 16
    %v698 = vmul.u32 %v694, %v696
    %v699 = vmul.u32 %v694, %v697
    %v700 = vmul.u32 %v695, %v696
    %v701 = vmul.u32 %v695, %v697
    %v702 = vshll.u32 %v699, 16
    %v703 = vshrl.u32 %v699, 16
    %v704 = vshll.u32 %v700, 16
    %v705 = vshrl.u32 %v700, 16
    %vm706 = vc.u32 %v698, %v702
    %v707 = vsel %vm706, 1, 0
    %v708 = vadd.s32 %v698, %v702
    %v709 = vadd.s32 %v701, %v707
    %vm710 = vc.u32 %v708, %v704
    %v711 = vsel %vm710, 1, 0
    %v712 = vadd.s32 %v708, %v704
    %v713 = vadd.s32 %v709, %v711
    %v714 = vadd.s32 %v713, %v703
    %v715 = vadd.s32 %v714, %v705
    %v716 = vmul.u32 %v671, %v662
    %v717 = vadd.s32 %v693, %v712
    %vm718 = vc.u32 %v693, %v712
    %v719 = vadd.s32 %v715, 1
    %v720 = vsel %vm718, %v719, %v715
    %v721 = vadd.s32 %v716, %v720
    %v722 = vadd.s32 %v721, 536870912
    %v723 = vshrl.u32 %v722, 30
    %v724 = vshll.u32 %v723, 30
    %v725 = vsub.s32 %v721, %v724
    %vm726 = vcmp.lt.s32.totalorder %v725, 0
    %v727 = vsub.s32 0, %v725
    %v728 = vsel %vm726, %v727, %v725
    %v729 = vclz %v728
    %v730 = vsub.s32 %v729, 2
    %vm731 = vcmp.gt.s32.totalorder 0, %v730
    %v732 = vsel %vm731, 0, %v730
    %v733 = vsub.s32 32, %v732
    %v734 = vshll.u32 %v725, %v732
    %v735 = vshrl.u32 %v717, %v733
    %v736 = vor.u32 %v734, %v735
    %v737 = vsub.s32 4294967266, %v732
    %v738 = vadd.s32 %v737, 127
    %v739 = vshll.u32 %v738, 23
    %v740 = vor.u32 4788187, %v739
    %v741 = vand.u32 2147483647, %v740
    %v743 = vcvt.s32.f32 %v736
    %v744 = vmul.f32 %v743, %v741
    %v745 = vxor.u32 %v744, 2147483648
    %v746 = vsel %vm625, %v745, %v744
    %v747 = vsub.s32 4, %v723
    %v748 = vsel %vm625, %v747, %v723
    %v749 = vsel %vm624, %v158, %v746
    %v750 = vsel %vm624, 0, %v748
    %v751 = vmul.f32 %v749, %v749
    %v752 = vmul.f32 %v751, -0.001358992
    %v753 = vadd.f32 %v752, 0.041655596
    %v754 = vmul.f32 %v751, %v753
    %v755 = vadd.f32 %v754, -0.4999988
    %v756 = vmul.f32 %v751, %v755
    %v757 = vadd.f32 1.0, %v756
    %v758 = vmul.f32 %v749, %v749
    %v759 = vmul.f32 %v758, -0.00019511016
    %v760 = vadd.f32 %v759, 0.008332121
    %v761 = vmul.f32 %v758, %v760
    %v762 = vadd.f32 %v761, -0.16666654
    %v763 = vmul.f32 %v758, %v762
    %v764 = vadd.f32 %v763, 1.0
    %v765 = vmul.f32 %v764, %v749
    %vm766 = vweird.f32 %v158
    %v767 = vadd.s32 %v750, 3
    %v768 = vand.u32 %v767, 3
    %vm769 = vcmp.lt.s32.totalorder %v768, 2
    %vm770 = vcmp.eq.s32.totalorder %v768, 0
    %v771 = vxor.u32 %v765, 2147483648
    %v772 = vsel %vm770, %v757, %v771
    %vm773 = vcmp.eq.s32.totalorder %v768, 2
    %v774 = vxor.u32 %v757, 2147483648
    %v775 = vsel %vm773, %v774, %v765
    %v776 = vsel %vm769, %v772, %v775
    %v777 = vsel %vm766, nan, %v776
    %v778 = vmul.f32 %v313, %v76
    %v779 = vmul.f32 %v313, %v77
    %v780 = vmul.f32 %v468, %v85
    %v781 = vmul.f32 %v468, %v86
    %v782 = vsub.f32 %v778, %v780
    %v783 = vsub.f32 %v779, %v781
    %v784 = vmul.f32 %v622, %v468
    %v785 = vmul.f32 %v784, %v97
    %v786 = vmul.f32 %v784, %v98
    %v787 = vadd.f32 %v782, %v785
    %v788 = vadd.f32 %v783, %v786
    %v789 = vmul.f32 %v622, %v313
    %v790 = vmul.f32 %v789, %v105
    %v791 = vmul.f32 %v789, %v106
    %v792 = vadd.f32 %v787, %v790
    %v793 = vadd.f32 %v788, %v791
    %v794 = vmul.f32 %v777, %v468
    %v795 = vmul.f32 %v794, %v99
    %v796 = vmul.f32 %v794, %v100
    %v797 = vadd.f32 %v792, %v795
    %v798 = vadd.f32 %v793, %v796
    %v799 = vmul.f32 %v777, %v313
    %v800 = vmul.f32 %v799, %v107
    %v801 = vmul.f32 %v799, %v108
    %v802 = vadd.f32 %v797, %v800
    %v803 = vadd.f32 %v798, %v801
    %s804 = sld [smem:[#allocation2 + $0x2]]
    %v805 = vstv %s804
    %s806 = sld [smem:[#allocation2 + $0x3]]
    %v807 = vstv %s806
    %v808 = vmul.f32 %v805, 0.5
    %v809 = vand.u32 2147483647, %v808
    %vm810 = vcmp.le.f32.partialorder %v809, 0.7853982
    %vm811 = vcmp.lt.s32.totalorder %v808, 0
    %v812 = vand.u32 %v808, 2139095040
    %v813 = vshrl.u32 %v812, 23
    %v814 = vsub.s32 %v813, 127
    %v815 = vand.u32 2147483647, %v808
    %v816 = vand.u32 %v815, 8388607
    %v817 = vor.u32 %v816, 8388608
    %v818 = vsub.s32 0, %v817
    %v819 = vadd.s32 %v814, 1
    %vm820 = vcmp.gt.s32.totalorder %v819, 0
    %v821 = vsel %vm820, %v819, 0
    %v822 = vshrl.u32 %v821, 5
    %v823 = vand.u32 %v821, 31
    %v824 = vsub.s32 32, %v823
    %v825 = vshrl.u32 683565275, %v824
    %v826 = vshll.u32 683565275, %v823
    %v827 = vshrl.u32 2475754826, %v824
    %v828 = vor.u32 %v826, %v827
    %v829 = vshll.u32 2475754826, %v823
    %v830 = vshrl.u32 2131351028, %v824
    %v831 = vor.u32 %v829, %v830
    %v832 = vshll.u32 2131351028, %v823
    %v833 = vshrl.u32 2102212464, %v824
    %v834 = vor.u32 %v832, %v833
    %v835 = vshll.u32 2102212464, %v823
    %v836 = vshrl.u32 920167782, %v824
    %v837 = vor.u32 %v835, %v836
    %v838 = vshll.u32 920167782, %v823
    %v839 = vshrl.u32 1326507024, %v824
    %v840 = vor.u32 %v838, %v839
    %vm841 = vcmp.lt.s32.totalorder %v822, 1
    %vm842 = vcmp.lt.s32.totalorder %v822, 2
    %vm843 = vcmp.lt.s32.totalorder %v822, 3
    %vm844 = vcmp.lt.s32.totalorder %v822, 4
    %v845 = vsel %vm841, %v825, %v828
    %v846 = vsel %vm844, %v834, 2102212464
    %v847 = vsel %vm843, %v831, %v846
    %v848 = vsel %vm842, %v845, %v847
    %v849 = vsel %vm841, %v828, %v831
    %v850 = vsel %vm844, %v837, 920167782
    %v851 = vsel %vm843, %v834, %v850
    %v852 = vsel %vm842, %v849, %v851
    %v853 = vsel %vm841, %v831, %v834
    %v854 = vsel %vm844, %v840, 1326507024
    %v855 = vsel %vm843, %v837, %v854
    %v856 = vsel %vm842, %v853, %v855
    %v857 = vshll.u32 %v817, 8
    %v858 = vand.u32 %v857, 65535
    %v859 = vshrl.u32 %v857, 16
    %v860 = vand.u32 %v856, 65535
    %v861 = vshrl.u32 %v856, 16
    %v862 = vmul.u32 %v858, %v860
    %v863 = vmul.u32 %v858, %v861
    %v864 = vmul.u32 %v859, %v860
    %v865 = vmul.u32 %v859, %v861
    %v866 = vshll.u32 %v863, 16
    %v867 = vshrl.u32 %v863, 16
    %v868 = vshll.u32 %v864, 16
    %v869 = vshrl.u32 %v864, 16
    %vm870 = vc.u32 %v862, %v866
    %v871 = vsel %vm870, 1, 0
    %v872 = vadd.s32 %v862, %v866
    %v873 = vadd.s32 %v865, %v871
    %vm874 = vc.u32 %v872, %v868
    %v875 = vsel %vm874, 1, 0
    %v876 = vadd.s32 %v872, %v868
    %v877 = vadd.s32 %v873, %v875
    %v878 = vadd.s32 %v877, %v867
    %v879 = vadd.s32 %v878, %v869
    %v880 = vand.u32 %v857, 65535
    %v881 = vshrl.u32 %v857, 16
    %v882 = vand.u32 %v852, 65535
    %v883 = vshrl.u32 %v852, 16
    %v884 = vmul.u32 %v880, %v882
    %v885 = vmul.u32 %v880, %v883
    %v886 = vmul.u32 %v881, %v882
    %v887 = vmul.u32 %v881, %v883
    %v888 = vshll.u32 %v885, 16
    %v889 = vshrl.u32 %v885, 16
    %v890 = vshll.u32 %v886, 16
    %v891 = vshrl.u32 %v886, 16
    %vm892 = vc.u32 %v884, %v888
    %v893 = vsel %vm892, 1, 0
    %v894 = vadd.s32 %v884, %v888
    %v895 = vadd.s32 %v887, %v893
    %vm896 = vc.u32 %v894, %v890
    %v897 = vsel %vm896, 1, 0
    %v898 = vadd.s32 %v894, %v890
    %v899 = vadd.s32 %v895, %v897
    %v900 = vadd.s32 %v899, %v889
    %v901 = vadd.s32 %v900, %v891
    %v902 = vmul.u32 %v857, %v848
    %v903 = vadd.s32 %v879, %v898
    %vm904 = vc.u32 %v879, %v898
    %v905 = vadd.s32 %v901, 1
    %v906 = vsel %vm904, %v905, %v901
    %v907 = vadd.s32 %v902, %v906
    %v908 = vadd.s32 %v907, 536870912
    %v909 = vshrl.u32 %v908, 30
    %v910 = vshll.u32 %v909, 30
    %v911 = vsub.s32 %v907, %v910
    %vm912 = vcmp.lt.s32.totalorder %v911, 0
    %v913 = vsub.s32 0, %v911
    %v914 = vsel %vm912, %v913, %v911
    %v915 = vclz %v914
    %v916 = vsub.s32 %v915, 2
    %vm917 = vcmp.gt.s32.totalorder 0, %v916
    %v918 = vsel %vm917, 0, %v916
    %v919 = vsub.s32 32, %v918
    %v920 = vshll.u32 %v911, %v918
    %v921 = vshrl.u32 %v903, %v919
    %v922 = vor.u32 %v920, %v921
    %v923 = vsub.s32 4294967266, %v918
    %v924 = vadd.s32 %v923, 127
    %v925 = vshll.u32 %v924, 23
    %v926 = vor.u32 4788187, %v925
    %v927 = vand.u32 2147483647, %v926
    %v929 = vcvt.s32.f32 %v922
    %v930 = vmul.f32 %v929, %v927
    %v931 = vxor.u32 %v930, 2147483648
    %v932 = vsel %vm811, %v931, %v930
    %v933 = vsub.s32 4, %v909
    %v934 = vsel %vm811, %v933, %v909
    %v935 = vsel %vm810, %v808, %v932
    %v936 = vsel %vm810, 0, %v934
    %v937 = vmul.f32 %v935, %v935
    %v938 = vmul.f32 %v937, -0.001358992
    %v939 = vadd.f32 %v938, 0.041655596
    %v940 = vmul.f32 %v937, %v939
    %v941 = vadd.f32 %v940, -0.4999988
    %v942 = vmul.f32 %v937, %v941
    %v943 = vadd.f32 1.0, %v942
    %v944 = vmul.f32 %v935, %v935
    %v945 = vmul.f32 %v944, -0.00019511016
    %v946 = vadd.f32 %v945, 0.008332121
    %v947 = vmul.f32 %v944, %v946
    %v948 = vadd.f32 %v947, -0.16666654
    %v949 = vmul.f32 %v944, %v948
    %v950 = vadd.f32 %v949, 1.0
    %v951 = vmul.f32 %v950, %v935
    %vm952 = vweird.f32 %v808
    %v953 = vand.u32 %v936, 3
    %vm954 = vcmp.lt.s32.totalorder %v953, 2
    %vm955 = vcmp.eq.s32.totalorder %v953, 0
    %v956 = vxor.u32 %v951, 2147483648
    %v957 = vsel %vm955, %v943, %v956
    %vm958 = vcmp.eq.s32.totalorder %v953, 2
    %v959 = vxor.u32 %v943, 2147483648
    %v960 = vsel %vm958, %v959, %v951
    %v961 = vsel %vm954, %v957, %v960
    %v962 = vsel %vm952, nan, %v961
    %v963 = vand.u32 2147483647, %v808
    %vm964 = vcmp.le.f32.partialorder %v963, 0.7853982
    %vm965 = vcmp.lt.s32.totalorder %v808, 0
    %v966 = vand.u32 %v808, 2139095040
    %v967 = vshrl.u32 %v966, 23
    %v968 = vsub.s32 %v967, 127
    %v969 = vand.u32 2147483647, %v808
    %v970 = vand.u32 %v969, 8388607
    %v971 = vor.u32 %v970, 8388608
    %v972 = vsub.s32 0, %v971
    %v973 = vadd.s32 %v968, 1
    %vm974 = vcmp.gt.s32.totalorder %v973, 0
    %v975 = vsel %vm974, %v973, 0
    %v976 = vshrl.u32 %v975, 5
    %v977 = vand.u32 %v975, 31
    %v978 = vsub.s32 32, %v977
    %v979 = vshrl.u32 683565275, %v978
    %v980 = vshll.u32 683565275, %v977
    %v981 = vshrl.u32 2475754826, %v978
    %v982 = vor.u32 %v980, %v981
    %v983 = vshll.u32 2475754826, %v977
    %v984 = vshrl.u32 2131351028, %v978
    %v985 = vor.u32 %v983, %v984
    %v986 = vshll.u32 2131351028, %v977
    %v987 = vshrl.u32 2102212464, %v978
    %v988 = vor.u32 %v986, %v987
    %v989 = vshll.u32 2102212464, %v977
    %v990 = vshrl.u32 920167782, %v978
    %v991 = vor.u32 %v989, %v990
    %v992 = vshll.u32 920167782, %v977
    %v993 = vshrl.u32 1326507024, %v978
    %v994 = vor.u32 %v992, %v993
    %vm995 = vcmp.lt.s32.totalorder %v976, 1
    %vm996 = vcmp.lt.s32.totalorder %v976, 2
    %vm997 = vcmp.lt.s32.totalorder %v976, 3
    %vm998 = vcmp.lt.s32.totalorder %v976, 4
    %v999 = vsel %vm995, %v979, %v982
    %v1000 = vsel %vm998, %v988, 2102212464
    %v1001 = vsel %vm997, %v985, %v1000
    %v1002 = vsel %vm996, %v999, %v1001
    %v1003 = vsel %vm995, %v982, %v985
    %v1004 = vsel %vm998, %v991, 920167782
    %v1005 = vsel %vm997, %v988, %v1004
    %v1006 = vsel %vm996, %v1003, %v1005
    %v1007 = vsel %vm995, %v985, %v988
    %v1008 = vsel %vm998, %v994, 1326507024
    %v1009 = vsel %vm997, %v991, %v1008
    %v1010 = vsel %vm996, %v1007, %v1009
    %v1011 = vshll.u32 %v971, 8
    %v1012 = vand.u32 %v1011, 65535
    %v1013 = vshrl.u32 %v1011, 16
    %v1014 = vand.u32 %v1010, 65535
    %v1015 = vshrl.u32 %v1010, 16
    %v1016 = vmul.u32 %v1012, %v1014
    %v1017 = vmul.u32 %v1012, %v1015
    %v1018 = vmul.u32 %v1013, %v1014
    %v1019 = vmul.u32 %v1013, %v1015
    %v1020 = vshll.u32 %v1017, 16
    %v1021 = vshrl.u32 %v1017, 16
    %v1022 = vshll.u32 %v1018, 16
    %v1023 = vshrl.u32 %v1018, 16
    %vm1024 = vc.u32 %v1016, %v1020
    %v1025 = vsel %vm1024, 1, 0
    %v1026 = vadd.s32 %v1016, %v1020
    %v1027 = vadd.s32 %v1019, %v1025
    %vm1028 = vc.u32 %v1026, %v1022
    %v1029 = vsel %vm1028, 1, 0
    %v1030 = vadd.s32 %v1026, %v1022
    %v1031 = vadd.s32 %v1027, %v1029
    %v1032 = vadd.s32 %v1031, %v1021
    %v1033 = vadd.s32 %v1032, %v1023
    %v1034 = vand.u32 %v1011, 65535
    %v1035 = vshrl.u32 %v1011, 16
    %v1036 = vand.u32 %v1006, 65535
    %v1037 = vshrl.u32 %v1006, 16
    %v1038 = vmul.u32 %v1034, %v1036
    %v1039 = vmul.u32 %v1034, %v1037
    %v1040 = vmul.u32 %v1035, %v1036
    %v1041 = vmul.u32 %v1035, %v1037
    %v1042 = vshll.u32 %v1039, 16
    %v1043 = vshrl.u32 %v1039, 16
    %v1044 = vshll.u32 %v1040, 16
    %v1045 = vshrl.u32 %v1040, 16
    %vm1046 = vc.u32 %v1038, %v1042
    %v1047 = vsel %vm1046, 1, 0
    %v1048 = vadd.s32 %v1038, %v1042
    %v1049 = vadd.s32 %v1041, %v1047
    %vm1050 = vc.u32 %v1048, %v1044
    %v1051 = vsel %vm1050, 1, 0
    %v1052 = vadd.s32 %v1048, %v1044
    %v1053 = vadd.s32 %v1049, %v1051
    %v1054 = vadd.s32 %v1053, %v1043
    %v1055 = vadd.s32 %v1054, %v1045
    %v1056 = vmul.u32 %v1011, %v1002
    %v1057 = vadd.s32 %v1033, %v1052
    %vm1058 = vc.u32 %v1033, %v1052
    %v1059 = vadd.s32 %v1055, 1
    %v1060 = vsel %vm1058, %v1059, %v1055
    %v1061 = vadd.s32 %v1056, %v1060
    %v1062 = vadd.s32 %v1061, 536870912
    %v1063 = vshrl.u32 %v1062, 30
    %v1064 = vshll.u32 %v1063, 30
    %v1065 = vsub.s32 %v1061, %v1064
    %vm1066 = vcmp.lt.s32.totalorder %v1065, 0
    %v1067 = vsub.s32 0, %v1065
    %v1068 = vsel %vm1066, %v1067, %v1065
    %v1069 = vclz %v1068
    %v1070 = vsub.s32 %v1069, 2
    %vm1071 = vcmp.gt.s32.totalorder 0, %v1070
    %v1072 = vsel %vm1071, 0, %v1070
    %v1073 = vsub.s32 32, %v1072
    %v1074 = vshll.u32 %v1065, %v1072
    %v1075 = vshrl.u32 %v1057, %v1073
    %v1076 = vor.u32 %v1074, %v1075
    %v1077 = vsub.s32 4294967266, %v1072
    %v1078 = vadd.s32 %v1077, 127
    %v1079 = vshll.u32 %v1078, 23
    %v1080 = vor.u32 4788187, %v1079
    %v1081 = vand.u32 2147483647, %v1080
    %v1083 = vcvt.s32.f32 %v1076
    %v1084 = vmul.f32 %v1083, %v1081
    %v1085 = vxor.u32 %v1084, 2147483648
    %v1086 = vsel %vm965, %v1085, %v1084
    %v1087 = vsub.s32 4, %v1063
    %v1088 = vsel %vm965, %v1087, %v1063
    %v1089 = vsel %vm964, %v808, %v1086
    %v1090 = vsel %vm964, 0, %v1088
    %v1091 = vmul.f32 %v1089, %v1089
    %v1092 = vmul.f32 %v1091, -0.001358992
    %v1093 = vadd.f32 %v1092, 0.041655596
    %v1094 = vmul.f32 %v1091, %v1093
    %v1095 = vadd.f32 %v1094, -0.4999988
    %v1096 = vmul.f32 %v1091, %v1095
    %v1097 = vadd.f32 1.0, %v1096
    %v1098 = vmul.f32 %v1089, %v1089
    %v1099 = vmul.f32 %v1098, -0.00019511016
    %v1100 = vadd.f32 %v1099, 0.008332121
    %v1101 = vmul.f32 %v1098, %v1100
    %v1102 = vadd.f32 %v1101, -0.16666654
    %v1103 = vmul.f32 %v1098, %v1102
    %v1104 = vadd.f32 %v1103, 1.0
    %v1105 = vmul.f32 %v1104, %v1089
    %vm1106 = vweird.f32 %v808
    %v1107 = vadd.s32 %v1090, 3
    %v1108 = vand.u32 %v1107, 3
    %vm1109 = vcmp.lt.s32.totalorder %v1108, 2
    %vm1110 = vcmp.eq.s32.totalorder %v1108, 0
    %v1111 = vxor.u32 %v1105, 2147483648
    %v1112 = vsel %vm1110, %v1097, %v1111
    %vm1113 = vcmp.eq.s32.totalorder %v1108, 2
    %v1114 = vxor.u32 %v1097, 2147483648
    %v1115 = vsel %vm1113, %v1114, %v1105
    %v1116 = vsel %vm1109, %v1112, %v1115
    %v1117 = vsel %vm1106, nan, %v1116
    %v1118 = vand.u32 2147483647, %v807
    %vm1119 = vcmp.le.f32.partialorder %v1118, 0.7853982
    %vm1120 = vcmp.lt.s32.totalorder %v807, 0
    %v1121 = vand.u32 %v807, 2139095040
    %v1122 = vshrl.u32 %v1121, 23
    %v1123 = vsub.s32 %v1122, 127
    %v1124 = vand.u32 2147483647, %v807
    %v1125 = vand.u32 %v1124, 8388607
    %v1126 = vor.u32 %v1125, 8388608
    %v1127 = vsub.s32 0, %v1126
    %v1128 = vadd.s32 %v1123, 1
    %vm1129 = vcmp.gt.s32.totalorder %v1128, 0
    %v1130 = vsel %vm1129, %v1128, 0
    %v1131 = vshrl.u32 %v1130, 5
    %v1132 = vand.u32 %v1130, 31
    %v1133 = vsub.s32 32, %v1132
    %v1134 = vshrl.u32 683565275, %v1133
    %v1135 = vshll.u32 683565275, %v1132
    %v1136 = vshrl.u32 2475754826, %v1133
    %v1137 = vor.u32 %v1135, %v1136
    %v1138 = vshll.u32 2475754826, %v1132
    %v1139 = vshrl.u32 2131351028, %v1133
    %v1140 = vor.u32 %v1138, %v1139
    %v1141 = vshll.u32 2131351028, %v1132
    %v1142 = vshrl.u32 2102212464, %v1133
    %v1143 = vor.u32 %v1141, %v1142
    %v1144 = vshll.u32 2102212464, %v1132
    %v1145 = vshrl.u32 920167782, %v1133
    %v1146 = vor.u32 %v1144, %v1145
    %v1147 = vshll.u32 920167782, %v1132
    %v1148 = vshrl.u32 1326507024, %v1133
    %v1149 = vor.u32 %v1147, %v1148
    %vm1150 = vcmp.lt.s32.totalorder %v1131, 1
    %vm1151 = vcmp.lt.s32.totalorder %v1131, 2
    %vm1152 = vcmp.lt.s32.totalorder %v1131, 3
    %vm1153 = vcmp.lt.s32.totalorder %v1131, 4
    %v1154 = vsel %vm1150, %v1134, %v1137
    %v1155 = vsel %vm1153, %v1143, 2102212464
    %v1156 = vsel %vm1152, %v1140, %v1155
    %v1157 = vsel %vm1151, %v1154, %v1156
    %v1158 = vsel %vm1150, %v1137, %v1140
    %v1159 = vsel %vm1153, %v1146, 920167782
    %v1160 = vsel %vm1152, %v1143, %v1159
    %v1161 = vsel %vm1151, %v1158, %v1160
    %v1162 = vsel %vm1150, %v1140, %v1143
    %v1163 = vsel %vm1153, %v1149, 1326507024
    %v1164 = vsel %vm1152, %v1146, %v1163
    %v1165 = vsel %vm1151, %v1162, %v1164
    %v1166 = vshll.u32 %v1126, 8
    %v1167 = vand.u32 %v1166, 65535
    %v1168 = vshrl.u32 %v1166, 16
    %v1169 = vand.u32 %v1165, 65535
    %v1170 = vshrl.u32 %v1165, 16
    %v1171 = vmul.u32 %v1167, %v1169
    %v1172 = vmul.u32 %v1167, %v1170
    %v1173 = vmul.u32 %v1168, %v1169
    %v1174 = vmul.u32 %v1168, %v1170
    %v1175 = vshll.u32 %v1172, 16
    %v1176 = vshrl.u32 %v1172, 16
    %v1177 = vshll.u32 %v1173, 16
    %v1178 = vshrl.u32 %v1173, 16
    %vm1179 = vc.u32 %v1171, %v1175
    %v1180 = vsel %vm1179, 1, 0
    %v1181 = vadd.s32 %v1171, %v1175
    %v1182 = vadd.s32 %v1174, %v1180
    %vm1183 = vc.u32 %v1181, %v1177
    %v1184 = vsel %vm1183, 1, 0
    %v1185 = vadd.s32 %v1181, %v1177
    %v1186 = vadd.s32 %v1182, %v1184
    %v1187 = vadd.s32 %v1186, %v1176
    %v1188 = vadd.s32 %v1187, %v1178
    %v1189 = vand.u32 %v1166, 65535
    %v1190 = vshrl.u32 %v1166, 16
    %v1191 = vand.u32 %v1161, 65535
    %v1192 = vshrl.u32 %v1161, 16
    %v1193 = vmul.u32 %v1189, %v1191
    %v1194 = vmul.u32 %v1189, %v1192
    %v1195 = vmul.u32 %v1190, %v1191
    %v1196 = vmul.u32 %v1190, %v1192
    %v1197 = vshll.u32 %v1194, 16
    %v1198 = vshrl.u32 %v1194, 16
    %v1199 = vshll.u32 %v1195, 16
    %v1200 = vshrl.u32 %v1195, 16
    %vm1201 = vc.u32 %v1193, %v1197
    %v1202 = vsel %vm1201, 1, 0
    %v1203 = vadd.s32 %v1193, %v1197
    %v1204 = vadd.s32 %v1196, %v1202
    %vm1205 = vc.u32 %v1203, %v1199
    %v1206 = vsel %vm1205, 1, 0
    %v1207 = vadd.s32 %v1203, %v1199
    %v1208 = vadd.s32 %v1204, %v1206
    %v1209 = vadd.s32 %v1208, %v1198
    %v1210 = vadd.s32 %v1209, %v1200
    %v1211 = vmul.u32 %v1166, %v1157
    %v1212 = vadd.s32 %v1188, %v1207
    %vm1213 = vc.u32 %v1188, %v1207
    %v1214 = vadd.s32 %v1210, 1
    %v1215 = vsel %vm1213, %v1214, %v1210
    %v1216 = vadd.s32 %v1211, %v1215
    %v1217 = vadd.s32 %v1216, 536870912
    %v1218 = vshrl.u32 %v1217, 30
    %v1219 = vshll.u32 %v1218, 30
    %v1220 = vsub.s32 %v1216, %v1219
    %vm1221 = vcmp.lt.s32.totalorder %v1220, 0
    %v1222 = vsub.s32 0, %v1220
    %v1223 = vsel %vm1221, %v1222, %v1220
    %v1224 = vclz %v1223
    %v1225 = vsub.s32 %v1224, 2
    %vm1226 = vcmp.gt.s32.totalorder 0, %v1225
    %v1227 = vsel %vm1226, 0, %v1225
    %v1228 = vsub.s32 32, %v1227
    %v1229 = vshll.u32 %v1220, %v1227
    %v1230 = vshrl.u32 %v1212, %v1228
    %v1231 = vor.u32 %v1229, %v1230
    %v1232 = vsub.s32 4294967266, %v1227
    %v1233 = vadd.s32 %v1232, 127
    %v1234 = vshll.u32 %v1233, 23
    %v1235 = vor.u32 4788187, %v1234
    %v1236 = vand.u32 2147483647, %v1235
    %v1238 = vcvt.s32.f32 %v1231
    %v1239 = vmul.f32 %v1238, %v1236
    %v1240 = vxor.u32 %v1239, 2147483648
    %v1241 = vsel %vm1120, %v1240, %v1239
    %v1242 = vsub.s32 4, %v1218
    %v1243 = vsel %vm1120, %v1242, %v1218
    %v1244 = vsel %vm1119, %v807, %v1241
    %v1245 = vsel %vm1119, 0, %v1243
    %v1246 = vmul.f32 %v1244, %v1244
    %v1247 = vmul.f32 %v1246, -0.001358992
    %v1248 = vadd.f32 %v1247, 0.041655596
    %v1249 = vmul.f32 %v1246, %v1248
    %v1250 = vadd.f32 %v1249, -0.4999988
    %v1251 = vmul.f32 %v1246, %v1250
    %v1252 = vadd.f32 1.0, %v1251
    %v1253 = vmul.f32 %v1244, %v1244
    %v1254 = vmul.f32 %v1253, -0.00019511016
    %v1255 = vadd.f32 %v1254, 0.008332121
    %v1256 = vmul.f32 %v1253, %v1255
    %v1257 = vadd.f32 %v1256, -0.16666654
    %v1258 = vmul.f32 %v1253, %v1257
    %v1259 = vadd.f32 %v1258, 1.0
    %v1260 = vmul.f32 %v1259, %v1244
    %vm1261 = vweird.f32 %v807
    %v1262 = vand.u32 %v1245, 3
    %vm1263 = vcmp.lt.s32.totalorder %v1262, 2
    %vm1264 = vcmp.eq.s32.totalorder %v1262, 0
    %v1265 = vxor.u32 %v1260, 2147483648
    %v1266 = vsel %vm1264, %v1252, %v1265
    %vm1267 = vcmp.eq.s32.totalorder %v1262, 2
    %v1268 = vxor.u32 %v1252, 2147483648
    %v1269 = vsel %vm1267, %v1268, %v1260
    %v1270 = vsel %vm1263, %v1266, %v1269
    %v1271 = vsel %vm1261, nan, %v1270
    %v1272 = vand.u32 2147483647, %v807
    %vm1273 = vcmp.le.f32.partialorder %v1272, 0.7853982
    %vm1274 = vcmp.lt.s32.totalorder %v807, 0
    %v1275 = vand.u32 %v807, 2139095040
    %v1276 = vshrl.u32 %v1275, 23
    %v1277 = vsub.s32 %v1276, 127
    %v1278 = vand.u32 2147483647, %v807
    %v1279 = vand.u32 %v1278, 8388607
    %v1280 = vor.u32 %v1279, 8388608
    %v1281 = vsub.s32 0, %v1280
    %v1282 = vadd.s32 %v1277, 1
    %vm1283 = vcmp.gt.s32.totalorder %v1282, 0
    %v1284 = vsel %vm1283, %v1282, 0
    %v1285 = vshrl.u32 %v1284, 5
    %v1286 = vand.u32 %v1284, 31
    %v1287 = vsub.s32 32, %v1286
    %v1288 = vshrl.u32 683565275, %v1287
    %v1289 = vshll.u32 683565275, %v1286
    %v1290 = vshrl.u32 2475754826, %v1287
    %v1291 = vor.u32 %v1289, %v1290
    %v1292 = vshll.u32 2475754826, %v1286
    %v1293 = vshrl.u32 2131351028, %v1287
    %v1294 = vor.u32 %v1292, %v1293
    %v1295 = vshll.u32 2131351028, %v1286
    %v1296 = vshrl.u32 2102212464, %v1287
    %v1297 = vor.u32 %v1295, %v1296
    %v1298 = vshll.u32 2102212464, %v1286
    %v1299 = vshrl.u32 920167782, %v1287
    %v1300 = vor.u32 %v1298, %v1299
    %v1301 = vshll.u32 920167782, %v1286
    %v1302 = vshrl.u32 1326507024, %v1287
    %v1303 = vor.u32 %v1301, %v1302
    %vm1304 = vcmp.lt.s32.totalorder %v1285, 1
    %vm1305 = vcmp.lt.s32.totalorder %v1285, 2
    %vm1306 = vcmp.lt.s32.totalorder %v1285, 3
    %vm1307 = vcmp.lt.s32.totalorder %v1285, 4
    %v1308 = vsel %vm1304, %v1288, %v1291
    %v1309 = vsel %vm1307, %v1297, 2102212464
    %v1310 = vsel %vm1306, %v1294, %v1309
    %v1311 = vsel %vm1305, %v1308, %v1310
    %v1312 = vsel %vm1304, %v1291, %v1294
    %v1313 = vsel %vm1307, %v1300, 920167782
    %v1314 = vsel %vm1306, %v1297, %v1313
    %v1315 = vsel %vm1305, %v1312, %v1314
    %v1316 = vsel %vm1304, %v1294, %v1297
    %v1317 = vsel %vm1307, %v1303, 1326507024
    %v1318 = vsel %vm1306, %v1300, %v1317
    %v1319 = vsel %vm1305, %v1316, %v1318
    %v1320 = vshll.u32 %v1280, 8
    %v1321 = vand.u32 %v1320, 65535
    %v1322 = vshrl.u32 %v1320, 16
    %v1323 = vand.u32 %v1319, 65535
    %v1324 = vshrl.u32 %v1319, 16
    %v1325 = vmul.u32 %v1321, %v1323
    %v1326 = vmul.u32 %v1321, %v1324
    %v1327 = vmul.u32 %v1322, %v1323
    %v1328 = vmul.u32 %v1322, %v1324
    %v1329 = vshll.u32 %v1326, 16
    %v1330 = vshrl.u32 %v1326, 16
    %v1331 = vshll.u32 %v1327, 16
    %v1332 = vshrl.u32 %v1327, 16
    %vm1333 = vc.u32 %v1325, %v1329
    %v1334 = vsel %vm1333, 1, 0
    %v1335 = vadd.s32 %v1325, %v1329
    %v1336 = vadd.s32 %v1328, %v1334
    %vm1337 = vc.u32 %v1335, %v1331
    %v1338 = vsel %vm1337, 1, 0
    %v1339 = vadd.s32 %v1335, %v1331
    %v1340 = vadd.s32 %v1336, %v1338
    %v1341 = vadd.s32 %v1340, %v1330
    %v1342 = vadd.s32 %v1341, %v1332
    %v1343 = vand.u32 %v1320, 65535
    %v1344 = vshrl.u32 %v1320, 16
    %v1345 = vand.u32 %v1315, 65535
    %v1346 = vshrl.u32 %v1315, 16
    %v1347 = vmul.u32 %v1343, %v1345
    %v1348 = vmul.u32 %v1343, %v1346
    %v1349 = vmul.u32 %v1344, %v1345
    %v1350 = vmul.u32 %v1344, %v1346
    %v1351 = vshll.u32 %v1348, 16
    %v1352 = vshrl.u32 %v1348, 16
    %v1353 = vshll.u32 %v1349, 16
    %v1354 = vshrl.u32 %v1349, 16
    %vm1355 = vc.u32 %v1347, %v1351
    %v1356 = vsel %vm1355, 1, 0
    %v1357 = vadd.s32 %v1347, %v1351
    %v1358 = vadd.s32 %v1350, %v1356
    %vm1359 = vc.u32 %v1357, %v1353
    %v1360 = vsel %vm1359, 1, 0
    %v1361 = vadd.s32 %v1357, %v1353
    %v1362 = vadd.s32 %v1358, %v1360
    %v1363 = vadd.s32 %v1362, %v1352
    %v1364 = vadd.s32 %v1363, %v1354
    %v1365 = vmul.u32 %v1320, %v1311
    %v1366 = vadd.s32 %v1342, %v1361
    %vm1367 = vc.u32 %v1342, %v1361
    %v1368 = vadd.s32 %v1364, 1
    %v1369 = vsel %vm1367, %v1368, %v1364
    %v1370 = vadd.s32 %v1365, %v1369
    %v1371 = vadd.s32 %v1370, 536870912
    %v1372 = vshrl.u32 %v1371, 30
    %v1373 = vshll.u32 %v1372, 30
    %v1374 = vsub.s32 %v1370, %v1373
    %vm1375 = vcmp.lt.s32.totalorder %v1374, 0
    %v1376 = vsub.s32 0, %v1374
    %v1377 = vsel %vm1375, %v1376, %v1374
    %v1378 = vclz %v1377
    %v1379 = vsub.s32 %v1378, 2
    %vm1380 = vcmp.gt.s32.totalorder 0, %v1379
    %v1381 = vsel %vm1380, 0, %v1379
    %v1382 = vsub.s32 32, %v1381
    %v1383 = vshll.u32 %v1374, %v1381
    %v1384 = vshrl.u32 %v1366, %v1382
    %v1385 = vor.u32 %v1383, %v1384
    %v1386 = vsub.s32 4294967266, %v1381
    %v1387 = vadd.s32 %v1386, 127
    %v1388 = vshll.u32 %v1387, 23
    %v1389 = vor.u32 4788187, %v1388
    %v1390 = vand.u32 2147483647, %v1389
    %v1392 = vcvt.s32.f32 %v1385
    %v1393 = vmul.f32 %v1392, %v1390
    %v1394 = vxor.u32 %v1393, 2147483648
    %v1395 = vsel %vm1274, %v1394, %v1393
    %v1396 = vsub.s32 4, %v1372
    %v1397 = vsel %vm1274, %v1396, %v1372
    %v1398 = vsel %vm1273, %v807, %v1395
    %v1399 = vsel %vm1273, 0, %v1397
    %v1400 = vmul.f32 %v1398, %v1398
    %v1401 = vmul.f32 %v1400, -0.001358992
    %v1402 = vadd.f32 %v1401, 0.041655596
    %v1403 = vmul.f32 %v1400, %v1402
    %v1404 = vadd.f32 %v1403, -0.4999988
    %v1405 = vmul.f32 %v1400, %v1404
    %v1406 = vadd.f32 1.0, %v1405
    %v1407 = vmul.f32 %v1398, %v1398
    %v1408 = vmul.f32 %v1407, -0.00019511016
    %v1409 = vadd.f32 %v1408, 0.008332121
    %v1410 = vmul.f32 %v1407, %v1409
    %v1411 = vadd.f32 %v1410, -0.16666654
    %v1412 = vmul.f32 %v1407, %v1411
    %v1413 = vadd.f32 %v1412, 1.0
    %v1414 = vmul.f32 %v1413, %v1398
    %vm1415 = vweird.f32 %v807
    %v1416 = vadd.s32 %v1399, 3
    %v1417 = vand.u32 %v1416, 3
    %vm1418 = vcmp.lt.s32.totalorder %v1417, 2
    %vm1419 = vcmp.eq.s32.totalorder %v1417, 0
    %v1420 = vxor.u32 %v1414, 2147483648
    %v1421 = vsel %vm1419, %v1406, %v1420
    %vm1422 = vcmp.eq.s32.totalorder %v1417, 2
    %v1423 = vxor.u32 %v1406, 2147483648
    %v1424 = vsel %vm1422, %v1423, %v1414
    %v1425 = vsel %vm1418, %v1421, %v1424
    %v1426 = vsel %vm1415, nan, %v1425
    %v1427 = vmul.f32 %v962, %v122
    %v1428 = vmul.f32 %v962, %v123
    %v1429 = vmul.f32 %v1117, %v131
    %v1430 = vmul.f32 %v1117, %v132
    %v1431 = vsub.f32 %v1427, %v1429
    %v1432 = vsub.f32 %v1428, %v1430
    %v1433 = vmul.f32 %v1271, %v1117
    %v1434 = vmul.f32 %v1433, %v143
    %v1435 = vmul.f32 %v1433, %v144
    %v1436 = vadd.f32 %v1431, %v1434
    %v1437 = vadd.f32 %v1432, %v1435
    %v1438 = vmul.f32 %v1271, %v962
    %v1439 = vmul.f32 %v1438, %v151
    %v1440 = vmul.f32 %v1438, %v152
    %v1441 = vadd.f32 %v1436, %v1439
    %v1442 = vadd.f32 %v1437, %v1440
    %v1443 = vmul.f32 %v1426, %v1117
    %v1444 = vmul.f32 %v1443, %v145
    %v1445 = vmul.f32 %v1443, %v146
    %v1446 = vadd.f32 %v1441, %v1444
    %v1447 = vadd.f32 %v1442, %v1445
    %v1448 = vmul.f32 %v1426, %v962
    %v1449 = vmul.f32 %v1448, %v153
    %v1450 = vmul.f32 %v1448, %v154
    %v1451 = vadd.f32 %v1446, %v1449
    %v1452 = vadd.f32 %v1447, %v1450
    %vm1453 = vcmp.eq.s32.totalorder %v26, %v28
    %vm1454 = vcmp.eq.s32.totalorder %v27, %v28
    %vm1455 = vcmp.lt.s32.totalorder %v26, 2
    %vm1456 = vcmp.lt.s32.totalorder %v27, 2
    %vm1457 = vmand %vm1453, %vm1455
    %vm1458 = vmand %vm1454, %vm1456
    %vm1459 = vcmp.eq.s32.totalorder %v26, 2
    %vm1460 = vcmp.eq.s32.totalorder %v27, 2
    %vm1461 = vcmp.eq.s32.totalorder %v28, 3
    %vm1462 = vmand %vm1459, %vm1461
    %vm1463 = vmand %vm1460, %vm1461
    %vm1464 = vmor %vm1457, %vm1462
    %vm1465 = vmor %vm1458, %vm1463
    %vm1466 = vcmp.eq.s32.totalorder %v26, 3
    %vm1467 = vcmp.eq.s32.totalorder %v27, 3
    %vm1468 = vcmp.eq.s32.totalorder %v28, 2
    %vm1469 = vmand %vm1466, %vm1468
    %vm1470 = vmand %vm1467, %vm1468
    %vm1471 = vmor %vm1464, %vm1469
    %vm1472 = vmor %vm1465, %vm1470
    %vm1473 = vmand %vm1471, %vm32
    %vm1474 = vmand %vm1472, %vm33
    %v1475 = vsel %vm1473, 1.0, 0.0
    %v1476 = vsel %vm1474, 1.0, 0.0
    %s1477 = sld [smem:[#allocation2 + $0x4]]
    %v1478 = vstv %s1477
    %v1479 = vmul.f32 %v1478, 0.5
    %v1480 = vand.u32 2147483647, %v1479
    %vm1481 = vcmp.le.f32.partialorder %v1480, 0.7853982
    %vm1482 = vcmp.lt.s32.totalorder %v1479, 0
    %v1483 = vand.u32 %v1479, 2139095040
    %v1484 = vshrl.u32 %v1483, 23
    %v1485 = vsub.s32 %v1484, 127
    %v1486 = vand.u32 2147483647, %v1479
    %v1487 = vand.u32 %v1486, 8388607
    %v1488 = vor.u32 %v1487, 8388608
    %v1489 = vsub.s32 0, %v1488
    %v1490 = vadd.s32 %v1485, 1
    %vm1491 = vcmp.gt.s32.totalorder %v1490, 0
    %v1492 = vsel %vm1491, %v1490, 0
    %v1493 = vshrl.u32 %v1492, 5
    %v1494 = vand.u32 %v1492, 31
    %v1495 = vsub.s32 32, %v1494
    %v1496 = vshrl.u32 683565275, %v1495
    %v1497 = vshll.u32 683565275, %v1494
    %v1498 = vshrl.u32 2475754826, %v1495
    %v1499 = vor.u32 %v1497, %v1498
    %v1500 = vshll.u32 2475754826, %v1494
    %v1501 = vshrl.u32 2131351028, %v1495
    %v1502 = vor.u32 %v1500, %v1501
    %v1503 = vshll.u32 2131351028, %v1494
    %v1504 = vshrl.u32 2102212464, %v1495
    %v1505 = vor.u32 %v1503, %v1504
    %v1506 = vshll.u32 2102212464, %v1494
    %v1507 = vshrl.u32 920167782, %v1495
    %v1508 = vor.u32 %v1506, %v1507
    %v1509 = vshll.u32 920167782, %v1494
    %v1510 = vshrl.u32 1326507024, %v1495
    %v1511 = vor.u32 %v1509, %v1510
    %vm1512 = vcmp.lt.s32.totalorder %v1493, 1
    %vm1513 = vcmp.lt.s32.totalorder %v1493, 2
    %vm1514 = vcmp.lt.s32.totalorder %v1493, 3
    %vm1515 = vcmp.lt.s32.totalorder %v1493, 4
    %v1516 = vsel %vm1512, %v1496, %v1499
    %v1517 = vsel %vm1515, %v1505, 2102212464
    %v1518 = vsel %vm1514, %v1502, %v1517
    %v1519 = vsel %vm1513, %v1516, %v1518
    %v1520 = vsel %vm1512, %v1499, %v1502
    %v1521 = vsel %vm1515, %v1508, 920167782
    %v1522 = vsel %vm1514, %v1505, %v1521
    %v1523 = vsel %vm1513, %v1520, %v1522
    %v1524 = vsel %vm1512, %v1502, %v1505
    %v1525 = vsel %vm1515, %v1511, 1326507024
    %v1526 = vsel %vm1514, %v1508, %v1525
    %v1527 = vsel %vm1513, %v1524, %v1526
    %v1528 = vshll.u32 %v1488, 8
    %v1529 = vand.u32 %v1528, 65535
    %v1530 = vshrl.u32 %v1528, 16
    %v1531 = vand.u32 %v1527, 65535
    %v1532 = vshrl.u32 %v1527, 16
    %v1533 = vmul.u32 %v1529, %v1531
    %v1534 = vmul.u32 %v1529, %v1532
    %v1535 = vmul.u32 %v1530, %v1531
    %v1536 = vmul.u32 %v1530, %v1532
    %v1537 = vshll.u32 %v1534, 16
    %v1538 = vshrl.u32 %v1534, 16
    %v1539 = vshll.u32 %v1535, 16
    %v1540 = vshrl.u32 %v1535, 16
    %vm1541 = vc.u32 %v1533, %v1537
    %v1542 = vsel %vm1541, 1, 0
    %v1543 = vadd.s32 %v1533, %v1537
    %v1544 = vadd.s32 %v1536, %v1542
    %vm1545 = vc.u32 %v1543, %v1539
    %v1546 = vsel %vm1545, 1, 0
    %v1547 = vadd.s32 %v1543, %v1539
    %v1548 = vadd.s32 %v1544, %v1546
    %v1549 = vadd.s32 %v1548, %v1538
    %v1550 = vadd.s32 %v1549, %v1540
    %v1551 = vand.u32 %v1528, 65535
    %v1552 = vshrl.u32 %v1528, 16
    %v1553 = vand.u32 %v1523, 65535
    %v1554 = vshrl.u32 %v1523, 16
    %v1555 = vmul.u32 %v1551, %v1553
    %v1556 = vmul.u32 %v1551, %v1554
    %v1557 = vmul.u32 %v1552, %v1553
    %v1558 = vmul.u32 %v1552, %v1554
    %v1559 = vshll.u32 %v1556, 16
    %v1560 = vshrl.u32 %v1556, 16
    %v1561 = vshll.u32 %v1557, 16
    %v1562 = vshrl.u32 %v1557, 16
    %vm1563 = vc.u32 %v1555, %v1559
    %v1564 = vsel %vm1563, 1, 0
    %v1565 = vadd.s32 %v1555, %v1559
    %v1566 = vadd.s32 %v1558, %v1564
    %vm1567 = vc.u32 %v1565, %v1561
    %v1568 = vsel %vm1567, 1, 0
    %v1569 = vadd.s32 %v1565, %v1561
    %v1570 = vadd.s32 %v1566, %v1568
    %v1571 = vadd.s32 %v1570, %v1560
    %v1572 = vadd.s32 %v1571, %v1562
    %v1573 = vmul.u32 %v1528, %v1519
    %v1574 = vadd.s32 %v1550, %v1569
    %vm1575 = vc.u32 %v1550, %v1569
    %v1576 = vadd.s32 %v1572, 1
    %v1577 = vsel %vm1575, %v1576, %v1572
    %v1578 = vadd.s32 %v1573, %v1577
    %v1579 = vadd.s32 %v1578, 536870912
    %v1580 = vshrl.u32 %v1579, 30
    %v1581 = vshll.u32 %v1580, 30
    %v1582 = vsub.s32 %v1578, %v1581
    %vm1583 = vcmp.lt.s32.totalorder %v1582, 0
    %v1584 = vsub.s32 0, %v1582
    %v1585 = vsel %vm1583, %v1584, %v1582
    %v1586 = vclz %v1585
    %v1587 = vsub.s32 %v1586, 2
    %vm1588 = vcmp.gt.s32.totalorder 0, %v1587
    %v1589 = vsel %vm1588, 0, %v1587
    %v1590 = vsub.s32 32, %v1589
    %v1591 = vshll.u32 %v1582, %v1589
    %v1592 = vshrl.u32 %v1574, %v1590
    %v1593 = vor.u32 %v1591, %v1592
    %v1594 = vsub.s32 4294967266, %v1589
    %v1595 = vadd.s32 %v1594, 127
    %v1596 = vshll.u32 %v1595, 23
    %v1597 = vor.u32 4788187, %v1596
    %v1598 = vand.u32 2147483647, %v1597
    %v1600 = vcvt.s32.f32 %v1593
    %v1601 = vmul.f32 %v1600, %v1598
    %v1602 = vxor.u32 %v1601, 2147483648
    %v1603 = vsel %vm1482, %v1602, %v1601
    %v1604 = vsub.s32 4, %v1580
    %v1605 = vsel %vm1482, %v1604, %v1580
    %v1606 = vsel %vm1481, %v1479, %v1603
    %v1607 = vsel %vm1481, 0, %v1605
    %v1608 = vmul.f32 %v1606, %v1606
    %v1609 = vmul.f32 %v1608, -0.001358992
    %v1610 = vadd.f32 %v1609, 0.041655596
    %v1611 = vmul.f32 %v1608, %v1610
    %v1612 = vadd.f32 %v1611, -0.4999988
    %v1613 = vmul.f32 %v1608, %v1612
    %v1614 = vadd.f32 1.0, %v1613
    %v1615 = vmul.f32 %v1606, %v1606
    %v1616 = vmul.f32 %v1615, -0.00019511016
    %v1617 = vadd.f32 %v1616, 0.008332121
    %v1618 = vmul.f32 %v1615, %v1617
    %v1619 = vadd.f32 %v1618, -0.16666654
    %v1620 = vmul.f32 %v1615, %v1619
    %v1621 = vadd.f32 %v1620, 1.0
    %v1622 = vmul.f32 %v1621, %v1606
    %vm1623 = vweird.f32 %v1479
    %v1624 = vand.u32 %v1607, 3
    %vm1625 = vcmp.lt.s32.totalorder %v1624, 2
    %vm1626 = vcmp.eq.s32.totalorder %v1624, 0
    %v1627 = vxor.u32 %v1622, 2147483648
    %v1628 = vsel %vm1626, %v1614, %v1627
    %vm1629 = vcmp.eq.s32.totalorder %v1624, 2
    %v1630 = vxor.u32 %v1614, 2147483648
    %v1631 = vsel %vm1629, %v1630, %v1622
    %v1632 = vsel %vm1625, %v1628, %v1631
    %v1633 = vsel %vm1623, nan, %v1632
    %v1634 = vand.u32 2147483647, %v1479
    %vm1635 = vcmp.le.f32.partialorder %v1634, 0.7853982
    %vm1636 = vcmp.lt.s32.totalorder %v1479, 0
    %v1637 = vand.u32 %v1479, 2139095040
    %v1638 = vshrl.u32 %v1637, 23
    %v1639 = vsub.s32 %v1638, 127
    %v1640 = vand.u32 2147483647, %v1479
    %v1641 = vand.u32 %v1640, 8388607
    %v1642 = vor.u32 %v1641, 8388608
    %v1643 = vsub.s32 0, %v1642
    %v1644 = vadd.s32 %v1639, 1
    %vm1645 = vcmp.gt.s32.totalorder %v1644, 0
    %v1646 = vsel %vm1645, %v1644, 0
    %v1647 = vshrl.u32 %v1646, 5
    %v1648 = vand.u32 %v1646, 31
    %v1649 = vsub.s32 32, %v1648
    %v1650 = vshrl.u32 683565275, %v1649
    %v1651 = vshll.u32 683565275, %v1648
    %v1652 = vshrl.u32 2475754826, %v1649
    %v1653 = vor.u32 %v1651, %v1652
    %v1654 = vshll.u32 2475754826, %v1648
    %v1655 = vshrl.u32 2131351028, %v1649
    %v1656 = vor.u32 %v1654, %v1655
    %v1657 = vshll.u32 2131351028, %v1648
    %v1658 = vshrl.u32 2102212464, %v1649
    %v1659 = vor.u32 %v1657, %v1658
    %v1660 = vshll.u32 2102212464, %v1648
    %v1661 = vshrl.u32 920167782, %v1649
    %v1662 = vor.u32 %v1660, %v1661
    %v1663 = vshll.u32 920167782, %v1648
    %v1664 = vshrl.u32 1326507024, %v1649
    %v1665 = vor.u32 %v1663, %v1664
    %vm1666 = vcmp.lt.s32.totalorder %v1647, 1
    %vm1667 = vcmp.lt.s32.totalorder %v1647, 2
    %vm1668 = vcmp.lt.s32.totalorder %v1647, 3
    %vm1669 = vcmp.lt.s32.totalorder %v1647, 4
    %v1670 = vsel %vm1666, %v1650, %v1653
    %v1671 = vsel %vm1669, %v1659, 2102212464
    %v1672 = vsel %vm1668, %v1656, %v1671
    %v1673 = vsel %vm1667, %v1670, %v1672
    %v1674 = vsel %vm1666, %v1653, %v1656
    %v1675 = vsel %vm1669, %v1662, 920167782
    %v1676 = vsel %vm1668, %v1659, %v1675
    %v1677 = vsel %vm1667, %v1674, %v1676
    %v1678 = vsel %vm1666, %v1656, %v1659
    %v1679 = vsel %vm1669, %v1665, 1326507024
    %v1680 = vsel %vm1668, %v1662, %v1679
    %v1681 = vsel %vm1667, %v1678, %v1680
    %v1682 = vshll.u32 %v1642, 8
    %v1683 = vand.u32 %v1682, 65535
    %v1684 = vshrl.u32 %v1682, 16
    %v1685 = vand.u32 %v1681, 65535
    %v1686 = vshrl.u32 %v1681, 16
    %v1687 = vmul.u32 %v1683, %v1685
    %v1688 = vmul.u32 %v1683, %v1686
    %v1689 = vmul.u32 %v1684, %v1685
    %v1690 = vmul.u32 %v1684, %v1686
    %v1691 = vshll.u32 %v1688, 16
    %v1692 = vshrl.u32 %v1688, 16
    %v1693 = vshll.u32 %v1689, 16
    %v1694 = vshrl.u32 %v1689, 16
    %vm1695 = vc.u32 %v1687, %v1691
    %v1696 = vsel %vm1695, 1, 0
    %v1697 = vadd.s32 %v1687, %v1691
    %v1698 = vadd.s32 %v1690, %v1696
    %vm1699 = vc.u32 %v1697, %v1693
    %v1700 = vsel %vm1699, 1, 0
    %v1701 = vadd.s32 %v1697, %v1693
    %v1702 = vadd.s32 %v1698, %v1700
    %v1703 = vadd.s32 %v1702, %v1692
    %v1704 = vadd.s32 %v1703, %v1694
    %v1705 = vand.u32 %v1682, 65535
    %v1706 = vshrl.u32 %v1682, 16
    %v1707 = vand.u32 %v1677, 65535
    %v1708 = vshrl.u32 %v1677, 16
    %v1709 = vmul.u32 %v1705, %v1707
    %v1710 = vmul.u32 %v1705, %v1708
    %v1711 = vmul.u32 %v1706, %v1707
    %v1712 = vmul.u32 %v1706, %v1708
    %v1713 = vshll.u32 %v1710, 16
    %v1714 = vshrl.u32 %v1710, 16
    %v1715 = vshll.u32 %v1711, 16
    %v1716 = vshrl.u32 %v1711, 16
    %vm1717 = vc.u32 %v1709, %v1713
    %v1718 = vsel %vm1717, 1, 0
    %v1719 = vadd.s32 %v1709, %v1713
    %v1720 = vadd.s32 %v1712, %v1718
    %vm1721 = vc.u32 %v1719, %v1715
    %v1722 = vsel %vm1721, 1, 0
    %v1723 = vadd.s32 %v1719, %v1715
    %v1724 = vadd.s32 %v1720, %v1722
    %v1725 = vadd.s32 %v1724, %v1714
    %v1726 = vadd.s32 %v1725, %v1716
    %v1727 = vmul.u32 %v1682, %v1673
    %v1728 = vadd.s32 %v1704, %v1723
    %vm1729 = vc.u32 %v1704, %v1723
    %v1730 = vadd.s32 %v1726, 1
    %v1731 = vsel %vm1729, %v1730, %v1726
    %v1732 = vadd.s32 %v1727, %v1731
    %v1733 = vadd.s32 %v1732, 536870912
    %v1734 = vshrl.u32 %v1733, 30
    %v1735 = vshll.u32 %v1734, 30
    %v1736 = vsub.s32 %v1732, %v1735
    %vm1737 = vcmp.lt.s32.totalorder %v1736, 0
    %v1738 = vsub.s32 0, %v1736
    %v1739 = vsel %vm1737, %v1738, %v1736
    %v1740 = vclz %v1739
    %v1741 = vsub.s32 %v1740, 2
    %vm1742 = vcmp.gt.s32.totalorder 0, %v1741
    %v1743 = vsel %vm1742, 0, %v1741
    %v1744 = vsub.s32 32, %v1743
    %v1745 = vshll.u32 %v1736, %v1743
    %v1746 = vshrl.u32 %v1728, %v1744
    %v1747 = vor.u32 %v1745, %v1746
    %v1748 = vsub.s32 4294967266, %v1743
    %v1749 = vadd.s32 %v1748, 127
    %v1750 = vshll.u32 %v1749, 23
    %v1751 = vor.u32 4788187, %v1750
    %v1752 = vand.u32 2147483647, %v1751
    %v1754 = vcvt.s32.f32 %v1747
    %v1755 = vmul.f32 %v1754, %v1752
    %v1756 = vxor.u32 %v1755, 2147483648
    %v1757 = vsel %vm1636, %v1756, %v1755
    %v1758 = vsub.s32 4, %v1734
    %v1759 = vsel %vm1636, %v1758, %v1734
    %v1760 = vsel %vm1635, %v1479, %v1757
    %v1761 = vsel %vm1635, 0, %v1759
    %v1762 = vmul.f32 %v1760, %v1760
    %v1763 = vmul.f32 %v1762, -0.001358992
    %v1764 = vadd.f32 %v1763, 0.041655596
    %v1765 = vmul.f32 %v1762, %v1764
    %v1766 = vadd.f32 %v1765, -0.4999988
    %v1767 = vmul.f32 %v1762, %v1766
    %v1768 = vadd.f32 1.0, %v1767
    %v1769 = vmul.f32 %v1760, %v1760
    %v1770 = vmul.f32 %v1769, -0.00019511016
    %v1771 = vadd.f32 %v1770, 0.008332121
    %v1772 = vmul.f32 %v1769, %v1771
    %v1773 = vadd.f32 %v1772, -0.16666654
    %v1774 = vmul.f32 %v1769, %v1773
    %v1775 = vadd.f32 %v1774, 1.0
    %v1776 = vmul.f32 %v1775, %v1760
    %vm1777 = vweird.f32 %v1479
    %v1778 = vadd.s32 %v1761, 3
    %v1779 = vand.u32 %v1778, 3
    %vm1780 = vcmp.lt.s32.totalorder %v1779, 2
    %vm1781 = vcmp.eq.s32.totalorder %v1779, 0
    %v1782 = vxor.u32 %v1776, 2147483648
    %v1783 = vsel %vm1781, %v1768, %v1782
    %vm1784 = vcmp.eq.s32.totalorder %v1779, 2
    %v1785 = vxor.u32 %v1768, 2147483648
    %v1786 = vsel %vm1784, %v1785, %v1776
    %v1787 = vsel %vm1780, %v1783, %v1786
    %v1788 = vsel %vm1777, nan, %v1787
    %v1789 = vadd.f32 %v76, %v105
    %v1790 = vadd.f32 %v77, %v106
    %v1791 = vmul.f32 %v1633, %v1789
    %v1792 = vmul.f32 %v1633, %v1790
    %v1793 = vadd.f32 %v87, %v99
    %v1794 = vadd.f32 %v88, %v100
    %v1795 = vmul.f32 %v1788, %v1793
    %v1796 = vmul.f32 %v1788, %v1794
    %v1797 = vsub.f32 %v1791, %v1795
    %v1798 = vsub.f32 %v1792, %v1796
    %s1799 = sld [smem:[#allocation2 + $0x6]]
    %v1800 = vstv %s1799
    %v1801 = vmul.f32 %v1800, 0.5
    %v1802 = vand.u32 2147483647, %v1801
    %vm1803 = vcmp.le.f32.partialorder %v1802, 0.7853982
    %vm1804 = vcmp.lt.s32.totalorder %v1801, 0
    %v1805 = vand.u32 %v1801, 2139095040
    %v1806 = vshrl.u32 %v1805, 23
    %v1807 = vsub.s32 %v1806, 127
    %v1808 = vand.u32 2147483647, %v1801
    %v1809 = vand.u32 %v1808, 8388607
    %v1810 = vor.u32 %v1809, 8388608
    %v1811 = vsub.s32 0, %v1810
    %v1812 = vadd.s32 %v1807, 1
    %vm1813 = vcmp.gt.s32.totalorder %v1812, 0
    %v1814 = vsel %vm1813, %v1812, 0
    %v1815 = vshrl.u32 %v1814, 5
    %v1816 = vand.u32 %v1814, 31
    %v1817 = vsub.s32 32, %v1816
    %v1818 = vshrl.u32 683565275, %v1817
    %v1819 = vshll.u32 683565275, %v1816
    %v1820 = vshrl.u32 2475754826, %v1817
    %v1821 = vor.u32 %v1819, %v1820
    %v1822 = vshll.u32 2475754826, %v1816
    %v1823 = vshrl.u32 2131351028, %v1817
    %v1824 = vor.u32 %v1822, %v1823
    %v1825 = vshll.u32 2131351028, %v1816
    %v1826 = vshrl.u32 2102212464, %v1817
    %v1827 = vor.u32 %v1825, %v1826
    %v1828 = vshll.u32 2102212464, %v1816
    %v1829 = vshrl.u32 920167782, %v1817
    %v1830 = vor.u32 %v1828, %v1829
    %v1831 = vshll.u32 920167782, %v1816
    %v1832 = vshrl.u32 1326507024, %v1817
    %v1833 = vor.u32 %v1831, %v1832
    %vm1834 = vcmp.lt.s32.totalorder %v1815, 1
    %vm1835 = vcmp.lt.s32.totalorder %v1815, 2
    %vm1836 = vcmp.lt.s32.totalorder %v1815, 3
    %vm1837 = vcmp.lt.s32.totalorder %v1815, 4
    %v1838 = vsel %vm1834, %v1818, %v1821
    %v1839 = vsel %vm1837, %v1827, 2102212464
    %v1840 = vsel %vm1836, %v1824, %v1839
    %v1841 = vsel %vm1835, %v1838, %v1840
    %v1842 = vsel %vm1834, %v1821, %v1824
    %v1843 = vsel %vm1837, %v1830, 920167782
    %v1844 = vsel %vm1836, %v1827, %v1843
    %v1845 = vsel %vm1835, %v1842, %v1844
    %v1846 = vsel %vm1834, %v1824, %v1827
    %v1847 = vsel %vm1837, %v1833, 1326507024
    %v1848 = vsel %vm1836, %v1830, %v1847
    %v1849 = vsel %vm1835, %v1846, %v1848
    %v1850 = vshll.u32 %v1810, 8
    %v1851 = vand.u32 %v1850, 65535
    %v1852 = vshrl.u32 %v1850, 16
    %v1853 = vand.u32 %v1849, 65535
    %v1854 = vshrl.u32 %v1849, 16
    %v1855 = vmul.u32 %v1851, %v1853
    %v1856 = vmul.u32 %v1851, %v1854
    %v1857 = vmul.u32 %v1852, %v1853
    %v1858 = vmul.u32 %v1852, %v1854
    %v1859 = vshll.u32 %v1856, 16
    %v1860 = vshrl.u32 %v1856, 16
    %v1861 = vshll.u32 %v1857, 16
    %v1862 = vshrl.u32 %v1857, 16
    %vm1863 = vc.u32 %v1855, %v1859
    %v1864 = vsel %vm1863, 1, 0
    %v1865 = vadd.s32 %v1855, %v1859
    %v1866 = vadd.s32 %v1858, %v1864
    %vm1867 = vc.u32 %v1865, %v1861
    %v1868 = vsel %vm1867, 1, 0
    %v1869 = vadd.s32 %v1865, %v1861
    %v1870 = vadd.s32 %v1866, %v1868
    %v1871 = vadd.s32 %v1870, %v1860
    %v1872 = vadd.s32 %v1871, %v1862
    %v1873 = vand.u32 %v1850, 65535
    %v1874 = vshrl.u32 %v1850, 16
    %v1875 = vand.u32 %v1845, 65535
    %v1876 = vshrl.u32 %v1845, 16
    %v1877 = vmul.u32 %v1873, %v1875
    %v1878 = vmul.u32 %v1873, %v1876
    %v1879 = vmul.u32 %v1874, %v1875
    %v1880 = vmul.u32 %v1874, %v1876
    %v1881 = vshll.u32 %v1878, 16
    %v1882 = vshrl.u32 %v1878, 16
    %v1883 = vshll.u32 %v1879, 16
    %v1884 = vshrl.u32 %v1879, 16
    %vm1885 = vc.u32 %v1877, %v1881
    %v1886 = vsel %vm1885, 1, 0
    %v1887 = vadd.s32 %v1877, %v1881
    %v1888 = vadd.s32 %v1880, %v1886
    %vm1889 = vc.u32 %v1887, %v1883
    %v1890 = vsel %vm1889, 1, 0
    %v1891 = vadd.s32 %v1887, %v1883
    %v1892 = vadd.s32 %v1888, %v1890
    %v1893 = vadd.s32 %v1892, %v1882
    %v1894 = vadd.s32 %v1893, %v1884
    %v1895 = vmul.u32 %v1850, %v1841
    %v1896 = vadd.s32 %v1872, %v1891
    %vm1897 = vc.u32 %v1872, %v1891
    %v1898 = vadd.s32 %v1894, 1
    %v1899 = vsel %vm1897, %v1898, %v1894
    %v1900 = vadd.s32 %v1895, %v1899
    %v1901 = vadd.s32 %v1900, 536870912
    %v1902 = vshrl.u32 %v1901, 30
    %v1903 = vshll.u32 %v1902, 30
    %v1904 = vsub.s32 %v1900, %v1903
    %vm1905 = vcmp.lt.s32.totalorder %v1904, 0
    %v1906 = vsub.s32 0, %v1904
    %v1907 = vsel %vm1905, %v1906, %v1904
    %v1908 = vclz %v1907
    %v1909 = vsub.s32 %v1908, 2
    %vm1910 = vcmp.gt.s32.totalorder 0, %v1909
    %v1911 = vsel %vm1910, 0, %v1909
    %v1912 = vsub.s32 32, %v1911
    %v1913 = vshll.u32 %v1904, %v1911
    %v1914 = vshrl.u32 %v1896, %v1912
    %v1915 = vor.u32 %v1913, %v1914
    %v1916 = vsub.s32 4294967266, %v1911
    %v1917 = vadd.s32 %v1916, 127
    %v1918 = vshll.u32 %v1917, 23
    %v1919 = vor.u32 4788187, %v1918
    %v1920 = vand.u32 2147483647, %v1919
    %v1922 = vcvt.s32.f32 %v1915
    %v1923 = vmul.f32 %v1922, %v1920
    %v1924 = vxor.u32 %v1923, 2147483648
    %v1925 = vsel %vm1804, %v1924, %v1923
    %v1926 = vsub.s32 4, %v1902
    %v1927 = vsel %vm1804, %v1926, %v1902
    %v1928 = vsel %vm1803, %v1801, %v1925
    %v1929 = vsel %vm1803, 0, %v1927
    %v1930 = vmul.f32 %v1928, %v1928
    %v1931 = vmul.f32 %v1930, -0.001358992
    %v1932 = vadd.f32 %v1931, 0.041655596
    %v1933 = vmul.f32 %v1930, %v1932
    %v1934 = vadd.f32 %v1933, -0.4999988
    %v1935 = vmul.f32 %v1930, %v1934
    %v1936 = vadd.f32 1.0, %v1935
    %v1937 = vmul.f32 %v1928, %v1928
    %v1938 = vmul.f32 %v1937, -0.00019511016
    %v1939 = vadd.f32 %v1938, 0.008332121
    %v1940 = vmul.f32 %v1937, %v1939
    %v1941 = vadd.f32 %v1940, -0.16666654
    %v1942 = vmul.f32 %v1937, %v1941
    %v1943 = vadd.f32 %v1942, 1.0
    %v1944 = vmul.f32 %v1943, %v1928
    %vm1945 = vweird.f32 %v1801
    %v1946 = vand.u32 %v1929, 3
    %vm1947 = vcmp.lt.s32.totalorder %v1946, 2
    %vm1948 = vcmp.eq.s32.totalorder %v1946, 0
    %v1949 = vxor.u32 %v1944, 2147483648
    %v1950 = vsel %vm1948, %v1936, %v1949
    %vm1951 = vcmp.eq.s32.totalorder %v1946, 2
    %v1952 = vxor.u32 %v1936, 2147483648
    %v1953 = vsel %vm1951, %v1952, %v1944
    %v1954 = vsel %vm1947, %v1950, %v1953
    %v1955 = vsel %vm1945, nan, %v1954
    %v1956 = vand.u32 2147483647, %v1801
    %vm1957 = vcmp.le.f32.partialorder %v1956, 0.7853982
    %vm1958 = vcmp.lt.s32.totalorder %v1801, 0
    %v1959 = vand.u32 %v1801, 2139095040
    %v1960 = vshrl.u32 %v1959, 23
    %v1961 = vsub.s32 %v1960, 127
    %v1962 = vand.u32 2147483647, %v1801
    %v1963 = vand.u32 %v1962, 8388607
    %v1964 = vor.u32 %v1963, 8388608
    %v1965 = vsub.s32 0, %v1964
    %v1966 = vadd.s32 %v1961, 1
    %vm1967 = vcmp.gt.s32.totalorder %v1966, 0
    %v1968 = vsel %vm1967, %v1966, 0
    %v1969 = vshrl.u32 %v1968, 5
    %v1970 = vand.u32 %v1968, 31
    %v1971 = vsub.s32 32, %v1970
    %v1972 = vshrl.u32 683565275, %v1971
    %v1973 = vshll.u32 683565275, %v1970
    %v1974 = vshrl.u32 2475754826, %v1971
    %v1975 = vor.u32 %v1973, %v1974
    %v1976 = vshll.u32 2475754826, %v1970
    %v1977 = vshrl.u32 2131351028, %v1971
    %v1978 = vor.u32 %v1976, %v1977
    %v1979 = vshll.u32 2131351028, %v1970
    %v1980 = vshrl.u32 2102212464, %v1971
    %v1981 = vor.u32 %v1979, %v1980
    %v1982 = vshll.u32 2102212464, %v1970
    %v1983 = vshrl.u32 920167782, %v1971
    %v1984 = vor.u32 %v1982, %v1983
    %v1985 = vshll.u32 920167782, %v1970
    %v1986 = vshrl.u32 1326507024, %v1971
    %v1987 = vor.u32 %v1985, %v1986
    %vm1988 = vcmp.lt.s32.totalorder %v1969, 1
    %vm1989 = vcmp.lt.s32.totalorder %v1969, 2
    %vm1990 = vcmp.lt.s32.totalorder %v1969, 3
    %vm1991 = vcmp.lt.s32.totalorder %v1969, 4
    %v1992 = vsel %vm1988, %v1972, %v1975
    %v1993 = vsel %vm1991, %v1981, 2102212464
    %v1994 = vsel %vm1990, %v1978, %v1993
    %v1995 = vsel %vm1989, %v1992, %v1994
    %v1996 = vsel %vm1988, %v1975, %v1978
    %v1997 = vsel %vm1991, %v1984, 920167782
    %v1998 = vsel %vm1990, %v1981, %v1997
    %v1999 = vsel %vm1989, %v1996, %v1998
    %v2000 = vsel %vm1988, %v1978, %v1981
    %v2001 = vsel %vm1991, %v1987, 1326507024
    %v2002 = vsel %vm1990, %v1984, %v2001
    %v2003 = vsel %vm1989, %v2000, %v2002
    %v2004 = vshll.u32 %v1964, 8
    %v2005 = vand.u32 %v2004, 65535
    %v2006 = vshrl.u32 %v2004, 16
    %v2007 = vand.u32 %v2003, 65535
    %v2008 = vshrl.u32 %v2003, 16
    %v2009 = vmul.u32 %v2005, %v2007
    %v2010 = vmul.u32 %v2005, %v2008
    %v2011 = vmul.u32 %v2006, %v2007
    %v2012 = vmul.u32 %v2006, %v2008
    %v2013 = vshll.u32 %v2010, 16
    %v2014 = vshrl.u32 %v2010, 16
    %v2015 = vshll.u32 %v2011, 16
    %v2016 = vshrl.u32 %v2011, 16
    %vm2017 = vc.u32 %v2009, %v2013
    %v2018 = vsel %vm2017, 1, 0
    %v2019 = vadd.s32 %v2009, %v2013
    %v2020 = vadd.s32 %v2012, %v2018
    %vm2021 = vc.u32 %v2019, %v2015
    %v2022 = vsel %vm2021, 1, 0
    %v2023 = vadd.s32 %v2019, %v2015
    %v2024 = vadd.s32 %v2020, %v2022
    %v2025 = vadd.s32 %v2024, %v2014
    %v2026 = vadd.s32 %v2025, %v2016
    %v2027 = vand.u32 %v2004, 65535
    %v2028 = vshrl.u32 %v2004, 16
    %v2029 = vand.u32 %v1999, 65535
    %v2030 = vshrl.u32 %v1999, 16
    %v2031 = vmul.u32 %v2027, %v2029
    %v2032 = vmul.u32 %v2027, %v2030
    %v2033 = vmul.u32 %v2028, %v2029
    %v2034 = vmul.u32 %v2028, %v2030
    %v2035 = vshll.u32 %v2032, 16
    %v2036 = vshrl.u32 %v2032, 16
    %v2037 = vshll.u32 %v2033, 16
    %v2038 = vshrl.u32 %v2033, 16
    %vm2039 = vc.u32 %v2031, %v2035
    %v2040 = vsel %vm2039, 1, 0
    %v2041 = vadd.s32 %v2031, %v2035
    %v2042 = vadd.s32 %v2034, %v2040
    %vm2043 = vc.u32 %v2041, %v2037
    %v2044 = vsel %vm2043, 1, 0
    %v2045 = vadd.s32 %v2041, %v2037
    %v2046 = vadd.s32 %v2042, %v2044
    %v2047 = vadd.s32 %v2046, %v2036
    %v2048 = vadd.s32 %v2047, %v2038
    %v2049 = vmul.u32 %v2004, %v1995
    %v2050 = vadd.s32 %v2026, %v2045
    %vm2051 = vc.u32 %v2026, %v2045
    %v2052 = vadd.s32 %v2048, 1
    %v2053 = vsel %vm2051, %v2052, %v2048
    %v2054 = vadd.s32 %v2049, %v2053
    %v2055 = vadd.s32 %v2054, 536870912
    %v2056 = vshrl.u32 %v2055, 30
    %v2057 = vshll.u32 %v2056, 30
    %v2058 = vsub.s32 %v2054, %v2057
    %vm2059 = vcmp.lt.s32.totalorder %v2058, 0
    %v2060 = vsub.s32 0, %v2058
    %v2061 = vsel %vm2059, %v2060, %v2058
    %v2062 = vclz %v2061
    %v2063 = vsub.s32 %v2062, 2
    %vm2064 = vcmp.gt.s32.totalorder 0, %v2063
    %v2065 = vsel %vm2064, 0, %v2063
    %v2066 = vsub.s32 32, %v2065
    %v2067 = vshll.u32 %v2058, %v2065
    %v2068 = vshrl.u32 %v2050, %v2066
    %v2069 = vor.u32 %v2067, %v2068
    %v2070 = vsub.s32 4294967266, %v2065
    %v2071 = vadd.s32 %v2070, 127
    %v2072 = vshll.u32 %v2071, 23
    %v2073 = vor.u32 4788187, %v2072
    %v2074 = vand.u32 2147483647, %v2073
    %v2076 = vcvt.s32.f32 %v2069
    %v2077 = vmul.f32 %v2076, %v2074
    %v2078 = vxor.u32 %v2077, 2147483648
    %v2079 = vsel %vm1958, %v2078, %v2077
    %v2080 = vsub.s32 4, %v2056
    %v2081 = vsel %vm1958, %v2080, %v2056
    %v2082 = vsel %vm1957, %v1801, %v2079
    %v2083 = vsel %vm1957, 0, %v2081
    %v2084 = vmul.f32 %v2082, %v2082
    %v2085 = vmul.f32 %v2084, -0.001358992
    %v2086 = vadd.f32 %v2085, 0.041655596
    %v2087 = vmul.f32 %v2084, %v2086
    %v2088 = vadd.f32 %v2087, -0.4999988
    %v2089 = vmul.f32 %v2084, %v2088
    %v2090 = vadd.f32 1.0, %v2089
    %v2091 = vmul.f32 %v2082, %v2082
    %v2092 = vmul.f32 %v2091, -0.00019511016
    %v2093 = vadd.f32 %v2092, 0.008332121
    %v2094 = vmul.f32 %v2091, %v2093
    %v2095 = vadd.f32 %v2094, -0.16666654
    %v2096 = vmul.f32 %v2091, %v2095
    %v2097 = vadd.f32 %v2096, 1.0
    %v2098 = vmul.f32 %v2097, %v2082
    %vm2099 = vweird.f32 %v1801
    %v2100 = vadd.s32 %v2083, 3
    %v2101 = vand.u32 %v2100, 3
    %vm2102 = vcmp.lt.s32.totalorder %v2101, 2
    %vm2103 = vcmp.eq.s32.totalorder %v2101, 0
    %v2104 = vxor.u32 %v2098, 2147483648
    %v2105 = vsel %vm2103, %v2090, %v2104
    %vm2106 = vcmp.eq.s32.totalorder %v2101, 2
    %v2107 = vxor.u32 %v2090, 2147483648
    %v2108 = vsel %vm2106, %v2107, %v2098
    %v2109 = vsel %vm2102, %v2105, %v2108
    %v2110 = vsel %vm2099, nan, %v2109
    %v2111 = vmul.f32 %v1955, %v1789
    %v2112 = vmul.f32 %v1955, %v1790
    %v2113 = vsub.f32 %v107, %v78
    %v2114 = vsub.f32 %v108, %v79
    %v2115 = vmul.f32 %v2110, %v2113
    %v2116 = vmul.f32 %v2110, %v2114
    %v2117 = vadd.f32 %v2111, %v2115
    %v2118 = vadd.f32 %v2112, %v2116
    %s2119 = sld [smem:[#allocation2 + $0x8]]
    %v2120 = vstv %s2119
    %v2121 = vmul.f32 %v2120, 0.5
    %v2122 = vand.u32 2147483647, %v2121
    %vm2123 = vcmp.le.f32.partialorder %v2122, 0.7853982
    %vm2124 = vcmp.lt.s32.totalorder %v2121, 0
    %v2125 = vand.u32 %v2121, 2139095040
    %v2126 = vshrl.u32 %v2125, 23
    %v2127 = vsub.s32 %v2126, 127
    %v2128 = vand.u32 2147483647, %v2121
    %v2129 = vand.u32 %v2128, 8388607
    %v2130 = vor.u32 %v2129, 8388608
    %v2131 = vsub.s32 0, %v2130
    %v2132 = vadd.s32 %v2127, 1
    %vm2133 = vcmp.gt.s32.totalorder %v2132, 0
    %v2134 = vsel %vm2133, %v2132, 0
    %v2135 = vshrl.u32 %v2134, 5
    %v2136 = vand.u32 %v2134, 31
    %v2137 = vsub.s32 32, %v2136
    %v2138 = vshrl.u32 683565275, %v2137
    %v2139 = vshll.u32 683565275, %v2136
    %v2140 = vshrl.u32 2475754826, %v2137
    %v2141 = vor.u32 %v2139, %v2140
    %v2142 = vshll.u32 2475754826, %v2136
    %v2143 = vshrl.u32 2131351028, %v2137
    %v2144 = vor.u32 %v2142, %v2143
    %v2145 = vshll.u32 2131351028, %v2136
    %v2146 = vshrl.u32 2102212464, %v2137
    %v2147 = vor.u32 %v2145, %v2146
    %v2148 = vshll.u32 2102212464, %v2136
    %v2149 = vshrl.u32 920167782, %v2137
    %v2150 = vor.u32 %v2148, %v2149
    %v2151 = vshll.u32 920167782, %v2136
    %v2152 = vshrl.u32 1326507024, %v2137
    %v2153 = vor.u32 %v2151, %v2152
    %vm2154 = vcmp.lt.s32.totalorder %v2135, 1
    %vm2155 = vcmp.lt.s32.totalorder %v2135, 2
    %vm2156 = vcmp.lt.s32.totalorder %v2135, 3
    %vm2157 = vcmp.lt.s32.totalorder %v2135, 4
    %v2158 = vsel %vm2154, %v2138, %v2141
    %v2159 = vsel %vm2157, %v2147, 2102212464
    %v2160 = vsel %vm2156, %v2144, %v2159
    %v2161 = vsel %vm2155, %v2158, %v2160
    %v2162 = vsel %vm2154, %v2141, %v2144
    %v2163 = vsel %vm2157, %v2150, 920167782
    %v2164 = vsel %vm2156, %v2147, %v2163
    %v2165 = vsel %vm2155, %v2162, %v2164
    %v2166 = vsel %vm2154, %v2144, %v2147
    %v2167 = vsel %vm2157, %v2153, 1326507024
    %v2168 = vsel %vm2156, %v2150, %v2167
    %v2169 = vsel %vm2155, %v2166, %v2168
    %v2170 = vshll.u32 %v2130, 8
    %v2171 = vand.u32 %v2170, 65535
    %v2172 = vshrl.u32 %v2170, 16
    %v2173 = vand.u32 %v2169, 65535
    %v2174 = vshrl.u32 %v2169, 16
    %v2175 = vmul.u32 %v2171, %v2173
    %v2176 = vmul.u32 %v2171, %v2174
    %v2177 = vmul.u32 %v2172, %v2173
    %v2178 = vmul.u32 %v2172, %v2174
    %v2179 = vshll.u32 %v2176, 16
    %v2180 = vshrl.u32 %v2176, 16
    %v2181 = vshll.u32 %v2177, 16
    %v2182 = vshrl.u32 %v2177, 16
    %vm2183 = vc.u32 %v2175, %v2179
    %v2184 = vsel %vm2183, 1, 0
    %v2185 = vadd.s32 %v2175, %v2179
    %v2186 = vadd.s32 %v2178, %v2184
    %vm2187 = vc.u32 %v2185, %v2181
    %v2188 = vsel %vm2187, 1, 0
    %v2189 = vadd.s32 %v2185, %v2181
    %v2190 = vadd.s32 %v2186, %v2188
    %v2191 = vadd.s32 %v2190, %v2180
    %v2192 = vadd.s32 %v2191, %v2182
    %v2193 = vand.u32 %v2170, 65535
    %v2194 = vshrl.u32 %v2170, 16
    %v2195 = vand.u32 %v2165, 65535
    %v2196 = vshrl.u32 %v2165, 16
    %v2197 = vmul.u32 %v2193, %v2195
    %v2198 = vmul.u32 %v2193, %v2196
    %v2199 = vmul.u32 %v2194, %v2195
    %v2200 = vmul.u32 %v2194, %v2196
    %v2201 = vshll.u32 %v2198, 16
    %v2202 = vshrl.u32 %v2198, 16
    %v2203 = vshll.u32 %v2199, 16
    %v2204 = vshrl.u32 %v2199, 16
    %vm2205 = vc.u32 %v2197, %v2201
    %v2206 = vsel %vm2205, 1, 0
    %v2207 = vadd.s32 %v2197, %v2201
    %v2208 = vadd.s32 %v2200, %v2206
    %vm2209 = vc.u32 %v2207, %v2203
    %v2210 = vsel %vm2209, 1, 0
    %v2211 = vadd.s32 %v2207, %v2203
    %v2212 = vadd.s32 %v2208, %v2210
    %v2213 = vadd.s32 %v2212, %v2202
    %v2214 = vadd.s32 %v2213, %v2204
    %v2215 = vmul.u32 %v2170, %v2161
    %v2216 = vadd.s32 %v2192, %v2211
    %vm2217 = vc.u32 %v2192, %v2211
    %v2218 = vadd.s32 %v2214, 1
    %v2219 = vsel %vm2217, %v2218, %v2214
    %v2220 = vadd.s32 %v2215, %v2219
    %v2221 = vadd.s32 %v2220, 536870912
    %v2222 = vshrl.u32 %v2221, 30
    %v2223 = vshll.u32 %v2222, 30
    %v2224 = vsub.s32 %v2220, %v2223
    %vm2225 = vcmp.lt.s32.totalorder %v2224, 0
    %v2226 = vsub.s32 0, %v2224
    %v2227 = vsel %vm2225, %v2226, %v2224
    %v2228 = vclz %v2227
    %v2229 = vsub.s32 %v2228, 2
    %vm2230 = vcmp.gt.s32.totalorder 0, %v2229
    %v2231 = vsel %vm2230, 0, %v2229
    %v2232 = vsub.s32 32, %v2231
    %v2233 = vshll.u32 %v2224, %v2231
    %v2234 = vshrl.u32 %v2216, %v2232
    %v2235 = vor.u32 %v2233, %v2234
    %v2236 = vsub.s32 4294967266, %v2231
    %v2237 = vadd.s32 %v2236, 127
    %v2238 = vshll.u32 %v2237, 23
    %v2239 = vor.u32 4788187, %v2238
    %v2240 = vand.u32 2147483647, %v2239
    %v2242 = vcvt.s32.f32 %v2235
    %v2243 = vmul.f32 %v2242, %v2240
    %v2244 = vxor.u32 %v2243, 2147483648
    %v2245 = vsel %vm2124, %v2244, %v2243
    %v2246 = vsub.s32 4, %v2222
    %v2247 = vsel %vm2124, %v2246, %v2222
    %v2248 = vsel %vm2123, %v2121, %v2245
    %v2249 = vsel %vm2123, 0, %v2247
    %v2250 = vmul.f32 %v2248, %v2248
    %v2251 = vmul.f32 %v2250, -0.001358992
    %v2252 = vadd.f32 %v2251, 0.041655596
    %v2253 = vmul.f32 %v2250, %v2252
    %v2254 = vadd.f32 %v2253, -0.4999988
    %v2255 = vmul.f32 %v2250, %v2254
    %v2256 = vadd.f32 1.0, %v2255
    %v2257 = vmul.f32 %v2248, %v2248
    %v2258 = vmul.f32 %v2257, -0.00019511016
    %v2259 = vadd.f32 %v2258, 0.008332121
    %v2260 = vmul.f32 %v2257, %v2259
    %v2261 = vadd.f32 %v2260, -0.16666654
    %v2262 = vmul.f32 %v2257, %v2261
    %v2263 = vadd.f32 %v2262, 1.0
    %v2264 = vmul.f32 %v2263, %v2248
    %vm2265 = vweird.f32 %v2121
    %v2266 = vand.u32 %v2249, 3
    %vm2267 = vcmp.lt.s32.totalorder %v2266, 2
    %vm2268 = vcmp.eq.s32.totalorder %v2266, 0
    %v2269 = vxor.u32 %v2264, 2147483648
    %v2270 = vsel %vm2268, %v2256, %v2269
    %vm2271 = vcmp.eq.s32.totalorder %v2266, 2
    %v2272 = vxor.u32 %v2256, 2147483648
    %v2273 = vsel %vm2271, %v2272, %v2264
    %v2274 = vsel %vm2267, %v2270, %v2273
    %v2275 = vsel %vm2265, nan, %v2274
    %v2276 = vand.u32 2147483647, %v2121
    %vm2277 = vcmp.le.f32.partialorder %v2276, 0.7853982
    %vm2278 = vcmp.lt.s32.totalorder %v2121, 0
    %v2279 = vand.u32 %v2121, 2139095040
    %v2280 = vshrl.u32 %v2279, 23
    %v2281 = vsub.s32 %v2280, 127
    %v2282 = vand.u32 2147483647, %v2121
    %v2283 = vand.u32 %v2282, 8388607
    %v2284 = vor.u32 %v2283, 8388608
    %v2285 = vsub.s32 0, %v2284
    %v2286 = vadd.s32 %v2281, 1
    %vm2287 = vcmp.gt.s32.totalorder %v2286, 0
    %v2288 = vsel %vm2287, %v2286, 0
    %v2289 = vshrl.u32 %v2288, 5
    %v2290 = vand.u32 %v2288, 31
    %v2291 = vsub.s32 32, %v2290
    %v2292 = vshrl.u32 683565275, %v2291
    %v2293 = vshll.u32 683565275, %v2290
    %v2294 = vshrl.u32 2475754826, %v2291
    %v2295 = vor.u32 %v2293, %v2294
    %v2296 = vshll.u32 2475754826, %v2290
    %v2297 = vshrl.u32 2131351028, %v2291
    %v2298 = vor.u32 %v2296, %v2297
    %v2299 = vshll.u32 2131351028, %v2290
    %v2300 = vshrl.u32 2102212464, %v2291
    %v2301 = vor.u32 %v2299, %v2300
    %v2302 = vshll.u32 2102212464, %v2290
    %v2303 = vshrl.u32 920167782, %v2291
    %v2304 = vor.u32 %v2302, %v2303
    %v2305 = vshll.u32 920167782, %v2290
    %v2306 = vshrl.u32 1326507024, %v2291
    %v2307 = vor.u32 %v2305, %v2306
    %vm2308 = vcmp.lt.s32.totalorder %v2289, 1
    %vm2309 = vcmp.lt.s32.totalorder %v2289, 2
    %vm2310 = vcmp.lt.s32.totalorder %v2289, 3
    %vm2311 = vcmp.lt.s32.totalorder %v2289, 4
    %v2312 = vsel %vm2308, %v2292, %v2295
    %v2313 = vsel %vm2311, %v2301, 2102212464
    %v2314 = vsel %vm2310, %v2298, %v2313
    %v2315 = vsel %vm2309, %v2312, %v2314
    %v2316 = vsel %vm2308, %v2295, %v2298
    %v2317 = vsel %vm2311, %v2304, 920167782
    %v2318 = vsel %vm2310, %v2301, %v2317
    %v2319 = vsel %vm2309, %v2316, %v2318
    %v2320 = vsel %vm2308, %v2298, %v2301
    %v2321 = vsel %vm2311, %v2307, 1326507024
    %v2322 = vsel %vm2310, %v2304, %v2321
    %v2323 = vsel %vm2309, %v2320, %v2322
    %v2324 = vshll.u32 %v2284, 8
    %v2325 = vand.u32 %v2324, 65535
    %v2326 = vshrl.u32 %v2324, 16
    %v2327 = vand.u32 %v2323, 65535
    %v2328 = vshrl.u32 %v2323, 16
    %v2329 = vmul.u32 %v2325, %v2327
    %v2330 = vmul.u32 %v2325, %v2328
    %v2331 = vmul.u32 %v2326, %v2327
    %v2332 = vmul.u32 %v2326, %v2328
    %v2333 = vshll.u32 %v2330, 16
    %v2334 = vshrl.u32 %v2330, 16
    %v2335 = vshll.u32 %v2331, 16
    %v2336 = vshrl.u32 %v2331, 16
    %vm2337 = vc.u32 %v2329, %v2333
    %v2338 = vsel %vm2337, 1, 0
    %v2339 = vadd.s32 %v2329, %v2333
    %v2340 = vadd.s32 %v2332, %v2338
    %vm2341 = vc.u32 %v2339, %v2335
    %v2342 = vsel %vm2341, 1, 0
    %v2343 = vadd.s32 %v2339, %v2335
    %v2344 = vadd.s32 %v2340, %v2342
    %v2345 = vadd.s32 %v2344, %v2334
    %v2346 = vadd.s32 %v2345, %v2336
    %v2347 = vand.u32 %v2324, 65535
    %v2348 = vshrl.u32 %v2324, 16
    %v2349 = vand.u32 %v2319, 65535
    %v2350 = vshrl.u32 %v2319, 16
    %v2351 = vmul.u32 %v2347, %v2349
    %v2352 = vmul.u32 %v2347, %v2350
    %v2353 = vmul.u32 %v2348, %v2349
    %v2354 = vmul.u32 %v2348, %v2350
    %v2355 = vshll.u32 %v2352, 16
    %v2356 = vshrl.u32 %v2352, 16
    %v2357 = vshll.u32 %v2353, 16
    %v2358 = vshrl.u32 %v2353, 16
    %vm2359 = vc.u32 %v2351, %v2355
    %v2360 = vsel %vm2359, 1, 0
    %v2361 = vadd.s32 %v2351, %v2355
    %v2362 = vadd.s32 %v2354, %v2360
    %vm2363 = vc.u32 %v2361, %v2357
    %v2364 = vsel %vm2363, 1, 0
    %v2365 = vadd.s32 %v2361, %v2357
    %v2366 = vadd.s32 %v2362, %v2364
    %v2367 = vadd.s32 %v2366, %v2356
    %v2368 = vadd.s32 %v2367, %v2358
    %v2369 = vmul.u32 %v2324, %v2315
    %v2370 = vadd.s32 %v2346, %v2365
    %vm2371 = vc.u32 %v2346, %v2365
    %v2372 = vadd.s32 %v2368, 1
    %v2373 = vsel %vm2371, %v2372, %v2368
    %v2374 = vadd.s32 %v2369, %v2373
    %v2375 = vadd.s32 %v2374, 536870912
    %v2376 = vshrl.u32 %v2375, 30
    %v2377 = vshll.u32 %v2376, 30
    %v2378 = vsub.s32 %v2374, %v2377
    %vm2379 = vcmp.lt.s32.totalorder %v2378, 0
    %v2380 = vsub.s32 0, %v2378
    %v2381 = vsel %vm2379, %v2380, %v2378
    %v2382 = vclz %v2381
    %v2383 = vsub.s32 %v2382, 2
    %vm2384 = vcmp.gt.s32.totalorder 0, %v2383
    %v2385 = vsel %vm2384, 0, %v2383
    %v2386 = vsub.s32 32, %v2385
    %v2387 = vshll.u32 %v2378, %v2385
    %v2388 = vshrl.u32 %v2370, %v2386
    %v2389 = vor.u32 %v2387, %v2388
    %v2390 = vsub.s32 4294967266, %v2385
    %v2391 = vadd.s32 %v2390, 127
    %v2392 = vshll.u32 %v2391, 23
    %v2393 = vor.u32 4788187, %v2392
    %v2394 = vand.u32 2147483647, %v2393
    %v2396 = vcvt.s32.f32 %v2389
    %v2397 = vmul.f32 %v2396, %v2394
    %v2398 = vxor.u32 %v2397, 2147483648
    %v2399 = vsel %vm2278, %v2398, %v2397
    %v2400 = vsub.s32 4, %v2376
    %v2401 = vsel %vm2278, %v2400, %v2376
    %v2402 = vsel %vm2277, %v2121, %v2399
    %v2403 = vsel %vm2277, 0, %v2401
    %v2404 = vmul.f32 %v2402, %v2402
    %v2405 = vmul.f32 %v2404, -0.001358992
    %v2406 = vadd.f32 %v2405, 0.041655596
    %v2407 = vmul.f32 %v2404, %v2406
    %v2408 = vadd.f32 %v2407, -0.4999988
    %v2409 = vmul.f32 %v2404, %v2408
    %v2410 = vadd.f32 1.0, %v2409
    %v2411 = vmul.f32 %v2402, %v2402
    %v2412 = vmul.f32 %v2411, -0.00019511016
    %v2413 = vadd.f32 %v2412, 0.008332121
    %v2414 = vmul.f32 %v2411, %v2413
    %v2415 = vadd.f32 %v2414, -0.16666654
    %v2416 = vmul.f32 %v2411, %v2415
    %v2417 = vadd.f32 %v2416, 1.0
    %v2418 = vmul.f32 %v2417, %v2402
    %vm2419 = vweird.f32 %v2121
    %v2420 = vadd.s32 %v2403, 3
    %v2421 = vand.u32 %v2420, 3
    %vm2422 = vcmp.lt.s32.totalorder %v2421, 2
    %vm2423 = vcmp.eq.s32.totalorder %v2421, 0
    %v2424 = vxor.u32 %v2418, 2147483648
    %v2425 = vsel %vm2423, %v2410, %v2424
    %vm2426 = vcmp.eq.s32.totalorder %v2421, 2
    %v2427 = vxor.u32 %v2410, 2147483648
    %v2428 = vsel %vm2426, %v2427, %v2418
    %v2429 = vsel %vm2422, %v2425, %v2428
    %v2430 = vsel %vm2419, nan, %v2429
    %v2431 = vmul.f32 %v2275, %v1789
    %v2432 = vmul.f32 %v2275, %v1790
    %v2433 = vmul.f32 %v2430, %v1793
    %v2434 = vmul.f32 %v2430, %v1794
    %v2435 = vsub.f32 %v2431, %v2433
    %v2436 = vsub.f32 %v2432, %v2434
    %s2437 = sld [smem:[#allocation2 + $0x5]]
    %v2438 = vstv %s2437
    %v2439 = vmul.f32 %v2438, 0.5
    %v2440 = vand.u32 2147483647, %v2439
    %vm2441 = vcmp.le.f32.partialorder %v2440, 0.7853982
    %vm2442 = vcmp.lt.s32.totalorder %v2439, 0
    %v2443 = vand.u32 %v2439, 2139095040
    %v2444 = vshrl.u32 %v2443, 23
    %v2445 = vsub.s32 %v2444, 127
    %v2446 = vand.u32 2147483647, %v2439
    %v2447 = vand.u32 %v2446, 8388607
    %v2448 = vor.u32 %v2447, 8388608
    %v2449 = vsub.s32 0, %v2448
    %v2450 = vadd.s32 %v2445, 1
    %vm2451 = vcmp.gt.s32.totalorder %v2450, 0
    %v2452 = vsel %vm2451, %v2450, 0
    %v2453 = vshrl.u32 %v2452, 5
    %v2454 = vand.u32 %v2452, 31
    %v2455 = vsub.s32 32, %v2454
    %v2456 = vshrl.u32 683565275, %v2455
    %v2457 = vshll.u32 683565275, %v2454
    %v2458 = vshrl.u32 2475754826, %v2455
    %v2459 = vor.u32 %v2457, %v2458
    %v2460 = vshll.u32 2475754826, %v2454
    %v2461 = vshrl.u32 2131351028, %v2455
    %v2462 = vor.u32 %v2460, %v2461
    %v2463 = vshll.u32 2131351028, %v2454
    %v2464 = vshrl.u32 2102212464, %v2455
    %v2465 = vor.u32 %v2463, %v2464
    %v2466 = vshll.u32 2102212464, %v2454
    %v2467 = vshrl.u32 920167782, %v2455
    %v2468 = vor.u32 %v2466, %v2467
    %v2469 = vshll.u32 920167782, %v2454
    %v2470 = vshrl.u32 1326507024, %v2455
    %v2471 = vor.u32 %v2469, %v2470
    %vm2472 = vcmp.lt.s32.totalorder %v2453, 1
    %vm2473 = vcmp.lt.s32.totalorder %v2453, 2
    %vm2474 = vcmp.lt.s32.totalorder %v2453, 3
    %vm2475 = vcmp.lt.s32.totalorder %v2453, 4
    %v2476 = vsel %vm2472, %v2456, %v2459
    %v2477 = vsel %vm2475, %v2465, 2102212464
    %v2478 = vsel %vm2474, %v2462, %v2477
    %v2479 = vsel %vm2473, %v2476, %v2478
    %v2480 = vsel %vm2472, %v2459, %v2462
    %v2481 = vsel %vm2475, %v2468, 920167782
    %v2482 = vsel %vm2474, %v2465, %v2481
    %v2483 = vsel %vm2473, %v2480, %v2482
    %v2484 = vsel %vm2472, %v2462, %v2465
    %v2485 = vsel %vm2475, %v2471, 1326507024
    %v2486 = vsel %vm2474, %v2468, %v2485
    %v2487 = vsel %vm2473, %v2484, %v2486
    %v2488 = vshll.u32 %v2448, 8
    %v2489 = vand.u32 %v2488, 65535
    %v2490 = vshrl.u32 %v2488, 16
    %v2491 = vand.u32 %v2487, 65535
    %v2492 = vshrl.u32 %v2487, 16
    %v2493 = vmul.u32 %v2489, %v2491
    %v2494 = vmul.u32 %v2489, %v2492
    %v2495 = vmul.u32 %v2490, %v2491
    %v2496 = vmul.u32 %v2490, %v2492
    %v2497 = vshll.u32 %v2494, 16
    %v2498 = vshrl.u32 %v2494, 16
    %v2499 = vshll.u32 %v2495, 16
    %v2500 = vshrl.u32 %v2495, 16
    %vm2501 = vc.u32 %v2493, %v2497
    %v2502 = vsel %vm2501, 1, 0
    %v2503 = vadd.s32 %v2493, %v2497
    %v2504 = vadd.s32 %v2496, %v2502
    %vm2505 = vc.u32 %v2503, %v2499
    %v2506 = vsel %vm2505, 1, 0
    %v2507 = vadd.s32 %v2503, %v2499
    %v2508 = vadd.s32 %v2504, %v2506
    %v2509 = vadd.s32 %v2508, %v2498
    %v2510 = vadd.s32 %v2509, %v2500
    %v2511 = vand.u32 %v2488, 65535
    %v2512 = vshrl.u32 %v2488, 16
    %v2513 = vand.u32 %v2483, 65535
    %v2514 = vshrl.u32 %v2483, 16
    %v2515 = vmul.u32 %v2511, %v2513
    %v2516 = vmul.u32 %v2511, %v2514
    %v2517 = vmul.u32 %v2512, %v2513
    %v2518 = vmul.u32 %v2512, %v2514
    %v2519 = vshll.u32 %v2516, 16
    %v2520 = vshrl.u32 %v2516, 16
    %v2521 = vshll.u32 %v2517, 16
    %v2522 = vshrl.u32 %v2517, 16
    %vm2523 = vc.u32 %v2515, %v2519
    %v2524 = vsel %vm2523, 1, 0
    %v2525 = vadd.s32 %v2515, %v2519
    %v2526 = vadd.s32 %v2518, %v2524
    %vm2527 = vc.u32 %v2525, %v2521
    %v2528 = vsel %vm2527, 1, 0
    %v2529 = vadd.s32 %v2525, %v2521
    %v2530 = vadd.s32 %v2526, %v2528
    %v2531 = vadd.s32 %v2530, %v2520
    %v2532 = vadd.s32 %v2531, %v2522
    %v2533 = vmul.u32 %v2488, %v2479
    %v2534 = vadd.s32 %v2510, %v2529
    %vm2535 = vc.u32 %v2510, %v2529
    %v2536 = vadd.s32 %v2532, 1
    %v2537 = vsel %vm2535, %v2536, %v2532
    %v2538 = vadd.s32 %v2533, %v2537
    %v2539 = vadd.s32 %v2538, 536870912
    %v2540 = vshrl.u32 %v2539, 30
    %v2541 = vshll.u32 %v2540, 30
    %v2542 = vsub.s32 %v2538, %v2541
    %vm2543 = vcmp.lt.s32.totalorder %v2542, 0
    %v2544 = vsub.s32 0, %v2542
    %v2545 = vsel %vm2543, %v2544, %v2542
    %v2546 = vclz %v2545
    %v2547 = vsub.s32 %v2546, 2
    %vm2548 = vcmp.gt.s32.totalorder 0, %v2547
    %v2549 = vsel %vm2548, 0, %v2547
    %v2550 = vsub.s32 32, %v2549
    %v2551 = vshll.u32 %v2542, %v2549
    %v2552 = vshrl.u32 %v2534, %v2550
    %v2553 = vor.u32 %v2551, %v2552
    %v2554 = vsub.s32 4294967266, %v2549
    %v2555 = vadd.s32 %v2554, 127
    %v2556 = vshll.u32 %v2555, 23
    %v2557 = vor.u32 4788187, %v2556
    %v2558 = vand.u32 2147483647, %v2557
    %v2560 = vcvt.s32.f32 %v2553
    %v2561 = vmul.f32 %v2560, %v2558
    %v2562 = vxor.u32 %v2561, 2147483648
    %v2563 = vsel %vm2442, %v2562, %v2561
    %v2564 = vsub.s32 4, %v2540
    %v2565 = vsel %vm2442, %v2564, %v2540
    %v2566 = vsel %vm2441, %v2439, %v2563
    %v2567 = vsel %vm2441, 0, %v2565
    %v2568 = vmul.f32 %v2566, %v2566
    %v2569 = vmul.f32 %v2568, -0.001358992
    %v2570 = vadd.f32 %v2569, 0.041655596
    %v2571 = vmul.f32 %v2568, %v2570
    %v2572 = vadd.f32 %v2571, -0.4999988
    %v2573 = vmul.f32 %v2568, %v2572
    %v2574 = vadd.f32 1.0, %v2573
    %v2575 = vmul.f32 %v2566, %v2566
    %v2576 = vmul.f32 %v2575, -0.00019511016
    %v2577 = vadd.f32 %v2576, 0.008332121
    %v2578 = vmul.f32 %v2575, %v2577
    %v2579 = vadd.f32 %v2578, -0.16666654
    %v2580 = vmul.f32 %v2575, %v2579
    %v2581 = vadd.f32 %v2580, 1.0
    %v2582 = vmul.f32 %v2581, %v2566
    %vm2583 = vweird.f32 %v2439
    %v2584 = vand.u32 %v2567, 3
    %vm2585 = vcmp.lt.s32.totalorder %v2584, 2
    %vm2586 = vcmp.eq.s32.totalorder %v2584, 0
    %v2587 = vxor.u32 %v2582, 2147483648
    %v2588 = vsel %vm2586, %v2574, %v2587
    %vm2589 = vcmp.eq.s32.totalorder %v2584, 2
    %v2590 = vxor.u32 %v2574, 2147483648
    %v2591 = vsel %vm2589, %v2590, %v2582
    %v2592 = vsel %vm2585, %v2588, %v2591
    %v2593 = vsel %vm2583, nan, %v2592
    %v2594 = vand.u32 2147483647, %v2439
    %vm2595 = vcmp.le.f32.partialorder %v2594, 0.7853982
    %vm2596 = vcmp.lt.s32.totalorder %v2439, 0
    %v2597 = vand.u32 %v2439, 2139095040
    %v2598 = vshrl.u32 %v2597, 23
    %v2599 = vsub.s32 %v2598, 127
    %v2600 = vand.u32 2147483647, %v2439
    %v2601 = vand.u32 %v2600, 8388607
    %v2602 = vor.u32 %v2601, 8388608
    %v2603 = vsub.s32 0, %v2602
    %v2604 = vadd.s32 %v2599, 1
    %vm2605 = vcmp.gt.s32.totalorder %v2604, 0
    %v2606 = vsel %vm2605, %v2604, 0
    %v2607 = vshrl.u32 %v2606, 5
    %v2608 = vand.u32 %v2606, 31
    %v2609 = vsub.s32 32, %v2608
    %v2610 = vshrl.u32 683565275, %v2609
    %v2611 = vshll.u32 683565275, %v2608
    %v2612 = vshrl.u32 2475754826, %v2609
    %v2613 = vor.u32 %v2611, %v2612
    %v2614 = vshll.u32 2475754826, %v2608
    %v2615 = vshrl.u32 2131351028, %v2609
    %v2616 = vor.u32 %v2614, %v2615
    %v2617 = vshll.u32 2131351028, %v2608
    %v2618 = vshrl.u32 2102212464, %v2609
    %v2619 = vor.u32 %v2617, %v2618
    %v2620 = vshll.u32 2102212464, %v2608
    %v2621 = vshrl.u32 920167782, %v2609
    %v2622 = vor.u32 %v2620, %v2621
    %v2623 = vshll.u32 920167782, %v2608
    %v2624 = vshrl.u32 1326507024, %v2609
    %v2625 = vor.u32 %v2623, %v2624
    %vm2626 = vcmp.lt.s32.totalorder %v2607, 1
    %vm2627 = vcmp.lt.s32.totalorder %v2607, 2
    %vm2628 = vcmp.lt.s32.totalorder %v2607, 3
    %vm2629 = vcmp.lt.s32.totalorder %v2607, 4
    %v2630 = vsel %vm2626, %v2610, %v2613
    %v2631 = vsel %vm2629, %v2619, 2102212464
    %v2632 = vsel %vm2628, %v2616, %v2631
    %v2633 = vsel %vm2627, %v2630, %v2632
    %v2634 = vsel %vm2626, %v2613, %v2616
    %v2635 = vsel %vm2629, %v2622, 920167782
    %v2636 = vsel %vm2628, %v2619, %v2635
    %v2637 = vsel %vm2627, %v2634, %v2636
    %v2638 = vsel %vm2626, %v2616, %v2619
    %v2639 = vsel %vm2629, %v2625, 1326507024
    %v2640 = vsel %vm2628, %v2622, %v2639
    %v2641 = vsel %vm2627, %v2638, %v2640
    %v2642 = vshll.u32 %v2602, 8
    %v2643 = vand.u32 %v2642, 65535
    %v2644 = vshrl.u32 %v2642, 16
    %v2645 = vand.u32 %v2641, 65535
    %v2646 = vshrl.u32 %v2641, 16
    %v2647 = vmul.u32 %v2643, %v2645
    %v2648 = vmul.u32 %v2643, %v2646
    %v2649 = vmul.u32 %v2644, %v2645
    %v2650 = vmul.u32 %v2644, %v2646
    %v2651 = vshll.u32 %v2648, 16
    %v2652 = vshrl.u32 %v2648, 16
    %v2653 = vshll.u32 %v2649, 16
    %v2654 = vshrl.u32 %v2649, 16
    %vm2655 = vc.u32 %v2647, %v2651
    %v2656 = vsel %vm2655, 1, 0
    %v2657 = vadd.s32 %v2647, %v2651
    %v2658 = vadd.s32 %v2650, %v2656
    %vm2659 = vc.u32 %v2657, %v2653
    %v2660 = vsel %vm2659, 1, 0
    %v2661 = vadd.s32 %v2657, %v2653
    %v2662 = vadd.s32 %v2658, %v2660
    %v2663 = vadd.s32 %v2662, %v2652
    %v2664 = vadd.s32 %v2663, %v2654
    %v2665 = vand.u32 %v2642, 65535
    %v2666 = vshrl.u32 %v2642, 16
    %v2667 = vand.u32 %v2637, 65535
    %v2668 = vshrl.u32 %v2637, 16
    %v2669 = vmul.u32 %v2665, %v2667
    %v2670 = vmul.u32 %v2665, %v2668
    %v2671 = vmul.u32 %v2666, %v2667
    %v2672 = vmul.u32 %v2666, %v2668
    %v2673 = vshll.u32 %v2670, 16
    %v2674 = vshrl.u32 %v2670, 16
    %v2675 = vshll.u32 %v2671, 16
    %v2676 = vshrl.u32 %v2671, 16
    %vm2677 = vc.u32 %v2669, %v2673
    %v2678 = vsel %vm2677, 1, 0
    %v2679 = vadd.s32 %v2669, %v2673
    %v2680 = vadd.s32 %v2672, %v2678
    %vm2681 = vc.u32 %v2679, %v2675
    %v2682 = vsel %vm2681, 1, 0
    %v2683 = vadd.s32 %v2679, %v2675
    %v2684 = vadd.s32 %v2680, %v2682
    %v2685 = vadd.s32 %v2684, %v2674
    %v2686 = vadd.s32 %v2685, %v2676
    %v2687 = vmul.u32 %v2642, %v2633
    %v2688 = vadd.s32 %v2664, %v2683
    %vm2689 = vc.u32 %v2664, %v2683
    %v2690 = vadd.s32 %v2686, 1
    %v2691 = vsel %vm2689, %v2690, %v2686
    %v2692 = vadd.s32 %v2687, %v2691
    %v2693 = vadd.s32 %v2692, 536870912
    %v2694 = vshrl.u32 %v2693, 30
    %v2695 = vshll.u32 %v2694, 30
    %v2696 = vsub.s32 %v2692, %v2695
    %vm2697 = vcmp.lt.s32.totalorder %v2696, 0
    %v2698 = vsub.s32 0, %v2696
    %v2699 = vsel %vm2697, %v2698, %v2696
    %v2700 = vclz %v2699
    %v2701 = vsub.s32 %v2700, 2
    %vm2702 = vcmp.gt.s32.totalorder 0, %v2701
    %v2703 = vsel %vm2702, 0, %v2701
    %v2704 = vsub.s32 32, %v2703
    %v2705 = vshll.u32 %v2696, %v2703
    %v2706 = vshrl.u32 %v2688, %v2704
    %v2707 = vor.u32 %v2705, %v2706
    %v2708 = vsub.s32 4294967266, %v2703
    %v2709 = vadd.s32 %v2708, 127
    %v2710 = vshll.u32 %v2709, 23
    %v2711 = vor.u32 4788187, %v2710
    %v2712 = vand.u32 2147483647, %v2711
    %v2714 = vcvt.s32.f32 %v2707
    %v2715 = vmul.f32 %v2714, %v2712
    %v2716 = vxor.u32 %v2715, 2147483648
    %v2717 = vsel %vm2596, %v2716, %v2715
    %v2718 = vsub.s32 4, %v2694
    %v2719 = vsel %vm2596, %v2718, %v2694
    %v2720 = vsel %vm2595, %v2439, %v2717
    %v2721 = vsel %vm2595, 0, %v2719
    %v2722 = vmul.f32 %v2720, %v2720
    %v2723 = vmul.f32 %v2722, -0.001358992
    %v2724 = vadd.f32 %v2723, 0.041655596
    %v2725 = vmul.f32 %v2722, %v2724
    %v2726 = vadd.f32 %v2725, -0.4999988
    %v2727 = vmul.f32 %v2722, %v2726
    %v2728 = vadd.f32 1.0, %v2727
    %v2729 = vmul.f32 %v2720, %v2720
    %v2730 = vmul.f32 %v2729, -0.00019511016
    %v2731 = vadd.f32 %v2730, 0.008332121
    %v2732 = vmul.f32 %v2729, %v2731
    %v2733 = vadd.f32 %v2732, -0.16666654
    %v2734 = vmul.f32 %v2729, %v2733
    %v2735 = vadd.f32 %v2734, 1.0
    %v2736 = vmul.f32 %v2735, %v2720
    %vm2737 = vweird.f32 %v2439
    %v2738 = vadd.s32 %v2721, 3
    %v2739 = vand.u32 %v2738, 3
    %vm2740 = vcmp.lt.s32.totalorder %v2739, 2
    %vm2741 = vcmp.eq.s32.totalorder %v2739, 0
    %v2742 = vxor.u32 %v2736, 2147483648
    %v2743 = vsel %vm2741, %v2728, %v2742
    %vm2744 = vcmp.eq.s32.totalorder %v2739, 2
    %v2745 = vxor.u32 %v2728, 2147483648
    %v2746 = vsel %vm2744, %v2745, %v2736
    %v2747 = vsel %vm2740, %v2743, %v2746
    %v2748 = vsel %vm2737, nan, %v2747
    %v2749 = vadd.f32 %v122, %v151
    %v2750 = vadd.f32 %v123, %v152
    %v2751 = vmul.f32 %v2593, %v2749
    %v2752 = vmul.f32 %v2593, %v2750
    %v2753 = vadd.f32 %v133, %v145
    %v2754 = vadd.f32 %v134, %v146
    %v2755 = vmul.f32 %v2748, %v2753
    %v2756 = vmul.f32 %v2748, %v2754
    %v2757 = vsub.f32 %v2751, %v2755
    %v2758 = vsub.f32 %v2752, %v2756
    %s2759 = sld [smem:[#allocation2 + $0x7]]
    %v2760 = vstv %s2759
    %v2761 = vmul.f32 %v2760, 0.5
    %v2762 = vand.u32 2147483647, %v2761
    %vm2763 = vcmp.le.f32.partialorder %v2762, 0.7853982
    %vm2764 = vcmp.lt.s32.totalorder %v2761, 0
    %v2765 = vand.u32 %v2761, 2139095040
    %v2766 = vshrl.u32 %v2765, 23
    %v2767 = vsub.s32 %v2766, 127
    %v2768 = vand.u32 2147483647, %v2761
    %v2769 = vand.u32 %v2768, 8388607
    %v2770 = vor.u32 %v2769, 8388608
    %v2771 = vsub.s32 0, %v2770
    %v2772 = vadd.s32 %v2767, 1
    %vm2773 = vcmp.gt.s32.totalorder %v2772, 0
    %v2774 = vsel %vm2773, %v2772, 0
    %v2775 = vshrl.u32 %v2774, 5
    %v2776 = vand.u32 %v2774, 31
    %v2777 = vsub.s32 32, %v2776
    %v2778 = vshrl.u32 683565275, %v2777
    %v2779 = vshll.u32 683565275, %v2776
    %v2780 = vshrl.u32 2475754826, %v2777
    %v2781 = vor.u32 %v2779, %v2780
    %v2782 = vshll.u32 2475754826, %v2776
    %v2783 = vshrl.u32 2131351028, %v2777
    %v2784 = vor.u32 %v2782, %v2783
    %v2785 = vshll.u32 2131351028, %v2776
    %v2786 = vshrl.u32 2102212464, %v2777
    %v2787 = vor.u32 %v2785, %v2786
    %v2788 = vshll.u32 2102212464, %v2776
    %v2789 = vshrl.u32 920167782, %v2777
    %v2790 = vor.u32 %v2788, %v2789
    %v2791 = vshll.u32 920167782, %v2776
    %v2792 = vshrl.u32 1326507024, %v2777
    %v2793 = vor.u32 %v2791, %v2792
    %vm2794 = vcmp.lt.s32.totalorder %v2775, 1
    %vm2795 = vcmp.lt.s32.totalorder %v2775, 2
    %vm2796 = vcmp.lt.s32.totalorder %v2775, 3
    %vm2797 = vcmp.lt.s32.totalorder %v2775, 4
    %v2798 = vsel %vm2794, %v2778, %v2781
    %v2799 = vsel %vm2797, %v2787, 2102212464
    %v2800 = vsel %vm2796, %v2784, %v2799
    %v2801 = vsel %vm2795, %v2798, %v2800
    %v2802 = vsel %vm2794, %v2781, %v2784
    %v2803 = vsel %vm2797, %v2790, 920167782
    %v2804 = vsel %vm2796, %v2787, %v2803
    %v2805 = vsel %vm2795, %v2802, %v2804
    %v2806 = vsel %vm2794, %v2784, %v2787
    %v2807 = vsel %vm2797, %v2793, 1326507024
    %v2808 = vsel %vm2796, %v2790, %v2807
    %v2809 = vsel %vm2795, %v2806, %v2808
    %v2810 = vshll.u32 %v2770, 8
    %v2811 = vand.u32 %v2810, 65535
    %v2812 = vshrl.u32 %v2810, 16
    %v2813 = vand.u32 %v2809, 65535
    %v2814 = vshrl.u32 %v2809, 16
    %v2815 = vmul.u32 %v2811, %v2813
    %v2816 = vmul.u32 %v2811, %v2814
    %v2817 = vmul.u32 %v2812, %v2813
    %v2818 = vmul.u32 %v2812, %v2814
    %v2819 = vshll.u32 %v2816, 16
    %v2820 = vshrl.u32 %v2816, 16
    %v2821 = vshll.u32 %v2817, 16
    %v2822 = vshrl.u32 %v2817, 16
    %vm2823 = vc.u32 %v2815, %v2819
    %v2824 = vsel %vm2823, 1, 0
    %v2825 = vadd.s32 %v2815, %v2819
    %v2826 = vadd.s32 %v2818, %v2824
    %vm2827 = vc.u32 %v2825, %v2821
    %v2828 = vsel %vm2827, 1, 0
    %v2829 = vadd.s32 %v2825, %v2821
    %v2830 = vadd.s32 %v2826, %v2828
    %v2831 = vadd.s32 %v2830, %v2820
    %v2832 = vadd.s32 %v2831, %v2822
    %v2833 = vand.u32 %v2810, 65535
    %v2834 = vshrl.u32 %v2810, 16
    %v2835 = vand.u32 %v2805, 65535
    %v2836 = vshrl.u32 %v2805, 16
    %v2837 = vmul.u32 %v2833, %v2835
    %v2838 = vmul.u32 %v2833, %v2836
    %v2839 = vmul.u32 %v2834, %v2835
    %v2840 = vmul.u32 %v2834, %v2836
    %v2841 = vshll.u32 %v2838, 16
    %v2842 = vshrl.u32 %v2838, 16
    %v2843 = vshll.u32 %v2839, 16
    %v2844 = vshrl.u32 %v2839, 16
    %vm2845 = vc.u32 %v2837, %v2841
    %v2846 = vsel %vm2845, 1, 0
    %v2847 = vadd.s32 %v2837, %v2841
    %v2848 = vadd.s32 %v2840, %v2846
    %vm2849 = vc.u32 %v2847, %v2843
    %v2850 = vsel %vm2849, 1, 0
    %v2851 = vadd.s32 %v2847, %v2843
    %v2852 = vadd.s32 %v2848, %v2850
    %v2853 = vadd.s32 %v2852, %v2842
    %v2854 = vadd.s32 %v2853, %v2844
    %v2855 = vmul.u32 %v2810, %v2801
    %v2856 = vadd.s32 %v2832, %v2851
    %vm2857 = vc.u32 %v2832, %v2851
    %v2858 = vadd.s32 %v2854, 1
    %v2859 = vsel %vm2857, %v2858, %v2854
    %v2860 = vadd.s32 %v2855, %v2859
    %v2861 = vadd.s32 %v2860, 536870912
    %v2862 = vshrl.u32 %v2861, 30
    %v2863 = vshll.u32 %v2862, 30
    %v2864 = vsub.s32 %v2860, %v2863
    %vm2865 = vcmp.lt.s32.totalorder %v2864, 0
    %v2866 = vsub.s32 0, %v2864
    %v2867 = vsel %vm2865, %v2866, %v2864
    %v2868 = vclz %v2867
    %v2869 = vsub.s32 %v2868, 2
    %vm2870 = vcmp.gt.s32.totalorder 0, %v2869
    %v2871 = vsel %vm2870, 0, %v2869
    %v2872 = vsub.s32 32, %v2871
    %v2873 = vshll.u32 %v2864, %v2871
    %v2874 = vshrl.u32 %v2856, %v2872
    %v2875 = vor.u32 %v2873, %v2874
    %v2876 = vsub.s32 4294967266, %v2871
    %v2877 = vadd.s32 %v2876, 127
    %v2878 = vshll.u32 %v2877, 23
    %v2879 = vor.u32 4788187, %v2878
    %v2880 = vand.u32 2147483647, %v2879
    %v2882 = vcvt.s32.f32 %v2875
    %v2883 = vmul.f32 %v2882, %v2880
    %v2884 = vxor.u32 %v2883, 2147483648
    %v2885 = vsel %vm2764, %v2884, %v2883
    %v2886 = vsub.s32 4, %v2862
    %v2887 = vsel %vm2764, %v2886, %v2862
    %v2888 = vsel %vm2763, %v2761, %v2885
    %v2889 = vsel %vm2763, 0, %v2887
    %v2890 = vmul.f32 %v2888, %v2888
    %v2891 = vmul.f32 %v2890, -0.001358992
    %v2892 = vadd.f32 %v2891, 0.041655596
    %v2893 = vmul.f32 %v2890, %v2892
    %v2894 = vadd.f32 %v2893, -0.4999988
    %v2895 = vmul.f32 %v2890, %v2894
    %v2896 = vadd.f32 1.0, %v2895
    %v2897 = vmul.f32 %v2888, %v2888
    %v2898 = vmul.f32 %v2897, -0.00019511016
    %v2899 = vadd.f32 %v2898, 0.008332121
    %v2900 = vmul.f32 %v2897, %v2899
    %v2901 = vadd.f32 %v2900, -0.16666654
    %v2902 = vmul.f32 %v2897, %v2901
    %v2903 = vadd.f32 %v2902, 1.0
    %v2904 = vmul.f32 %v2903, %v2888
    %vm2905 = vweird.f32 %v2761
    %v2906 = vand.u32 %v2889, 3
    %vm2907 = vcmp.lt.s32.totalorder %v2906, 2
    %vm2908 = vcmp.eq.s32.totalorder %v2906, 0
    %v2909 = vxor.u32 %v2904, 2147483648
    %v2910 = vsel %vm2908, %v2896, %v2909
    %vm2911 = vcmp.eq.s32.totalorder %v2906, 2
    %v2912 = vxor.u32 %v2896, 2147483648
    %v2913 = vsel %vm2911, %v2912, %v2904
    %v2914 = vsel %vm2907, %v2910, %v2913
    %v2915 = vsel %vm2905, nan, %v2914
    %v2916 = vand.u32 2147483647, %v2761
    %vm2917 = vcmp.le.f32.partialorder %v2916, 0.7853982
    %vm2918 = vcmp.lt.s32.totalorder %v2761, 0
    %v2919 = vand.u32 %v2761, 2139095040
    %v2920 = vshrl.u32 %v2919, 23
    %v2921 = vsub.s32 %v2920, 127
    %v2922 = vand.u32 2147483647, %v2761
    %v2923 = vand.u32 %v2922, 8388607
    %v2924 = vor.u32 %v2923, 8388608
    %v2925 = vsub.s32 0, %v2924
    %v2926 = vadd.s32 %v2921, 1
    %vm2927 = vcmp.gt.s32.totalorder %v2926, 0
    %v2928 = vsel %vm2927, %v2926, 0
    %v2929 = vshrl.u32 %v2928, 5
    %v2930 = vand.u32 %v2928, 31
    %v2931 = vsub.s32 32, %v2930
    %v2932 = vshrl.u32 683565275, %v2931
    %v2933 = vshll.u32 683565275, %v2930
    %v2934 = vshrl.u32 2475754826, %v2931
    %v2935 = vor.u32 %v2933, %v2934
    %v2936 = vshll.u32 2475754826, %v2930
    %v2937 = vshrl.u32 2131351028, %v2931
    %v2938 = vor.u32 %v2936, %v2937
    %v2939 = vshll.u32 2131351028, %v2930
    %v2940 = vshrl.u32 2102212464, %v2931
    %v2941 = vor.u32 %v2939, %v2940
    %v2942 = vshll.u32 2102212464, %v2930
    %v2943 = vshrl.u32 920167782, %v2931
    %v2944 = vor.u32 %v2942, %v2943
    %v2945 = vshll.u32 920167782, %v2930
    %v2946 = vshrl.u32 1326507024, %v2931
    %v2947 = vor.u32 %v2945, %v2946
    %vm2948 = vcmp.lt.s32.totalorder %v2929, 1
    %vm2949 = vcmp.lt.s32.totalorder %v2929, 2
    %vm2950 = vcmp.lt.s32.totalorder %v2929, 3
    %vm2951 = vcmp.lt.s32.totalorder %v2929, 4
    %v2952 = vsel %vm2948, %v2932, %v2935
    %v2953 = vsel %vm2951, %v2941, 2102212464
    %v2954 = vsel %vm2950, %v2938, %v2953
    %v2955 = vsel %vm2949, %v2952, %v2954
    %v2956 = vsel %vm2948, %v2935, %v2938
    %v2957 = vsel %vm2951, %v2944, 920167782
    %v2958 = vsel %vm2950, %v2941, %v2957
    %v2959 = vsel %vm2949, %v2956, %v2958
    %v2960 = vsel %vm2948, %v2938, %v2941
    %v2961 = vsel %vm2951, %v2947, 1326507024
    %v2962 = vsel %vm2950, %v2944, %v2961
    %v2963 = vsel %vm2949, %v2960, %v2962
    %v2964 = vshll.u32 %v2924, 8
    %v2965 = vand.u32 %v2964, 65535
    %v2966 = vshrl.u32 %v2964, 16
    %v2967 = vand.u32 %v2963, 65535
    %v2968 = vshrl.u32 %v2963, 16
    %v2969 = vmul.u32 %v2965, %v2967
    %v2970 = vmul.u32 %v2965, %v2968
    %v2971 = vmul.u32 %v2966, %v2967
    %v2972 = vmul.u32 %v2966, %v2968
    %v2973 = vshll.u32 %v2970, 16
    %v2974 = vshrl.u32 %v2970, 16
    %v2975 = vshll.u32 %v2971, 16
    %v2976 = vshrl.u32 %v2971, 16
    %vm2977 = vc.u32 %v2969, %v2973
    %v2978 = vsel %vm2977, 1, 0
    %v2979 = vadd.s32 %v2969, %v2973
    %v2980 = vadd.s32 %v2972, %v2978
    %vm2981 = vc.u32 %v2979, %v2975
    %v2982 = vsel %vm2981, 1, 0
    %v2983 = vadd.s32 %v2979, %v2975
    %v2984 = vadd.s32 %v2980, %v2982
    %v2985 = vadd.s32 %v2984, %v2974
    %v2986 = vadd.s32 %v2985, %v2976
    %v2987 = vand.u32 %v2964, 65535
    %v2988 = vshrl.u32 %v2964, 16
    %v2989 = vand.u32 %v2959, 65535
    %v2990 = vshrl.u32 %v2959, 16
    %v2991 = vmul.u32 %v2987, %v2989
    %v2992 = vmul.u32 %v2987, %v2990
    %v2993 = vmul.u32 %v2988, %v2989
    %v2994 = vmul.u32 %v2988, %v2990
    %v2995 = vshll.u32 %v2992, 16
    %v2996 = vshrl.u32 %v2992, 16
    %v2997 = vshll.u32 %v2993, 16
    %v2998 = vshrl.u32 %v2993, 16
    %vm2999 = vc.u32 %v2991, %v2995
    %v3000 = vsel %vm2999, 1, 0
    %v3001 = vadd.s32 %v2991, %v2995
    %v3002 = vadd.s32 %v2994, %v3000
    %vm3003 = vc.u32 %v3001, %v2997
    %v3004 = vsel %vm3003, 1, 0
    %v3005 = vadd.s32 %v3001, %v2997
    %v3006 = vadd.s32 %v3002, %v3004
    %v3007 = vadd.s32 %v3006, %v2996
    %v3008 = vadd.s32 %v3007, %v2998
    %v3009 = vmul.u32 %v2964, %v2955
    %v3010 = vadd.s32 %v2986, %v3005
    %vm3011 = vc.u32 %v2986, %v3005
    %v3012 = vadd.s32 %v3008, 1
    %v3013 = vsel %vm3011, %v3012, %v3008
    %v3014 = vadd.s32 %v3009, %v3013
    %v3015 = vadd.s32 %v3014, 536870912
    %v3016 = vshrl.u32 %v3015, 30
    %v3017 = vshll.u32 %v3016, 30
    %v3018 = vsub.s32 %v3014, %v3017
    %vm3019 = vcmp.lt.s32.totalorder %v3018, 0
    %v3020 = vsub.s32 0, %v3018
    %v3021 = vsel %vm3019, %v3020, %v3018
    %v3022 = vclz %v3021
    %v3023 = vsub.s32 %v3022, 2
    %vm3024 = vcmp.gt.s32.totalorder 0, %v3023
    %v3025 = vsel %vm3024, 0, %v3023
    %v3026 = vsub.s32 32, %v3025
    %v3027 = vshll.u32 %v3018, %v3025
    %v3028 = vshrl.u32 %v3010, %v3026
    %v3029 = vor.u32 %v3027, %v3028
    %v3030 = vsub.s32 4294967266, %v3025
    %v3031 = vadd.s32 %v3030, 127
    %v3032 = vshll.u32 %v3031, 23
    %v3033 = vor.u32 4788187, %v3032
    %v3034 = vand.u32 2147483647, %v3033
    %v3036 = vcvt.s32.f32 %v3029
    %v3037 = vmul.f32 %v3036, %v3034
    %v3038 = vxor.u32 %v3037, 2147483648
    %v3039 = vsel %vm2918, %v3038, %v3037
    %v3040 = vsub.s32 4, %v3016
    %v3041 = vsel %vm2918, %v3040, %v3016
    %v3042 = vsel %vm2917, %v2761, %v3039
    %v3043 = vsel %vm2917, 0, %v3041
    %v3044 = vmul.f32 %v3042, %v3042
    %v3045 = vmul.f32 %v3044, -0.001358992
    %v3046 = vadd.f32 %v3045, 0.041655596
    %v3047 = vmul.f32 %v3044, %v3046
    %v3048 = vadd.f32 %v3047, -0.4999988
    %v3049 = vmul.f32 %v3044, %v3048
    %v3050 = vadd.f32 1.0, %v3049
    %v3051 = vmul.f32 %v3042, %v3042
    %v3052 = vmul.f32 %v3051, -0.00019511016
    %v3053 = vadd.f32 %v3052, 0.008332121
    %v3054 = vmul.f32 %v3051, %v3053
    %v3055 = vadd.f32 %v3054, -0.16666654
    %v3056 = vmul.f32 %v3051, %v3055
    %v3057 = vadd.f32 %v3056, 1.0
    %v3058 = vmul.f32 %v3057, %v3042
    %vm3059 = vweird.f32 %v2761
    %v3060 = vadd.s32 %v3043, 3
    %v3061 = vand.u32 %v3060, 3
    %vm3062 = vcmp.lt.s32.totalorder %v3061, 2
    %vm3063 = vcmp.eq.s32.totalorder %v3061, 0
    %v3064 = vxor.u32 %v3058, 2147483648
    %v3065 = vsel %vm3063, %v3050, %v3064
    %vm3066 = vcmp.eq.s32.totalorder %v3061, 2
    %v3067 = vxor.u32 %v3050, 2147483648
    %v3068 = vsel %vm3066, %v3067, %v3058
    %v3069 = vsel %vm3062, %v3065, %v3068
    %v3070 = vsel %vm3059, nan, %v3069
    %v3071 = vmul.f32 %v2915, %v2749
    %v3072 = vmul.f32 %v2915, %v2750
    %v3073 = vsub.f32 %v153, %v124
    %v3074 = vsub.f32 %v154, %v125
    %v3075 = vmul.f32 %v3070, %v3073
    %v3076 = vmul.f32 %v3070, %v3074
    %v3077 = vadd.f32 %v3071, %v3075
    %v3078 = vadd.f32 %v3072, %v3076
    %s3079 = sld [smem:[#allocation2 + $0x9]]
    %v3080 = vstv %s3079
    %v3081 = vmul.f32 %v3080, 0.5
    %v3082 = vand.u32 2147483647, %v3081
    %vm3083 = vcmp.le.f32.partialorder %v3082, 0.7853982
    %vm3084 = vcmp.lt.s32.totalorder %v3081, 0
    %v3085 = vand.u32 %v3081, 2139095040
    %v3086 = vshrl.u32 %v3085, 23
    %v3087 = vsub.s32 %v3086, 127
    %v3088 = vand.u32 2147483647, %v3081
    %v3089 = vand.u32 %v3088, 8388607
    %v3090 = vor.u32 %v3089, 8388608
    %v3091 = vsub.s32 0, %v3090
    %v3092 = vadd.s32 %v3087, 1
    %vm3093 = vcmp.gt.s32.totalorder %v3092, 0
    %v3094 = vsel %vm3093, %v3092, 0
    %v3095 = vshrl.u32 %v3094, 5
    %v3096 = vand.u32 %v3094, 31
    %v3097 = vsub.s32 32, %v3096
    %v3098 = vshrl.u32 683565275, %v3097
    %v3099 = vshll.u32 683565275, %v3096
    %v3100 = vshrl.u32 2475754826, %v3097
    %v3101 = vor.u32 %v3099, %v3100
    %v3102 = vshll.u32 2475754826, %v3096
    %v3103 = vshrl.u32 2131351028, %v3097
    %v3104 = vor.u32 %v3102, %v3103
    %v3105 = vshll.u32 2131351028, %v3096
    %v3106 = vshrl.u32 2102212464, %v3097
    %v3107 = vor.u32 %v3105, %v3106
    %v3108 = vshll.u32 2102212464, %v3096
    %v3109 = vshrl.u32 920167782, %v3097
    %v3110 = vor.u32 %v3108, %v3109
    %v3111 = vshll.u32 920167782, %v3096
    %v3112 = vshrl.u32 1326507024, %v3097
    %v3113 = vor.u32 %v3111, %v3112
    %vm3114 = vcmp.lt.s32.totalorder %v3095, 1
    %vm3115 = vcmp.lt.s32.totalorder %v3095, 2
    %vm3116 = vcmp.lt.s32.totalorder %v3095, 3
    %vm3117 = vcmp.lt.s32.totalorder %v3095, 4
    %v3118 = vsel %vm3114, %v3098, %v3101
    %v3119 = vsel %vm3117, %v3107, 2102212464
    %v3120 = vsel %vm3116, %v3104, %v3119
    %v3121 = vsel %vm3115, %v3118, %v3120
    %v3122 = vsel %vm3114, %v3101, %v3104
    %v3123 = vsel %vm3117, %v3110, 920167782
    %v3124 = vsel %vm3116, %v3107, %v3123
    %v3125 = vsel %vm3115, %v3122, %v3124
    %v3126 = vsel %vm3114, %v3104, %v3107
    %v3127 = vsel %vm3117, %v3113, 1326507024
    %v3128 = vsel %vm3116, %v3110, %v3127
    %v3129 = vsel %vm3115, %v3126, %v3128
    %v3130 = vshll.u32 %v3090, 8
    %v3131 = vand.u32 %v3130, 65535
    %v3132 = vshrl.u32 %v3130, 16
    %v3133 = vand.u32 %v3129, 65535
    %v3134 = vshrl.u32 %v3129, 16
    %v3135 = vmul.u32 %v3131, %v3133
    %v3136 = vmul.u32 %v3131, %v3134
    %v3137 = vmul.u32 %v3132, %v3133
    %v3138 = vmul.u32 %v3132, %v3134
    %v3139 = vshll.u32 %v3136, 16
    %v3140 = vshrl.u32 %v3136, 16
    %v3141 = vshll.u32 %v3137, 16
    %v3142 = vshrl.u32 %v3137, 16
    %vm3143 = vc.u32 %v3135, %v3139
    %v3144 = vsel %vm3143, 1, 0
    %v3145 = vadd.s32 %v3135, %v3139
    %v3146 = vadd.s32 %v3138, %v3144
    %vm3147 = vc.u32 %v3145, %v3141
    %v3148 = vsel %vm3147, 1, 0
    %v3149 = vadd.s32 %v3145, %v3141
    %v3150 = vadd.s32 %v3146, %v3148
    %v3151 = vadd.s32 %v3150, %v3140
    %v3152 = vadd.s32 %v3151, %v3142
    %v3153 = vand.u32 %v3130, 65535
    %v3154 = vshrl.u32 %v3130, 16
    %v3155 = vand.u32 %v3125, 65535
    %v3156 = vshrl.u32 %v3125, 16
    %v3157 = vmul.u32 %v3153, %v3155
    %v3158 = vmul.u32 %v3153, %v3156
    %v3159 = vmul.u32 %v3154, %v3155
    %v3160 = vmul.u32 %v3154, %v3156
    %v3161 = vshll.u32 %v3158, 16
    %v3162 = vshrl.u32 %v3158, 16
    %v3163 = vshll.u32 %v3159, 16
    %v3164 = vshrl.u32 %v3159, 16
    %vm3165 = vc.u32 %v3157, %v3161
    %v3166 = vsel %vm3165, 1, 0
    %v3167 = vadd.s32 %v3157, %v3161
    %v3168 = vadd.s32 %v3160, %v3166
    %vm3169 = vc.u32 %v3167, %v3163
    %v3170 = vsel %vm3169, 1, 0
    %v3171 = vadd.s32 %v3167, %v3163
    %v3172 = vadd.s32 %v3168, %v3170
    %v3173 = vadd.s32 %v3172, %v3162
    %v3174 = vadd.s32 %v3173, %v3164
    %v3175 = vmul.u32 %v3130, %v3121
    %v3176 = vadd.s32 %v3152, %v3171
    %vm3177 = vc.u32 %v3152, %v3171
    %v3178 = vadd.s32 %v3174, 1
    %v3179 = vsel %vm3177, %v3178, %v3174
    %v3180 = vadd.s32 %v3175, %v3179
    %v3181 = vadd.s32 %v3180, 536870912
    %v3182 = vshrl.u32 %v3181, 30
    %v3183 = vshll.u32 %v3182, 30
    %v3184 = vsub.s32 %v3180, %v3183
    %vm3185 = vcmp.lt.s32.totalorder %v3184, 0
    %v3186 = vsub.s32 0, %v3184
    %v3187 = vsel %vm3185, %v3186, %v3184
    %v3188 = vclz %v3187
    %v3189 = vsub.s32 %v3188, 2
    %vm3190 = vcmp.gt.s32.totalorder 0, %v3189
    %v3191 = vsel %vm3190, 0, %v3189
    %v3192 = vsub.s32 32, %v3191
    %v3193 = vshll.u32 %v3184, %v3191
    %v3194 = vshrl.u32 %v3176, %v3192
    %v3195 = vor.u32 %v3193, %v3194
    %v3196 = vsub.s32 4294967266, %v3191
    %v3197 = vadd.s32 %v3196, 127
    %v3198 = vshll.u32 %v3197, 23
    %v3199 = vor.u32 4788187, %v3198
    %v3200 = vand.u32 2147483647, %v3199
    %v3202 = vcvt.s32.f32 %v3195
    %v3203 = vmul.f32 %v3202, %v3200
    %v3204 = vxor.u32 %v3203, 2147483648
    %v3205 = vsel %vm3084, %v3204, %v3203
    %v3206 = vsub.s32 4, %v3182
    %v3207 = vsel %vm3084, %v3206, %v3182
    %v3208 = vsel %vm3083, %v3081, %v3205
    %v3209 = vsel %vm3083, 0, %v3207
    %v3210 = vmul.f32 %v3208, %v3208
    %v3211 = vmul.f32 %v3210, -0.001358992
    %v3212 = vadd.f32 %v3211, 0.041655596
    %v3213 = vmul.f32 %v3210, %v3212
    %v3214 = vadd.f32 %v3213, -0.4999988
    %v3215 = vmul.f32 %v3210, %v3214
    %v3216 = vadd.f32 1.0, %v3215
    %v3217 = vmul.f32 %v3208, %v3208
    %v3218 = vmul.f32 %v3217, -0.00019511016
    %v3219 = vadd.f32 %v3218, 0.008332121
    %v3220 = vmul.f32 %v3217, %v3219
    %v3221 = vadd.f32 %v3220, -0.16666654
    %v3222 = vmul.f32 %v3217, %v3221
    %v3223 = vadd.f32 %v3222, 1.0
    %v3224 = vmul.f32 %v3223, %v3208
    %vm3225 = vweird.f32 %v3081
    %v3226 = vand.u32 %v3209, 3
    %vm3227 = vcmp.lt.s32.totalorder %v3226, 2
    %vm3228 = vcmp.eq.s32.totalorder %v3226, 0
    %v3229 = vxor.u32 %v3224, 2147483648
    %v3230 = vsel %vm3228, %v3216, %v3229
    %vm3231 = vcmp.eq.s32.totalorder %v3226, 2
    %v3232 = vxor.u32 %v3216, 2147483648
    %v3233 = vsel %vm3231, %v3232, %v3224
    %v3234 = vsel %vm3227, %v3230, %v3233
    %v3235 = vsel %vm3225, nan, %v3234
    %v3236 = vand.u32 2147483647, %v3081
    %vm3237 = vcmp.le.f32.partialorder %v3236, 0.7853982
    %vm3238 = vcmp.lt.s32.totalorder %v3081, 0
    %v3239 = vand.u32 %v3081, 2139095040
    %v3240 = vshrl.u32 %v3239, 23
    %v3241 = vsub.s32 %v3240, 127
    %v3242 = vand.u32 2147483647, %v3081
    %v3243 = vand.u32 %v3242, 8388607
    %v3244 = vor.u32 %v3243, 8388608
    %v3245 = vsub.s32 0, %v3244
    %v3246 = vadd.s32 %v3241, 1
    %vm3247 = vcmp.gt.s32.totalorder %v3246, 0
    %v3248 = vsel %vm3247, %v3246, 0
    %v3249 = vshrl.u32 %v3248, 5
    %v3250 = vand.u32 %v3248, 31
    %v3251 = vsub.s32 32, %v3250
    %v3252 = vshrl.u32 683565275, %v3251
    %v3253 = vshll.u32 683565275, %v3250
    %v3254 = vshrl.u32 2475754826, %v3251
    %v3255 = vor.u32 %v3253, %v3254
    %v3256 = vshll.u32 2475754826, %v3250
    %v3257 = vshrl.u32 2131351028, %v3251
    %v3258 = vor.u32 %v3256, %v3257
    %v3259 = vshll.u32 2131351028, %v3250
    %v3260 = vshrl.u32 2102212464, %v3251
    %v3261 = vor.u32 %v3259, %v3260
    %v3262 = vshll.u32 2102212464, %v3250
    %v3263 = vshrl.u32 920167782, %v3251
    %v3264 = vor.u32 %v3262, %v3263
    %v3265 = vshll.u32 920167782, %v3250
    %v3266 = vshrl.u32 1326507024, %v3251
    %v3267 = vor.u32 %v3265, %v3266
    %vm3268 = vcmp.lt.s32.totalorder %v3249, 1
    %vm3269 = vcmp.lt.s32.totalorder %v3249, 2
    %vm3270 = vcmp.lt.s32.totalorder %v3249, 3
    %vm3271 = vcmp.lt.s32.totalorder %v3249, 4
    %v3272 = vsel %vm3268, %v3252, %v3255
    %v3273 = vsel %vm3271, %v3261, 2102212464
    %v3274 = vsel %vm3270, %v3258, %v3273
    %v3275 = vsel %vm3269, %v3272, %v3274
    %v3276 = vsel %vm3268, %v3255, %v3258
    %v3277 = vsel %vm3271, %v3264, 920167782
    %v3278 = vsel %vm3270, %v3261, %v3277
    %v3279 = vsel %vm3269, %v3276, %v3278
    %v3280 = vsel %vm3268, %v3258, %v3261
    %v3281 = vsel %vm3271, %v3267, 1326507024
    %v3282 = vsel %vm3270, %v3264, %v3281
    %v3283 = vsel %vm3269, %v3280, %v3282
    %v3284 = vshll.u32 %v3244, 8
    %v3285 = vand.u32 %v3284, 65535
    %v3286 = vshrl.u32 %v3284, 16
    %v3287 = vand.u32 %v3283, 65535
    %v3288 = vshrl.u32 %v3283, 16
    %v3289 = vmul.u32 %v3285, %v3287
    %v3290 = vmul.u32 %v3285, %v3288
    %v3291 = vmul.u32 %v3286, %v3287
    %v3292 = vmul.u32 %v3286, %v3288
    %v3293 = vshll.u32 %v3290, 16
    %v3294 = vshrl.u32 %v3290, 16
    %v3295 = vshll.u32 %v3291, 16
    %v3296 = vshrl.u32 %v3291, 16
    %vm3297 = vc.u32 %v3289, %v3293
    %v3298 = vsel %vm3297, 1, 0
    %v3299 = vadd.s32 %v3289, %v3293
    %v3300 = vadd.s32 %v3292, %v3298
    %vm3301 = vc.u32 %v3299, %v3295
    %v3302 = vsel %vm3301, 1, 0
    %v3303 = vadd.s32 %v3299, %v3295
    %v3304 = vadd.s32 %v3300, %v3302
    %v3305 = vadd.s32 %v3304, %v3294
    %v3306 = vadd.s32 %v3305, %v3296
    %v3307 = vand.u32 %v3284, 65535
    %v3308 = vshrl.u32 %v3284, 16
    %v3309 = vand.u32 %v3279, 65535
    %v3310 = vshrl.u32 %v3279, 16
    %v3311 = vmul.u32 %v3307, %v3309
    %v3312 = vmul.u32 %v3307, %v3310
    %v3313 = vmul.u32 %v3308, %v3309
    %v3314 = vmul.u32 %v3308, %v3310
    %v3315 = vshll.u32 %v3312, 16
    %v3316 = vshrl.u32 %v3312, 16
    %v3317 = vshll.u32 %v3313, 16
    %v3318 = vshrl.u32 %v3313, 16
    %vm3319 = vc.u32 %v3311, %v3315
    %v3320 = vsel %vm3319, 1, 0
    %v3321 = vadd.s32 %v3311, %v3315
    %v3322 = vadd.s32 %v3314, %v3320
    %vm3323 = vc.u32 %v3321, %v3317
    %v3324 = vsel %vm3323, 1, 0
    %v3325 = vadd.s32 %v3321, %v3317
    %v3326 = vadd.s32 %v3322, %v3324
    %v3327 = vadd.s32 %v3326, %v3316
    %v3328 = vadd.s32 %v3327, %v3318
    %v3329 = vmul.u32 %v3284, %v3275
    %v3330 = vadd.s32 %v3306, %v3325
    %vm3331 = vc.u32 %v3306, %v3325
    %v3332 = vadd.s32 %v3328, 1
    %v3333 = vsel %vm3331, %v3332, %v3328
    %v3334 = vadd.s32 %v3329, %v3333
    %v3335 = vadd.s32 %v3334, 536870912
    %v3336 = vshrl.u32 %v3335, 30
    %v3337 = vshll.u32 %v3336, 30
    %v3338 = vsub.s32 %v3334, %v3337
    %vm3339 = vcmp.lt.s32.totalorder %v3338, 0
    %v3340 = vsub.s32 0, %v3338
    %v3341 = vsel %vm3339, %v3340, %v3338
    %v3342 = vclz %v3341
    %v3343 = vsub.s32 %v3342, 2
    %vm3344 = vcmp.gt.s32.totalorder 0, %v3343
    %v3345 = vsel %vm3344, 0, %v3343
    %v3346 = vsub.s32 32, %v3345
    %v3347 = vshll.u32 %v3338, %v3345
    %v3348 = vshrl.u32 %v3330, %v3346
    %v3349 = vor.u32 %v3347, %v3348
    %v3350 = vsub.s32 4294967266, %v3345
    %v3351 = vadd.s32 %v3350, 127
    %v3352 = vshll.u32 %v3351, 23
    %v3353 = vor.u32 4788187, %v3352
    %v3354 = vand.u32 2147483647, %v3353
    %v3356 = vcvt.s32.f32 %v3349
    %v3357 = vmul.f32 %v3356, %v3354
    %v3358 = vxor.u32 %v3357, 2147483648
    %v3359 = vsel %vm3238, %v3358, %v3357
    %v3360 = vsub.s32 4, %v3336
    %v3361 = vsel %vm3238, %v3360, %v3336
    %v3362 = vsel %vm3237, %v3081, %v3359
    %v3363 = vsel %vm3237, 0, %v3361
    %v3364 = vmul.f32 %v3362, %v3362
    %v3365 = vmul.f32 %v3364, -0.001358992
    %v3366 = vadd.f32 %v3365, 0.041655596
    %v3367 = vmul.f32 %v3364, %v3366
    %v3368 = vadd.f32 %v3367, -0.4999988
    %v3369 = vmul.f32 %v3364, %v3368
    %v3370 = vadd.f32 1.0, %v3369
    %v3371 = vmul.f32 %v3362, %v3362
    %v3372 = vmul.f32 %v3371, -0.00019511016
    %v3373 = vadd.f32 %v3372, 0.008332121
    %v3374 = vmul.f32 %v3371, %v3373
    %v3375 = vadd.f32 %v3374, -0.16666654
    %v3376 = vmul.f32 %v3371, %v3375
    %v3377 = vadd.f32 %v3376, 1.0
    %v3378 = vmul.f32 %v3377, %v3362
    %vm3379 = vweird.f32 %v3081
    %v3380 = vadd.s32 %v3363, 3
    %v3381 = vand.u32 %v3380, 3
    %vm3382 = vcmp.lt.s32.totalorder %v3381, 2
    %vm3383 = vcmp.eq.s32.totalorder %v3381, 0
    %v3384 = vxor.u32 %v3378, 2147483648
    %v3385 = vsel %vm3383, %v3370, %v3384
    %vm3386 = vcmp.eq.s32.totalorder %v3381, 2
    %v3387 = vxor.u32 %v3370, 2147483648
    %v3388 = vsel %vm3386, %v3387, %v3378
    %v3389 = vsel %vm3382, %v3385, %v3388
    %v3390 = vsel %vm3379, nan, %v3389
    %v3391 = vmul.f32 %v3235, %v2749
    %v3392 = vmul.f32 %v3235, %v2750
    %v3393 = vmul.f32 %v3390, %v2753
    %v3394 = vmul.f32 %v3390, %v2754
    %v3395 = vsub.f32 %v3391, %v3393
    %v3396 = vsub.f32 %v3392, %v3394
    %s3397 = sld [smem:[#allocation2 + $0xa]]
    %v3398 = vstv %s3397
    %v3399 = vmul.f32 %v3398, 0.5
    %v3400 = vand.u32 2147483647, %v3399
    %vm3401 = vcmp.le.f32.partialorder %v3400, 0.7853982
    %vm3402 = vcmp.lt.s32.totalorder %v3399, 0
    %v3403 = vand.u32 %v3399, 2139095040
    %v3404 = vshrl.u32 %v3403, 23
    %v3405 = vsub.s32 %v3404, 127
    %v3406 = vand.u32 2147483647, %v3399
    %v3407 = vand.u32 %v3406, 8388607
    %v3408 = vor.u32 %v3407, 8388608
    %v3409 = vsub.s32 0, %v3408
    %v3410 = vadd.s32 %v3405, 1
    %vm3411 = vcmp.gt.s32.totalorder %v3410, 0
    %v3412 = vsel %vm3411, %v3410, 0
    %v3413 = vshrl.u32 %v3412, 5
    %v3414 = vand.u32 %v3412, 31
    %v3415 = vsub.s32 32, %v3414
    %v3416 = vshrl.u32 683565275, %v3415
    %v3417 = vshll.u32 683565275, %v3414
    %v3418 = vshrl.u32 2475754826, %v3415
    %v3419 = vor.u32 %v3417, %v3418
    %v3420 = vshll.u32 2475754826, %v3414
    %v3421 = vshrl.u32 2131351028, %v3415
    %v3422 = vor.u32 %v3420, %v3421
    %v3423 = vshll.u32 2131351028, %v3414
    %v3424 = vshrl.u32 2102212464, %v3415
    %v3425 = vor.u32 %v3423, %v3424
    %v3426 = vshll.u32 2102212464, %v3414
    %v3427 = vshrl.u32 920167782, %v3415
    %v3428 = vor.u32 %v3426, %v3427
    %v3429 = vshll.u32 920167782, %v3414
    %v3430 = vshrl.u32 1326507024, %v3415
    %v3431 = vor.u32 %v3429, %v3430
    %vm3432 = vcmp.lt.s32.totalorder %v3413, 1
    %vm3433 = vcmp.lt.s32.totalorder %v3413, 2
    %vm3434 = vcmp.lt.s32.totalorder %v3413, 3
    %vm3435 = vcmp.lt.s32.totalorder %v3413, 4
    %v3436 = vsel %vm3432, %v3416, %v3419
    %v3437 = vsel %vm3435, %v3425, 2102212464
    %v3438 = vsel %vm3434, %v3422, %v3437
    %v3439 = vsel %vm3433, %v3436, %v3438
    %v3440 = vsel %vm3432, %v3419, %v3422
    %v3441 = vsel %vm3435, %v3428, 920167782
    %v3442 = vsel %vm3434, %v3425, %v3441
    %v3443 = vsel %vm3433, %v3440, %v3442
    %v3444 = vsel %vm3432, %v3422, %v3425
    %v3445 = vsel %vm3435, %v3431, 1326507024
    %v3446 = vsel %vm3434, %v3428, %v3445
    %v3447 = vsel %vm3433, %v3444, %v3446
    %v3448 = vshll.u32 %v3408, 8
    %v3449 = vand.u32 %v3448, 65535
    %v3450 = vshrl.u32 %v3448, 16
    %v3451 = vand.u32 %v3447, 65535
    %v3452 = vshrl.u32 %v3447, 16
    %v3453 = vmul.u32 %v3449, %v3451
    %v3454 = vmul.u32 %v3449, %v3452
    %v3455 = vmul.u32 %v3450, %v3451
    %v3456 = vmul.u32 %v3450, %v3452
    %v3457 = vshll.u32 %v3454, 16
    %v3458 = vshrl.u32 %v3454, 16
    %v3459 = vshll.u32 %v3455, 16
    %v3460 = vshrl.u32 %v3455, 16
    %vm3461 = vc.u32 %v3453, %v3457
    %v3462 = vsel %vm3461, 1, 0
    %v3463 = vadd.s32 %v3453, %v3457
    %v3464 = vadd.s32 %v3456, %v3462
    %vm3465 = vc.u32 %v3463, %v3459
    %v3466 = vsel %vm3465, 1, 0
    %v3467 = vadd.s32 %v3463, %v3459
    %v3468 = vadd.s32 %v3464, %v3466
    %v3469 = vadd.s32 %v3468, %v3458
    %v3470 = vadd.s32 %v3469, %v3460
    %v3471 = vand.u32 %v3448, 65535
    %v3472 = vshrl.u32 %v3448, 16
    %v3473 = vand.u32 %v3443, 65535
    %v3474 = vshrl.u32 %v3443, 16
    %v3475 = vmul.u32 %v3471, %v3473
    %v3476 = vmul.u32 %v3471, %v3474
    %v3477 = vmul.u32 %v3472, %v3473
    %v3478 = vmul.u32 %v3472, %v3474
    %v3479 = vshll.u32 %v3476, 16
    %v3480 = vshrl.u32 %v3476, 16
    %v3481 = vshll.u32 %v3477, 16
    %v3482 = vshrl.u32 %v3477, 16
    %vm3483 = vc.u32 %v3475, %v3479
    %v3484 = vsel %vm3483, 1, 0
    %v3485 = vadd.s32 %v3475, %v3479
    %v3486 = vadd.s32 %v3478, %v3484
    %vm3487 = vc.u32 %v3485, %v3481
    %v3488 = vsel %vm3487, 1, 0
    %v3489 = vadd.s32 %v3485, %v3481
    %v3490 = vadd.s32 %v3486, %v3488
    %v3491 = vadd.s32 %v3490, %v3480
    %v3492 = vadd.s32 %v3491, %v3482
    %v3493 = vmul.u32 %v3448, %v3439
    %v3494 = vadd.s32 %v3470, %v3489
    %vm3495 = vc.u32 %v3470, %v3489
    %v3496 = vadd.s32 %v3492, 1
    %v3497 = vsel %vm3495, %v3496, %v3492
    %v3498 = vadd.s32 %v3493, %v3497
    %v3499 = vadd.s32 %v3498, 536870912
    %v3500 = vshrl.u32 %v3499, 30
    %v3501 = vshll.u32 %v3500, 30
    %v3502 = vsub.s32 %v3498, %v3501
    %vm3503 = vcmp.lt.s32.totalorder %v3502, 0
    %v3504 = vsub.s32 0, %v3502
    %v3505 = vsel %vm3503, %v3504, %v3502
    %v3506 = vclz %v3505
    %v3507 = vsub.s32 %v3506, 2
    %vm3508 = vcmp.gt.s32.totalorder 0, %v3507
    %v3509 = vsel %vm3508, 0, %v3507
    %v3510 = vsub.s32 32, %v3509
    %v3511 = vshll.u32 %v3502, %v3509
    %v3512 = vshrl.u32 %v3494, %v3510
    %v3513 = vor.u32 %v3511, %v3512
    %v3514 = vsub.s32 4294967266, %v3509
    %v3515 = vadd.s32 %v3514, 127
    %v3516 = vshll.u32 %v3515, 23
    %v3517 = vor.u32 4788187, %v3516
    %v3518 = vand.u32 2147483647, %v3517
    %v3520 = vcvt.s32.f32 %v3513
    %v3521 = vmul.f32 %v3520, %v3518
    %v3522 = vxor.u32 %v3521, 2147483648
    %v3523 = vsel %vm3402, %v3522, %v3521
    %v3524 = vsub.s32 4, %v3500
    %v3525 = vsel %vm3402, %v3524, %v3500
    %v3526 = vsel %vm3401, %v3399, %v3523
    %v3527 = vsel %vm3401, 0, %v3525
    %v3528 = vmul.f32 %v3526, %v3526
    %v3529 = vmul.f32 %v3528, -0.001358992
    %v3530 = vadd.f32 %v3529, 0.041655596
    %v3531 = vmul.f32 %v3528, %v3530
    %v3532 = vadd.f32 %v3531, -0.4999988
    %v3533 = vmul.f32 %v3528, %v3532
    %v3534 = vadd.f32 1.0, %v3533
    %v3535 = vmul.f32 %v3526, %v3526
    %v3536 = vmul.f32 %v3535, -0.00019511016
    %v3537 = vadd.f32 %v3536, 0.008332121
    %v3538 = vmul.f32 %v3535, %v3537
    %v3539 = vadd.f32 %v3538, -0.16666654
    %v3540 = vmul.f32 %v3535, %v3539
    %v3541 = vadd.f32 %v3540, 1.0
    %v3542 = vmul.f32 %v3541, %v3526
    %vm3543 = vweird.f32 %v3399
    %v3544 = vand.u32 %v3527, 3
    %vm3545 = vcmp.lt.s32.totalorder %v3544, 2
    %vm3546 = vcmp.eq.s32.totalorder %v3544, 0
    %v3547 = vxor.u32 %v3542, 2147483648
    %v3548 = vsel %vm3546, %v3534, %v3547
    %vm3549 = vcmp.eq.s32.totalorder %v3544, 2
    %v3550 = vxor.u32 %v3534, 2147483648
    %v3551 = vsel %vm3549, %v3550, %v3542
    %v3552 = vsel %vm3545, %v3548, %v3551
    %v3553 = vsel %vm3543, nan, %v3552
    %v3554 = vand.u32 2147483647, %v3399
    %vm3555 = vcmp.le.f32.partialorder %v3554, 0.7853982
    %vm3556 = vcmp.lt.s32.totalorder %v3399, 0
    %v3557 = vand.u32 %v3399, 2139095040
    %v3558 = vshrl.u32 %v3557, 23
    %v3559 = vsub.s32 %v3558, 127
    %v3560 = vand.u32 2147483647, %v3399
    %v3561 = vand.u32 %v3560, 8388607
    %v3562 = vor.u32 %v3561, 8388608
    %v3563 = vsub.s32 0, %v3562
    %v3564 = vadd.s32 %v3559, 1
    %vm3565 = vcmp.gt.s32.totalorder %v3564, 0
    %v3566 = vsel %vm3565, %v3564, 0
    %v3567 = vshrl.u32 %v3566, 5
    %v3568 = vand.u32 %v3566, 31
    %v3569 = vsub.s32 32, %v3568
    %v3570 = vshrl.u32 683565275, %v3569
    %v3571 = vshll.u32 683565275, %v3568
    %v3572 = vshrl.u32 2475754826, %v3569
    %v3573 = vor.u32 %v3571, %v3572
    %v3574 = vshll.u32 2475754826, %v3568
    %v3575 = vshrl.u32 2131351028, %v3569
    %v3576 = vor.u32 %v3574, %v3575
    %v3577 = vshll.u32 2131351028, %v3568
    %v3578 = vshrl.u32 2102212464, %v3569
    %v3579 = vor.u32 %v3577, %v3578
    %v3580 = vshll.u32 2102212464, %v3568
    %v3581 = vshrl.u32 920167782, %v3569
    %v3582 = vor.u32 %v3580, %v3581
    %v3583 = vshll.u32 920167782, %v3568
    %v3584 = vshrl.u32 1326507024, %v3569
    %v3585 = vor.u32 %v3583, %v3584
    %vm3586 = vcmp.lt.s32.totalorder %v3567, 1
    %vm3587 = vcmp.lt.s32.totalorder %v3567, 2
    %vm3588 = vcmp.lt.s32.totalorder %v3567, 3
    %vm3589 = vcmp.lt.s32.totalorder %v3567, 4
    %v3590 = vsel %vm3586, %v3570, %v3573
    %v3591 = vsel %vm3589, %v3579, 2102212464
    %v3592 = vsel %vm3588, %v3576, %v3591
    %v3593 = vsel %vm3587, %v3590, %v3592
    %v3594 = vsel %vm3586, %v3573, %v3576
    %v3595 = vsel %vm3589, %v3582, 920167782
    %v3596 = vsel %vm3588, %v3579, %v3595
    %v3597 = vsel %vm3587, %v3594, %v3596
    %v3598 = vsel %vm3586, %v3576, %v3579
    %v3599 = vsel %vm3589, %v3585, 1326507024
    %v3600 = vsel %vm3588, %v3582, %v3599
    %v3601 = vsel %vm3587, %v3598, %v3600
    %v3602 = vshll.u32 %v3562, 8
    %v3603 = vand.u32 %v3602, 65535
    %v3604 = vshrl.u32 %v3602, 16
    %v3605 = vand.u32 %v3601, 65535
    %v3606 = vshrl.u32 %v3601, 16
    %v3607 = vmul.u32 %v3603, %v3605
    %v3608 = vmul.u32 %v3603, %v3606
    %v3609 = vmul.u32 %v3604, %v3605
    %v3610 = vmul.u32 %v3604, %v3606
    %v3611 = vshll.u32 %v3608, 16
    %v3612 = vshrl.u32 %v3608, 16
    %v3613 = vshll.u32 %v3609, 16
    %v3614 = vshrl.u32 %v3609, 16
    %vm3615 = vc.u32 %v3607, %v3611
    %v3616 = vsel %vm3615, 1, 0
    %v3617 = vadd.s32 %v3607, %v3611
    %v3618 = vadd.s32 %v3610, %v3616
    %vm3619 = vc.u32 %v3617, %v3613
    %v3620 = vsel %vm3619, 1, 0
    %v3621 = vadd.s32 %v3617, %v3613
    %v3622 = vadd.s32 %v3618, %v3620
    %v3623 = vadd.s32 %v3622, %v3612
    %v3624 = vadd.s32 %v3623, %v3614
    %v3625 = vand.u32 %v3602, 65535
    %v3626 = vshrl.u32 %v3602, 16
    %v3627 = vand.u32 %v3597, 65535
    %v3628 = vshrl.u32 %v3597, 16
    %v3629 = vmul.u32 %v3625, %v3627
    %v3630 = vmul.u32 %v3625, %v3628
    %v3631 = vmul.u32 %v3626, %v3627
    %v3632 = vmul.u32 %v3626, %v3628
    %v3633 = vshll.u32 %v3630, 16
    %v3634 = vshrl.u32 %v3630, 16
    %v3635 = vshll.u32 %v3631, 16
    %v3636 = vshrl.u32 %v3631, 16
    %vm3637 = vc.u32 %v3629, %v3633
    %v3638 = vsel %vm3637, 1, 0
    %v3639 = vadd.s32 %v3629, %v3633
    %v3640 = vadd.s32 %v3632, %v3638
    %vm3641 = vc.u32 %v3639, %v3635
    %v3642 = vsel %vm3641, 1, 0
    %v3643 = vadd.s32 %v3639, %v3635
    %v3644 = vadd.s32 %v3640, %v3642
    %v3645 = vadd.s32 %v3644, %v3634
    %v3646 = vadd.s32 %v3645, %v3636
    %v3647 = vmul.u32 %v3602, %v3593
    %v3648 = vadd.s32 %v3624, %v3643
    %vm3649 = vc.u32 %v3624, %v3643
    %v3650 = vadd.s32 %v3646, 1
    %v3651 = vsel %vm3649, %v3650, %v3646
    %v3652 = vadd.s32 %v3647, %v3651
    %v3653 = vadd.s32 %v3652, 536870912
    %v3654 = vshrl.u32 %v3653, 30
    %v3655 = vshll.u32 %v3654, 30
    %v3656 = vsub.s32 %v3652, %v3655
    %vm3657 = vcmp.lt.s32.totalorder %v3656, 0
    %v3658 = vsub.s32 0, %v3656
    %v3659 = vsel %vm3657, %v3658, %v3656
    %v3660 = vclz %v3659
    %v3661 = vsub.s32 %v3660, 2
    %vm3662 = vcmp.gt.s32.totalorder 0, %v3661
    %v3663 = vsel %vm3662, 0, %v3661
    %v3664 = vsub.s32 32, %v3663
    %v3665 = vshll.u32 %v3656, %v3663
    %v3666 = vshrl.u32 %v3648, %v3664
    %v3667 = vor.u32 %v3665, %v3666
    %v3668 = vsub.s32 4294967266, %v3663
    %v3669 = vadd.s32 %v3668, 127
    %v3670 = vshll.u32 %v3669, 23
    %v3671 = vor.u32 4788187, %v3670
    %v3672 = vand.u32 2147483647, %v3671
    %v3674 = vcvt.s32.f32 %v3667
    %v3675 = vmul.f32 %v3674, %v3672
    %v3676 = vxor.u32 %v3675, 2147483648
    %v3677 = vsel %vm3556, %v3676, %v3675
    %v3678 = vsub.s32 4, %v3654
    %v3679 = vsel %vm3556, %v3678, %v3654
    %v3680 = vsel %vm3555, %v3399, %v3677
    %v3681 = vsel %vm3555, 0, %v3679
    %v3682 = vmul.f32 %v3680, %v3680
    %v3683 = vmul.f32 %v3682, -0.001358992
    %v3684 = vadd.f32 %v3683, 0.041655596
    %v3685 = vmul.f32 %v3682, %v3684
    %v3686 = vadd.f32 %v3685, -0.4999988
    %v3687 = vmul.f32 %v3682, %v3686
    %v3688 = vadd.f32 1.0, %v3687
    %v3689 = vmul.f32 %v3680, %v3680
    %v3690 = vmul.f32 %v3689, -0.00019511016
    %v3691 = vadd.f32 %v3690, 0.008332121
    %v3692 = vmul.f32 %v3689, %v3691
    %v3693 = vadd.f32 %v3692, -0.16666654
    %v3694 = vmul.f32 %v3689, %v3693
    %v3695 = vadd.f32 %v3694, 1.0
    %v3696 = vmul.f32 %v3695, %v3680
    %vm3697 = vweird.f32 %v3399
    %v3698 = vadd.s32 %v3681, 3
    %v3699 = vand.u32 %v3698, 3
    %vm3700 = vcmp.lt.s32.totalorder %v3699, 2
    %vm3701 = vcmp.eq.s32.totalorder %v3699, 0
    %v3702 = vxor.u32 %v3696, 2147483648
    %v3703 = vsel %vm3701, %v3688, %v3702
    %vm3704 = vcmp.eq.s32.totalorder %v3699, 2
    %v3705 = vxor.u32 %v3688, 2147483648
    %v3706 = vsel %vm3704, %v3705, %v3696
    %v3707 = vsel %vm3700, %v3703, %v3706
    %v3708 = vsel %vm3697, nan, %v3707
    %v3709 = vmul.f32 %v3553, %v1789
    %v3710 = vmul.f32 %v3553, %v1790
    %v3711 = vmul.f32 %v3708, %v1793
    %v3712 = vmul.f32 %v3708, %v1794
    %v3713 = vsub.f32 %v3709, %v3711
    %v3714 = vsub.f32 %v3710, %v3712
    %s3715 = sld [smem:[#allocation2 + $0xc]]
    %v3716 = vstv %s3715
    %v3717 = vmul.f32 %v3716, 0.5
    %v3718 = vand.u32 2147483647, %v3717
    %vm3719 = vcmp.le.f32.partialorder %v3718, 0.7853982
    %vm3720 = vcmp.lt.s32.totalorder %v3717, 0
    %v3721 = vand.u32 %v3717, 2139095040
    %v3722 = vshrl.u32 %v3721, 23
    %v3723 = vsub.s32 %v3722, 127
    %v3724 = vand.u32 2147483647, %v3717
    %v3725 = vand.u32 %v3724, 8388607
    %v3726 = vor.u32 %v3725, 8388608
    %v3727 = vsub.s32 0, %v3726
    %v3728 = vadd.s32 %v3723, 1
    %vm3729 = vcmp.gt.s32.totalorder %v3728, 0
    %v3730 = vsel %vm3729, %v3728, 0
    %v3731 = vshrl.u32 %v3730, 5
    %v3732 = vand.u32 %v3730, 31
    %v3733 = vsub.s32 32, %v3732
    %v3734 = vshrl.u32 683565275, %v3733
    %v3735 = vshll.u32 683565275, %v3732
    %v3736 = vshrl.u32 2475754826, %v3733
    %v3737 = vor.u32 %v3735, %v3736
    %v3738 = vshll.u32 2475754826, %v3732
    %v3739 = vshrl.u32 2131351028, %v3733
    %v3740 = vor.u32 %v3738, %v3739
    %v3741 = vshll.u32 2131351028, %v3732
    %v3742 = vshrl.u32 2102212464, %v3733
    %v3743 = vor.u32 %v3741, %v3742
    %v3744 = vshll.u32 2102212464, %v3732
    %v3745 = vshrl.u32 920167782, %v3733
    %v3746 = vor.u32 %v3744, %v3745
    %v3747 = vshll.u32 920167782, %v3732
    %v3748 = vshrl.u32 1326507024, %v3733
    %v3749 = vor.u32 %v3747, %v3748
    %vm3750 = vcmp.lt.s32.totalorder %v3731, 1
    %vm3751 = vcmp.lt.s32.totalorder %v3731, 2
    %vm3752 = vcmp.lt.s32.totalorder %v3731, 3
    %vm3753 = vcmp.lt.s32.totalorder %v3731, 4
    %v3754 = vsel %vm3750, %v3734, %v3737
    %v3755 = vsel %vm3753, %v3743, 2102212464
    %v3756 = vsel %vm3752, %v3740, %v3755
    %v3757 = vsel %vm3751, %v3754, %v3756
    %v3758 = vsel %vm3750, %v3737, %v3740
    %v3759 = vsel %vm3753, %v3746, 920167782
    %v3760 = vsel %vm3752, %v3743, %v3759
    %v3761 = vsel %vm3751, %v3758, %v3760
    %v3762 = vsel %vm3750, %v3740, %v3743
    %v3763 = vsel %vm3753, %v3749, 1326507024
    %v3764 = vsel %vm3752, %v3746, %v3763
    %v3765 = vsel %vm3751, %v3762, %v3764
    %v3766 = vshll.u32 %v3726, 8
    %v3767 = vand.u32 %v3766, 65535
    %v3768 = vshrl.u32 %v3766, 16
    %v3769 = vand.u32 %v3765, 65535
    %v3770 = vshrl.u32 %v3765, 16
    %v3771 = vmul.u32 %v3767, %v3769
    %v3772 = vmul.u32 %v3767, %v3770
    %v3773 = vmul.u32 %v3768, %v3769
    %v3774 = vmul.u32 %v3768, %v3770
    %v3775 = vshll.u32 %v3772, 16
    %v3776 = vshrl.u32 %v3772, 16
    %v3777 = vshll.u32 %v3773, 16
    %v3778 = vshrl.u32 %v3773, 16
    %vm3779 = vc.u32 %v3771, %v3775
    %v3780 = vsel %vm3779, 1, 0
    %v3781 = vadd.s32 %v3771, %v3775
    %v3782 = vadd.s32 %v3774, %v3780
    %vm3783 = vc.u32 %v3781, %v3777
    %v3784 = vsel %vm3783, 1, 0
    %v3785 = vadd.s32 %v3781, %v3777
    %v3786 = vadd.s32 %v3782, %v3784
    %v3787 = vadd.s32 %v3786, %v3776
    %v3788 = vadd.s32 %v3787, %v3778
    %v3789 = vand.u32 %v3766, 65535
    %v3790 = vshrl.u32 %v3766, 16
    %v3791 = vand.u32 %v3761, 65535
    %v3792 = vshrl.u32 %v3761, 16
    %v3793 = vmul.u32 %v3789, %v3791
    %v3794 = vmul.u32 %v3789, %v3792
    %v3795 = vmul.u32 %v3790, %v3791
    %v3796 = vmul.u32 %v3790, %v3792
    %v3797 = vshll.u32 %v3794, 16
    %v3798 = vshrl.u32 %v3794, 16
    %v3799 = vshll.u32 %v3795, 16
    %v3800 = vshrl.u32 %v3795, 16
    %vm3801 = vc.u32 %v3793, %v3797
    %v3802 = vsel %vm3801, 1, 0
    %v3803 = vadd.s32 %v3793, %v3797
    %v3804 = vadd.s32 %v3796, %v3802
    %vm3805 = vc.u32 %v3803, %v3799
    %v3806 = vsel %vm3805, 1, 0
    %v3807 = vadd.s32 %v3803, %v3799
    %v3808 = vadd.s32 %v3804, %v3806
    %v3809 = vadd.s32 %v3808, %v3798
    %v3810 = vadd.s32 %v3809, %v3800
    %v3811 = vmul.u32 %v3766, %v3757
    %v3812 = vadd.s32 %v3788, %v3807
    %vm3813 = vc.u32 %v3788, %v3807
    %v3814 = vadd.s32 %v3810, 1
    %v3815 = vsel %vm3813, %v3814, %v3810
    %v3816 = vadd.s32 %v3811, %v3815
    %v3817 = vadd.s32 %v3816, 536870912
    %v3818 = vshrl.u32 %v3817, 30
    %v3819 = vshll.u32 %v3818, 30
    %v3820 = vsub.s32 %v3816, %v3819
    %vm3821 = vcmp.lt.s32.totalorder %v3820, 0
    %v3822 = vsub.s32 0, %v3820
    %v3823 = vsel %vm3821, %v3822, %v3820
    %v3824 = vclz %v3823
    %v3825 = vsub.s32 %v3824, 2
    %vm3826 = vcmp.gt.s32.totalorder 0, %v3825
    %v3827 = vsel %vm3826, 0, %v3825
    %v3828 = vsub.s32 32, %v3827
    %v3829 = vshll.u32 %v3820, %v3827
    %v3830 = vshrl.u32 %v3812, %v3828
    %v3831 = vor.u32 %v3829, %v3830
    %v3832 = vsub.s32 4294967266, %v3827
    %v3833 = vadd.s32 %v3832, 127
    %v3834 = vshll.u32 %v3833, 23
    %v3835 = vor.u32 4788187, %v3834
    %v3836 = vand.u32 2147483647, %v3835
    %v3838 = vcvt.s32.f32 %v3831
    %v3839 = vmul.f32 %v3838, %v3836
    %v3840 = vxor.u32 %v3839, 2147483648
    %v3841 = vsel %vm3720, %v3840, %v3839
    %v3842 = vsub.s32 4, %v3818
    %v3843 = vsel %vm3720, %v3842, %v3818
    %v3844 = vsel %vm3719, %v3717, %v3841
    %v3845 = vsel %vm3719, 0, %v3843
    %v3846 = vmul.f32 %v3844, %v3844
    %v3847 = vmul.f32 %v3846, -0.001358992
    %v3848 = vadd.f32 %v3847, 0.041655596
    %v3849 = vmul.f32 %v3846, %v3848
    %v3850 = vadd.f32 %v3849, -0.4999988
    %v3851 = vmul.f32 %v3846, %v3850
    %v3852 = vadd.f32 1.0, %v3851
    %v3853 = vmul.f32 %v3844, %v3844
    %v3854 = vmul.f32 %v3853, -0.00019511016
    %v3855 = vadd.f32 %v3854, 0.008332121
    %v3856 = vmul.f32 %v3853, %v3855
    %v3857 = vadd.f32 %v3856, -0.16666654
    %v3858 = vmul.f32 %v3853, %v3857
    %v3859 = vadd.f32 %v3858, 1.0
    %v3860 = vmul.f32 %v3859, %v3844
    %vm3861 = vweird.f32 %v3717
    %v3862 = vand.u32 %v3845, 3
    %vm3863 = vcmp.lt.s32.totalorder %v3862, 2
    %vm3864 = vcmp.eq.s32.totalorder %v3862, 0
    %v3865 = vxor.u32 %v3860, 2147483648
    %v3866 = vsel %vm3864, %v3852, %v3865
    %vm3867 = vcmp.eq.s32.totalorder %v3862, 2
    %v3868 = vxor.u32 %v3852, 2147483648
    %v3869 = vsel %vm3867, %v3868, %v3860
    %v3870 = vsel %vm3863, %v3866, %v3869
    %v3871 = vsel %vm3861, nan, %v3870
    %v3872 = vand.u32 2147483647, %v3717
    %vm3873 = vcmp.le.f32.partialorder %v3872, 0.7853982
    %vm3874 = vcmp.lt.s32.totalorder %v3717, 0
    %v3875 = vand.u32 %v3717, 2139095040
    %v3876 = vshrl.u32 %v3875, 23
    %v3877 = vsub.s32 %v3876, 127
    %v3878 = vand.u32 2147483647, %v3717
    %v3879 = vand.u32 %v3878, 8388607
    %v3880 = vor.u32 %v3879, 8388608
    %v3881 = vsub.s32 0, %v3880
    %v3882 = vadd.s32 %v3877, 1
    %vm3883 = vcmp.gt.s32.totalorder %v3882, 0
    %v3884 = vsel %vm3883, %v3882, 0
    %v3885 = vshrl.u32 %v3884, 5
    %v3886 = vand.u32 %v3884, 31
    %v3887 = vsub.s32 32, %v3886
    %v3888 = vshrl.u32 683565275, %v3887
    %v3889 = vshll.u32 683565275, %v3886
    %v3890 = vshrl.u32 2475754826, %v3887
    %v3891 = vor.u32 %v3889, %v3890
    %v3892 = vshll.u32 2475754826, %v3886
    %v3893 = vshrl.u32 2131351028, %v3887
    %v3894 = vor.u32 %v3892, %v3893
    %v3895 = vshll.u32 2131351028, %v3886
    %v3896 = vshrl.u32 2102212464, %v3887
    %v3897 = vor.u32 %v3895, %v3896
    %v3898 = vshll.u32 2102212464, %v3886
    %v3899 = vshrl.u32 920167782, %v3887
    %v3900 = vor.u32 %v3898, %v3899
    %v3901 = vshll.u32 920167782, %v3886
    %v3902 = vshrl.u32 1326507024, %v3887
    %v3903 = vor.u32 %v3901, %v3902
    %vm3904 = vcmp.lt.s32.totalorder %v3885, 1
    %vm3905 = vcmp.lt.s32.totalorder %v3885, 2
    %vm3906 = vcmp.lt.s32.totalorder %v3885, 3
    %vm3907 = vcmp.lt.s32.totalorder %v3885, 4
    %v3908 = vsel %vm3904, %v3888, %v3891
    %v3909 = vsel %vm3907, %v3897, 2102212464
    %v3910 = vsel %vm3906, %v3894, %v3909
    %v3911 = vsel %vm3905, %v3908, %v3910
    %v3912 = vsel %vm3904, %v3891, %v3894
    %v3913 = vsel %vm3907, %v3900, 920167782
    %v3914 = vsel %vm3906, %v3897, %v3913
    %v3915 = vsel %vm3905, %v3912, %v3914
    %v3916 = vsel %vm3904, %v3894, %v3897
    %v3917 = vsel %vm3907, %v3903, 1326507024
    %v3918 = vsel %vm3906, %v3900, %v3917
    %v3919 = vsel %vm3905, %v3916, %v3918
    %v3920 = vshll.u32 %v3880, 8
    %v3921 = vand.u32 %v3920, 65535
    %v3922 = vshrl.u32 %v3920, 16
    %v3923 = vand.u32 %v3919, 65535
    %v3924 = vshrl.u32 %v3919, 16
    %v3925 = vmul.u32 %v3921, %v3923
    %v3926 = vmul.u32 %v3921, %v3924
    %v3927 = vmul.u32 %v3922, %v3923
    %v3928 = vmul.u32 %v3922, %v3924
    %v3929 = vshll.u32 %v3926, 16
    %v3930 = vshrl.u32 %v3926, 16
    %v3931 = vshll.u32 %v3927, 16
    %v3932 = vshrl.u32 %v3927, 16
    %vm3933 = vc.u32 %v3925, %v3929
    %v3934 = vsel %vm3933, 1, 0
    %v3935 = vadd.s32 %v3925, %v3929
    %v3936 = vadd.s32 %v3928, %v3934
    %vm3937 = vc.u32 %v3935, %v3931
    %v3938 = vsel %vm3937, 1, 0
    %v3939 = vadd.s32 %v3935, %v3931
    %v3940 = vadd.s32 %v3936, %v3938
    %v3941 = vadd.s32 %v3940, %v3930
    %v3942 = vadd.s32 %v3941, %v3932
    %v3943 = vand.u32 %v3920, 65535
    %v3944 = vshrl.u32 %v3920, 16
    %v3945 = vand.u32 %v3915, 65535
    %v3946 = vshrl.u32 %v3915, 16
    %v3947 = vmul.u32 %v3943, %v3945
    %v3948 = vmul.u32 %v3943, %v3946
    %v3949 = vmul.u32 %v3944, %v3945
    %v3950 = vmul.u32 %v3944, %v3946
    %v3951 = vshll.u32 %v3948, 16
    %v3952 = vshrl.u32 %v3948, 16
    %v3953 = vshll.u32 %v3949, 16
    %v3954 = vshrl.u32 %v3949, 16
    %vm3955 = vc.u32 %v3947, %v3951
    %v3956 = vsel %vm3955, 1, 0
    %v3957 = vadd.s32 %v3947, %v3951
    %v3958 = vadd.s32 %v3950, %v3956
    %vm3959 = vc.u32 %v3957, %v3953
    %v3960 = vsel %vm3959, 1, 0
    %v3961 = vadd.s32 %v3957, %v3953
    %v3962 = vadd.s32 %v3958, %v3960
    %v3963 = vadd.s32 %v3962, %v3952
    %v3964 = vadd.s32 %v3963, %v3954
    %v3965 = vmul.u32 %v3920, %v3911
    %v3966 = vadd.s32 %v3942, %v3961
    %vm3967 = vc.u32 %v3942, %v3961
    %v3968 = vadd.s32 %v3964, 1
    %v3969 = vsel %vm3967, %v3968, %v3964
    %v3970 = vadd.s32 %v3965, %v3969
    %v3971 = vadd.s32 %v3970, 536870912
    %v3972 = vshrl.u32 %v3971, 30
    %v3973 = vshll.u32 %v3972, 30
    %v3974 = vsub.s32 %v3970, %v3973
    %vm3975 = vcmp.lt.s32.totalorder %v3974, 0
    %v3976 = vsub.s32 0, %v3974
    %v3977 = vsel %vm3975, %v3976, %v3974
    %v3978 = vclz %v3977
    %v3979 = vsub.s32 %v3978, 2
    %vm3980 = vcmp.gt.s32.totalorder 0, %v3979
    %v3981 = vsel %vm3980, 0, %v3979
    %v3982 = vsub.s32 32, %v3981
    %v3983 = vshll.u32 %v3974, %v3981
    %v3984 = vshrl.u32 %v3966, %v3982
    %v3985 = vor.u32 %v3983, %v3984
    %v3986 = vsub.s32 4294967266, %v3981
    %v3987 = vadd.s32 %v3986, 127
    %v3988 = vshll.u32 %v3987, 23
    %v3989 = vor.u32 4788187, %v3988
    %v3990 = vand.u32 2147483647, %v3989
    %v3992 = vcvt.s32.f32 %v3985
    %v3993 = vmul.f32 %v3992, %v3990
    %v3994 = vxor.u32 %v3993, 2147483648
    %v3995 = vsel %vm3874, %v3994, %v3993
    %v3996 = vsub.s32 4, %v3972
    %v3997 = vsel %vm3874, %v3996, %v3972
    %v3998 = vsel %vm3873, %v3717, %v3995
    %v3999 = vsel %vm3873, 0, %v3997
    %v4000 = vmul.f32 %v3998, %v3998
    %v4001 = vmul.f32 %v4000, -0.001358992
    %v4002 = vadd.f32 %v4001, 0.041655596
    %v4003 = vmul.f32 %v4000, %v4002
    %v4004 = vadd.f32 %v4003, -0.4999988
    %v4005 = vmul.f32 %v4000, %v4004
    %v4006 = vadd.f32 1.0, %v4005
    %v4007 = vmul.f32 %v3998, %v3998
    %v4008 = vmul.f32 %v4007, -0.00019511016
    %v4009 = vadd.f32 %v4008, 0.008332121
    %v4010 = vmul.f32 %v4007, %v4009
    %v4011 = vadd.f32 %v4010, -0.16666654
    %v4012 = vmul.f32 %v4007, %v4011
    %v4013 = vadd.f32 %v4012, 1.0
    %v4014 = vmul.f32 %v4013, %v3998
    %vm4015 = vweird.f32 %v3717
    %v4016 = vadd.s32 %v3999, 3
    %v4017 = vand.u32 %v4016, 3
    %vm4018 = vcmp.lt.s32.totalorder %v4017, 2
    %vm4019 = vcmp.eq.s32.totalorder %v4017, 0
    %v4020 = vxor.u32 %v4014, 2147483648
    %v4021 = vsel %vm4019, %v4006, %v4020
    %vm4022 = vcmp.eq.s32.totalorder %v4017, 2
    %v4023 = vxor.u32 %v4006, 2147483648
    %v4024 = vsel %vm4022, %v4023, %v4014
    %v4025 = vsel %vm4018, %v4021, %v4024
    %v4026 = vsel %vm4015, nan, %v4025
    %v4027 = vmul.f32 %v3871, %v1789
    %v4028 = vmul.f32 %v3871, %v1790
    %v4029 = vmul.f32 %v4026, %v2113
    %v4030 = vmul.f32 %v4026, %v2114
    %v4031 = vadd.f32 %v4027, %v4029
    %v4032 = vadd.f32 %v4028, %v4030
    %s4033 = sld [smem:[#allocation2 + $0xe]]
    %v4034 = vstv %s4033
    %v4035 = vmul.f32 %v4034, 0.5
    %v4036 = vand.u32 2147483647, %v4035
    %vm4037 = vcmp.le.f32.partialorder %v4036, 0.7853982
    %vm4038 = vcmp.lt.s32.totalorder %v4035, 0
    %v4039 = vand.u32 %v4035, 2139095040
    %v4040 = vshrl.u32 %v4039, 23
    %v4041 = vsub.s32 %v4040, 127
    %v4042 = vand.u32 2147483647, %v4035
    %v4043 = vand.u32 %v4042, 8388607
    %v4044 = vor.u32 %v4043, 8388608
    %v4045 = vsub.s32 0, %v4044
    %v4046 = vadd.s32 %v4041, 1
    %vm4047 = vcmp.gt.s32.totalorder %v4046, 0
    %v4048 = vsel %vm4047, %v4046, 0
    %v4049 = vshrl.u32 %v4048, 5
    %v4050 = vand.u32 %v4048, 31
    %v4051 = vsub.s32 32, %v4050
    %v4052 = vshrl.u32 683565275, %v4051
    %v4053 = vshll.u32 683565275, %v4050
    %v4054 = vshrl.u32 2475754826, %v4051
    %v4055 = vor.u32 %v4053, %v4054
    %v4056 = vshll.u32 2475754826, %v4050
    %v4057 = vshrl.u32 2131351028, %v4051
    %v4058 = vor.u32 %v4056, %v4057
    %v4059 = vshll.u32 2131351028, %v4050
    %v4060 = vshrl.u32 2102212464, %v4051
    %v4061 = vor.u32 %v4059, %v4060
    %v4062 = vshll.u32 2102212464, %v4050
    %v4063 = vshrl.u32 920167782, %v4051
    %v4064 = vor.u32 %v4062, %v4063
    %v4065 = vshll.u32 920167782, %v4050
    %v4066 = vshrl.u32 1326507024, %v4051
    %v4067 = vor.u32 %v4065, %v4066
    %vm4068 = vcmp.lt.s32.totalorder %v4049, 1
    %vm4069 = vcmp.lt.s32.totalorder %v4049, 2
    %vm4070 = vcmp.lt.s32.totalorder %v4049, 3
    %vm4071 = vcmp.lt.s32.totalorder %v4049, 4
    %v4072 = vsel %vm4068, %v4052, %v4055
    %v4073 = vsel %vm4071, %v4061, 2102212464
    %v4074 = vsel %vm4070, %v4058, %v4073
    %v4075 = vsel %vm4069, %v4072, %v4074
    %v4076 = vsel %vm4068, %v4055, %v4058
    %v4077 = vsel %vm4071, %v4064, 920167782
    %v4078 = vsel %vm4070, %v4061, %v4077
    %v4079 = vsel %vm4069, %v4076, %v4078
    %v4080 = vsel %vm4068, %v4058, %v4061
    %v4081 = vsel %vm4071, %v4067, 1326507024
    %v4082 = vsel %vm4070, %v4064, %v4081
    %v4083 = vsel %vm4069, %v4080, %v4082
    %v4084 = vshll.u32 %v4044, 8
    %v4085 = vand.u32 %v4084, 65535
    %v4086 = vshrl.u32 %v4084, 16
    %v4087 = vand.u32 %v4083, 65535
    %v4088 = vshrl.u32 %v4083, 16
    %v4089 = vmul.u32 %v4085, %v4087
    %v4090 = vmul.u32 %v4085, %v4088
    %v4091 = vmul.u32 %v4086, %v4087
    %v4092 = vmul.u32 %v4086, %v4088
    %v4093 = vshll.u32 %v4090, 16
    %v4094 = vshrl.u32 %v4090, 16
    %v4095 = vshll.u32 %v4091, 16
    %v4096 = vshrl.u32 %v4091, 16
    %vm4097 = vc.u32 %v4089, %v4093
    %v4098 = vsel %vm4097, 1, 0
    %v4099 = vadd.s32 %v4089, %v4093
    %v4100 = vadd.s32 %v4092, %v4098
    %vm4101 = vc.u32 %v4099, %v4095
    %v4102 = vsel %vm4101, 1, 0
    %v4103 = vadd.s32 %v4099, %v4095
    %v4104 = vadd.s32 %v4100, %v4102
    %v4105 = vadd.s32 %v4104, %v4094
    %v4106 = vadd.s32 %v4105, %v4096
    %v4107 = vand.u32 %v4084, 65535
    %v4108 = vshrl.u32 %v4084, 16
    %v4109 = vand.u32 %v4079, 65535
    %v4110 = vshrl.u32 %v4079, 16
    %v4111 = vmul.u32 %v4107, %v4109
    %v4112 = vmul.u32 %v4107, %v4110
    %v4113 = vmul.u32 %v4108, %v4109
    %v4114 = vmul.u32 %v4108, %v4110
    %v4115 = vshll.u32 %v4112, 16
    %v4116 = vshrl.u32 %v4112, 16
    %v4117 = vshll.u32 %v4113, 16
    %v4118 = vshrl.u32 %v4113, 16
    %vm4119 = vc.u32 %v4111, %v4115
    %v4120 = vsel %vm4119, 1, 0
    %v4121 = vadd.s32 %v4111, %v4115
    %v4122 = vadd.s32 %v4114, %v4120
    %vm4123 = vc.u32 %v4121, %v4117
    %v4124 = vsel %vm4123, 1, 0
    %v4125 = vadd.s32 %v4121, %v4117
    %v4126 = vadd.s32 %v4122, %v4124
    %v4127 = vadd.s32 %v4126, %v4116
    %v4128 = vadd.s32 %v4127, %v4118
    %v4129 = vmul.u32 %v4084, %v4075
    %v4130 = vadd.s32 %v4106, %v4125
    %vm4131 = vc.u32 %v4106, %v4125
    %v4132 = vadd.s32 %v4128, 1
    %v4133 = vsel %vm4131, %v4132, %v4128
    %v4134 = vadd.s32 %v4129, %v4133
    %v4135 = vadd.s32 %v4134, 536870912
    %v4136 = vshrl.u32 %v4135, 30
    %v4137 = vshll.u32 %v4136, 30
    %v4138 = vsub.s32 %v4134, %v4137
    %vm4139 = vcmp.lt.s32.totalorder %v4138, 0
    %v4140 = vsub.s32 0, %v4138
    %v4141 = vsel %vm4139, %v4140, %v4138
    %v4142 = vclz %v4141
    %v4143 = vsub.s32 %v4142, 2
    %vm4144 = vcmp.gt.s32.totalorder 0, %v4143
    %v4145 = vsel %vm4144, 0, %v4143
    %v4146 = vsub.s32 32, %v4145
    %v4147 = vshll.u32 %v4138, %v4145
    %v4148 = vshrl.u32 %v4130, %v4146
    %v4149 = vor.u32 %v4147, %v4148
    %v4150 = vsub.s32 4294967266, %v4145
    %v4151 = vadd.s32 %v4150, 127
    %v4152 = vshll.u32 %v4151, 23
    %v4153 = vor.u32 4788187, %v4152
    %v4154 = vand.u32 2147483647, %v4153
    %v4156 = vcvt.s32.f32 %v4149
    %v4157 = vmul.f32 %v4156, %v4154
    %v4158 = vxor.u32 %v4157, 2147483648
    %v4159 = vsel %vm4038, %v4158, %v4157
    %v4160 = vsub.s32 4, %v4136
    %v4161 = vsel %vm4038, %v4160, %v4136
    %v4162 = vsel %vm4037, %v4035, %v4159
    %v4163 = vsel %vm4037, 0, %v4161
    %v4164 = vmul.f32 %v4162, %v4162
    %v4165 = vmul.f32 %v4164, -0.001358992
    %v4166 = vadd.f32 %v4165, 0.041655596
    %v4167 = vmul.f32 %v4164, %v4166
    %v4168 = vadd.f32 %v4167, -0.4999988
    %v4169 = vmul.f32 %v4164, %v4168
    %v4170 = vadd.f32 1.0, %v4169
    %v4171 = vmul.f32 %v4162, %v4162
    %v4172 = vmul.f32 %v4171, -0.00019511016
    %v4173 = vadd.f32 %v4172, 0.008332121
    %v4174 = vmul.f32 %v4171, %v4173
    %v4175 = vadd.f32 %v4174, -0.16666654
    %v4176 = vmul.f32 %v4171, %v4175
    %v4177 = vadd.f32 %v4176, 1.0
    %v4178 = vmul.f32 %v4177, %v4162
    %vm4179 = vweird.f32 %v4035
    %v4180 = vand.u32 %v4163, 3
    %vm4181 = vcmp.lt.s32.totalorder %v4180, 2
    %vm4182 = vcmp.eq.s32.totalorder %v4180, 0
    %v4183 = vxor.u32 %v4178, 2147483648
    %v4184 = vsel %vm4182, %v4170, %v4183
    %vm4185 = vcmp.eq.s32.totalorder %v4180, 2
    %v4186 = vxor.u32 %v4170, 2147483648
    %v4187 = vsel %vm4185, %v4186, %v4178
    %v4188 = vsel %vm4181, %v4184, %v4187
    %v4189 = vsel %vm4179, nan, %v4188
    %v4190 = vand.u32 2147483647, %v4035
    %vm4191 = vcmp.le.f32.partialorder %v4190, 0.7853982
    %vm4192 = vcmp.lt.s32.totalorder %v4035, 0
    %v4193 = vand.u32 %v4035, 2139095040
    %v4194 = vshrl.u32 %v4193, 23
    %v4195 = vsub.s32 %v4194, 127
    %v4196 = vand.u32 2147483647, %v4035
    %v4197 = vand.u32 %v4196, 8388607
    %v4198 = vor.u32 %v4197, 8388608
    %v4199 = vsub.s32 0, %v4198
    %v4200 = vadd.s32 %v4195, 1
    %vm4201 = vcmp.gt.s32.totalorder %v4200, 0
    %v4202 = vsel %vm4201, %v4200, 0
    %v4203 = vshrl.u32 %v4202, 5
    %v4204 = vand.u32 %v4202, 31
    %v4205 = vsub.s32 32, %v4204
    %v4206 = vshrl.u32 683565275, %v4205
    %v4207 = vshll.u32 683565275, %v4204
    %v4208 = vshrl.u32 2475754826, %v4205
    %v4209 = vor.u32 %v4207, %v4208
    %v4210 = vshll.u32 2475754826, %v4204
    %v4211 = vshrl.u32 2131351028, %v4205
    %v4212 = vor.u32 %v4210, %v4211
    %v4213 = vshll.u32 2131351028, %v4204
    %v4214 = vshrl.u32 2102212464, %v4205
    %v4215 = vor.u32 %v4213, %v4214
    %v4216 = vshll.u32 2102212464, %v4204
    %v4217 = vshrl.u32 920167782, %v4205
    %v4218 = vor.u32 %v4216, %v4217
    %v4219 = vshll.u32 920167782, %v4204
    %v4220 = vshrl.u32 1326507024, %v4205
    %v4221 = vor.u32 %v4219, %v4220
    %vm4222 = vcmp.lt.s32.totalorder %v4203, 1
    %vm4223 = vcmp.lt.s32.totalorder %v4203, 2
    %vm4224 = vcmp.lt.s32.totalorder %v4203, 3
    %vm4225 = vcmp.lt.s32.totalorder %v4203, 4
    %v4226 = vsel %vm4222, %v4206, %v4209
    %v4227 = vsel %vm4225, %v4215, 2102212464
    %v4228 = vsel %vm4224, %v4212, %v4227
    %v4229 = vsel %vm4223, %v4226, %v4228
    %v4230 = vsel %vm4222, %v4209, %v4212
    %v4231 = vsel %vm4225, %v4218, 920167782
    %v4232 = vsel %vm4224, %v4215, %v4231
    %v4233 = vsel %vm4223, %v4230, %v4232
    %v4234 = vsel %vm4222, %v4212, %v4215
    %v4235 = vsel %vm4225, %v4221, 1326507024
    %v4236 = vsel %vm4224, %v4218, %v4235
    %v4237 = vsel %vm4223, %v4234, %v4236
    %v4238 = vshll.u32 %v4198, 8
    %v4239 = vand.u32 %v4238, 65535
    %v4240 = vshrl.u32 %v4238, 16
    %v4241 = vand.u32 %v4237, 65535
    %v4242 = vshrl.u32 %v4237, 16
    %v4243 = vmul.u32 %v4239, %v4241
    %v4244 = vmul.u32 %v4239, %v4242
    %v4245 = vmul.u32 %v4240, %v4241
    %v4246 = vmul.u32 %v4240, %v4242
    %v4247 = vshll.u32 %v4244, 16
    %v4248 = vshrl.u32 %v4244, 16
    %v4249 = vshll.u32 %v4245, 16
    %v4250 = vshrl.u32 %v4245, 16
    %vm4251 = vc.u32 %v4243, %v4247
    %v4252 = vsel %vm4251, 1, 0
    %v4253 = vadd.s32 %v4243, %v4247
    %v4254 = vadd.s32 %v4246, %v4252
    %vm4255 = vc.u32 %v4253, %v4249
    %v4256 = vsel %vm4255, 1, 0
    %v4257 = vadd.s32 %v4253, %v4249
    %v4258 = vadd.s32 %v4254, %v4256
    %v4259 = vadd.s32 %v4258, %v4248
    %v4260 = vadd.s32 %v4259, %v4250
    %v4261 = vand.u32 %v4238, 65535
    %v4262 = vshrl.u32 %v4238, 16
    %v4263 = vand.u32 %v4233, 65535
    %v4264 = vshrl.u32 %v4233, 16
    %v4265 = vmul.u32 %v4261, %v4263
    %v4266 = vmul.u32 %v4261, %v4264
    %v4267 = vmul.u32 %v4262, %v4263
    %v4268 = vmul.u32 %v4262, %v4264
    %v4269 = vshll.u32 %v4266, 16
    %v4270 = vshrl.u32 %v4266, 16
    %v4271 = vshll.u32 %v4267, 16
    %v4272 = vshrl.u32 %v4267, 16
    %vm4273 = vc.u32 %v4265, %v4269
    %v4274 = vsel %vm4273, 1, 0
    %v4275 = vadd.s32 %v4265, %v4269
    %v4276 = vadd.s32 %v4268, %v4274
    %vm4277 = vc.u32 %v4275, %v4271
    %v4278 = vsel %vm4277, 1, 0
    %v4279 = vadd.s32 %v4275, %v4271
    %v4280 = vadd.s32 %v4276, %v4278
    %v4281 = vadd.s32 %v4280, %v4270
    %v4282 = vadd.s32 %v4281, %v4272
    %v4283 = vmul.u32 %v4238, %v4229
    %v4284 = vadd.s32 %v4260, %v4279
    %vm4285 = vc.u32 %v4260, %v4279
    %v4286 = vadd.s32 %v4282, 1
    %v4287 = vsel %vm4285, %v4286, %v4282
    %v4288 = vadd.s32 %v4283, %v4287
    %v4289 = vadd.s32 %v4288, 536870912
    %v4290 = vshrl.u32 %v4289, 30
    %v4291 = vshll.u32 %v4290, 30
    %v4292 = vsub.s32 %v4288, %v4291
    %vm4293 = vcmp.lt.s32.totalorder %v4292, 0
    %v4294 = vsub.s32 0, %v4292
    %v4295 = vsel %vm4293, %v4294, %v4292
    %v4296 = vclz %v4295
    %v4297 = vsub.s32 %v4296, 2
    %vm4298 = vcmp.gt.s32.totalorder 0, %v4297
    %v4299 = vsel %vm4298, 0, %v4297
    %v4300 = vsub.s32 32, %v4299
    %v4301 = vshll.u32 %v4292, %v4299
    %v4302 = vshrl.u32 %v4284, %v4300
    %v4303 = vor.u32 %v4301, %v4302
    %v4304 = vsub.s32 4294967266, %v4299
    %v4305 = vadd.s32 %v4304, 127
    %v4306 = vshll.u32 %v4305, 23
    %v4307 = vor.u32 4788187, %v4306
    %v4308 = vand.u32 2147483647, %v4307
    %v4310 = vcvt.s32.f32 %v4303
    %v4311 = vmul.f32 %v4310, %v4308
    %v4312 = vxor.u32 %v4311, 2147483648
    %v4313 = vsel %vm4192, %v4312, %v4311
    %v4314 = vsub.s32 4, %v4290
    %v4315 = vsel %vm4192, %v4314, %v4290
    %v4316 = vsel %vm4191, %v4035, %v4313
    %v4317 = vsel %vm4191, 0, %v4315
    %v4318 = vmul.f32 %v4316, %v4316
    %v4319 = vmul.f32 %v4318, -0.001358992
    %v4320 = vadd.f32 %v4319, 0.041655596
    %v4321 = vmul.f32 %v4318, %v4320
    %v4322 = vadd.f32 %v4321, -0.4999988
    %v4323 = vmul.f32 %v4318, %v4322
    %v4324 = vadd.f32 1.0, %v4323
    %v4325 = vmul.f32 %v4316, %v4316
    %v4326 = vmul.f32 %v4325, -0.00019511016
    %v4327 = vadd.f32 %v4326, 0.008332121
    %v4328 = vmul.f32 %v4325, %v4327
    %v4329 = vadd.f32 %v4328, -0.16666654
    %v4330 = vmul.f32 %v4325, %v4329
    %v4331 = vadd.f32 %v4330, 1.0
    %v4332 = vmul.f32 %v4331, %v4316
    %vm4333 = vweird.f32 %v4035
    %v4334 = vadd.s32 %v4317, 3
    %v4335 = vand.u32 %v4334, 3
    %vm4336 = vcmp.lt.s32.totalorder %v4335, 2
    %vm4337 = vcmp.eq.s32.totalorder %v4335, 0
    %v4338 = vxor.u32 %v4332, 2147483648
    %v4339 = vsel %vm4337, %v4324, %v4338
    %vm4340 = vcmp.eq.s32.totalorder %v4335, 2
    %v4341 = vxor.u32 %v4324, 2147483648
    %v4342 = vsel %vm4340, %v4341, %v4332
    %v4343 = vsel %vm4336, %v4339, %v4342
    %v4344 = vsel %vm4333, nan, %v4343
    %v4345 = vmul.f32 %v4189, %v1789
    %v4346 = vmul.f32 %v4189, %v1790
    %v4347 = vmul.f32 %v4344, %v1793
    %v4348 = vmul.f32 %v4344, %v1794
    %v4349 = vsub.f32 %v4345, %v4347
    %v4350 = vsub.f32 %v4346, %v4348
    %s4351 = sld [smem:[#allocation2 + $0xb]]
    %v4352 = vstv %s4351
    %v4353 = vmul.f32 %v4352, 0.5
    %v4354 = vand.u32 2147483647, %v4353
    %vm4355 = vcmp.le.f32.partialorder %v4354, 0.7853982
    %vm4356 = vcmp.lt.s32.totalorder %v4353, 0
    %v4357 = vand.u32 %v4353, 2139095040
    %v4358 = vshrl.u32 %v4357, 23
    %v4359 = vsub.s32 %v4358, 127
    %v4360 = vand.u32 2147483647, %v4353
    %v4361 = vand.u32 %v4360, 8388607
    %v4362 = vor.u32 %v4361, 8388608
    %v4363 = vsub.s32 0, %v4362
    %v4364 = vadd.s32 %v4359, 1
    %vm4365 = vcmp.gt.s32.totalorder %v4364, 0
    %v4366 = vsel %vm4365, %v4364, 0
    %v4367 = vshrl.u32 %v4366, 5
    %v4368 = vand.u32 %v4366, 31
    %v4369 = vsub.s32 32, %v4368
    %v4370 = vshrl.u32 683565275, %v4369
    %v4371 = vshll.u32 683565275, %v4368
    %v4372 = vshrl.u32 2475754826, %v4369
    %v4373 = vor.u32 %v4371, %v4372
    %v4374 = vshll.u32 2475754826, %v4368
    %v4375 = vshrl.u32 2131351028, %v4369
    %v4376 = vor.u32 %v4374, %v4375
    %v4377 = vshll.u32 2131351028, %v4368
    %v4378 = vshrl.u32 2102212464, %v4369
    %v4379 = vor.u32 %v4377, %v4378
    %v4380 = vshll.u32 2102212464, %v4368
    %v4381 = vshrl.u32 920167782, %v4369
    %v4382 = vor.u32 %v4380, %v4381
    %v4383 = vshll.u32 920167782, %v4368
    %v4384 = vshrl.u32 1326507024, %v4369
    %v4385 = vor.u32 %v4383, %v4384
    %vm4386 = vcmp.lt.s32.totalorder %v4367, 1
    %vm4387 = vcmp.lt.s32.totalorder %v4367, 2
    %vm4388 = vcmp.lt.s32.totalorder %v4367, 3
    %vm4389 = vcmp.lt.s32.totalorder %v4367, 4
    %v4390 = vsel %vm4386, %v4370, %v4373
    %v4391 = vsel %vm4389, %v4379, 2102212464
    %v4392 = vsel %vm4388, %v4376, %v4391
    %v4393 = vsel %vm4387, %v4390, %v4392
    %v4394 = vsel %vm4386, %v4373, %v4376
    %v4395 = vsel %vm4389, %v4382, 920167782
    %v4396 = vsel %vm4388, %v4379, %v4395
    %v4397 = vsel %vm4387, %v4394, %v4396
    %v4398 = vsel %vm4386, %v4376, %v4379
    %v4399 = vsel %vm4389, %v4385, 1326507024
    %v4400 = vsel %vm4388, %v4382, %v4399
    %v4401 = vsel %vm4387, %v4398, %v4400
    %v4402 = vshll.u32 %v4362, 8
    %v4403 = vand.u32 %v4402, 65535
    %v4404 = vshrl.u32 %v4402, 16
    %v4405 = vand.u32 %v4401, 65535
    %v4406 = vshrl.u32 %v4401, 16
    %v4407 = vmul.u32 %v4403, %v4405
    %v4408 = vmul.u32 %v4403, %v4406
    %v4409 = vmul.u32 %v4404, %v4405
    %v4410 = vmul.u32 %v4404, %v4406
    %v4411 = vshll.u32 %v4408, 16
    %v4412 = vshrl.u32 %v4408, 16
    %v4413 = vshll.u32 %v4409, 16
    %v4414 = vshrl.u32 %v4409, 16
    %vm4415 = vc.u32 %v4407, %v4411
    %v4416 = vsel %vm4415, 1, 0
    %v4417 = vadd.s32 %v4407, %v4411
    %v4418 = vadd.s32 %v4410, %v4416
    %vm4419 = vc.u32 %v4417, %v4413
    %v4420 = vsel %vm4419, 1, 0
    %v4421 = vadd.s32 %v4417, %v4413
    %v4422 = vadd.s32 %v4418, %v4420
    %v4423 = vadd.s32 %v4422, %v4412
    %v4424 = vadd.s32 %v4423, %v4414
    %v4425 = vand.u32 %v4402, 65535
    %v4426 = vshrl.u32 %v4402, 16
    %v4427 = vand.u32 %v4397, 65535
    %v4428 = vshrl.u32 %v4397, 16
    %v4429 = vmul.u32 %v4425, %v4427
    %v4430 = vmul.u32 %v4425, %v4428
    %v4431 = vmul.u32 %v4426, %v4427
    %v4432 = vmul.u32 %v4426, %v4428
    %v4433 = vshll.u32 %v4430, 16
    %v4434 = vshrl.u32 %v4430, 16
    %v4435 = vshll.u32 %v4431, 16
    %v4436 = vshrl.u32 %v4431, 16
    %vm4437 = vc.u32 %v4429, %v4433
    %v4438 = vsel %vm4437, 1, 0
    %v4439 = vadd.s32 %v4429, %v4433
    %v4440 = vadd.s32 %v4432, %v4438
    %vm4441 = vc.u32 %v4439, %v4435
    %v4442 = vsel %vm4441, 1, 0
    %v4443 = vadd.s32 %v4439, %v4435
    %v4444 = vadd.s32 %v4440, %v4442
    %v4445 = vadd.s32 %v4444, %v4434
    %v4446 = vadd.s32 %v4445, %v4436
    %v4447 = vmul.u32 %v4402, %v4393
    %v4448 = vadd.s32 %v4424, %v4443
    %vm4449 = vc.u32 %v4424, %v4443
    %v4450 = vadd.s32 %v4446, 1
    %v4451 = vsel %vm4449, %v4450, %v4446
    %v4452 = vadd.s32 %v4447, %v4451
    %v4453 = vadd.s32 %v4452, 536870912
    %v4454 = vshrl.u32 %v4453, 30
    %v4455 = vshll.u32 %v4454, 30
    %v4456 = vsub.s32 %v4452, %v4455
    %vm4457 = vcmp.lt.s32.totalorder %v4456, 0
    %v4458 = vsub.s32 0, %v4456
    %v4459 = vsel %vm4457, %v4458, %v4456
    %v4460 = vclz %v4459
    %v4461 = vsub.s32 %v4460, 2
    %vm4462 = vcmp.gt.s32.totalorder 0, %v4461
    %v4463 = vsel %vm4462, 0, %v4461
    %v4464 = vsub.s32 32, %v4463
    %v4465 = vshll.u32 %v4456, %v4463
    %v4466 = vshrl.u32 %v4448, %v4464
    %v4467 = vor.u32 %v4465, %v4466
    %v4468 = vsub.s32 4294967266, %v4463
    %v4469 = vadd.s32 %v4468, 127
    %v4470 = vshll.u32 %v4469, 23
    %v4471 = vor.u32 4788187, %v4470
    %v4472 = vand.u32 2147483647, %v4471
    %v4474 = vcvt.s32.f32 %v4467
    %v4475 = vmul.f32 %v4474, %v4472
    %v4476 = vxor.u32 %v4475, 2147483648
    %v4477 = vsel %vm4356, %v4476, %v4475
    %v4478 = vsub.s32 4, %v4454
    %v4479 = vsel %vm4356, %v4478, %v4454
    %v4480 = vsel %vm4355, %v4353, %v4477
    %v4481 = vsel %vm4355, 0, %v4479
    %v4482 = vmul.f32 %v4480, %v4480
    %v4483 = vmul.f32 %v4482, -0.001358992
    %v4484 = vadd.f32 %v4483, 0.041655596
    %v4485 = vmul.f32 %v4482, %v4484
    %v4486 = vadd.f32 %v4485, -0.4999988
    %v4487 = vmul.f32 %v4482, %v4486
    %v4488 = vadd.f32 1.0, %v4487
    %v4489 = vmul.f32 %v4480, %v4480
    %v4490 = vmul.f32 %v4489, -0.00019511016
    %v4491 = vadd.f32 %v4490, 0.008332121
    %v4492 = vmul.f32 %v4489, %v4491
    %v4493 = vadd.f32 %v4492, -0.16666654
    %v4494 = vmul.f32 %v4489, %v4493
    %v4495 = vadd.f32 %v4494, 1.0
    %v4496 = vmul.f32 %v4495, %v4480
    %vm4497 = vweird.f32 %v4353
    %v4498 = vand.u32 %v4481, 3
    %vm4499 = vcmp.lt.s32.totalorder %v4498, 2
    %vm4500 = vcmp.eq.s32.totalorder %v4498, 0
    %v4501 = vxor.u32 %v4496, 2147483648
    %v4502 = vsel %vm4500, %v4488, %v4501
    %vm4503 = vcmp.eq.s32.totalorder %v4498, 2
    %v4504 = vxor.u32 %v4488, 2147483648
    %v4505 = vsel %vm4503, %v4504, %v4496
    %v4506 = vsel %vm4499, %v4502, %v4505
    %v4507 = vsel %vm4497, nan, %v4506
    %v4508 = vand.u32 2147483647, %v4353
    %vm4509 = vcmp.le.f32.partialorder %v4508, 0.7853982
    %vm4510 = vcmp.lt.s32.totalorder %v4353, 0
    %v4511 = vand.u32 %v4353, 2139095040
    %v4512 = vshrl.u32 %v4511, 23
    %v4513 = vsub.s32 %v4512, 127
    %v4514 = vand.u32 2147483647, %v4353
    %v4515 = vand.u32 %v4514, 8388607
    %v4516 = vor.u32 %v4515, 8388608
    %v4517 = vsub.s32 0, %v4516
    %v4518 = vadd.s32 %v4513, 1
    %vm4519 = vcmp.gt.s32.totalorder %v4518, 0
    %v4520 = vsel %vm4519, %v4518, 0
    %v4521 = vshrl.u32 %v4520, 5
    %v4522 = vand.u32 %v4520, 31
    %v4523 = vsub.s32 32, %v4522
    %v4524 = vshrl.u32 683565275, %v4523
    %v4525 = vshll.u32 683565275, %v4522
    %v4526 = vshrl.u32 2475754826, %v4523
    %v4527 = vor.u32 %v4525, %v4526
    %v4528 = vshll.u32 2475754826, %v4522
    %v4529 = vshrl.u32 2131351028, %v4523
    %v4530 = vor.u32 %v4528, %v4529
    %v4531 = vshll.u32 2131351028, %v4522
    %v4532 = vshrl.u32 2102212464, %v4523
    %v4533 = vor.u32 %v4531, %v4532
    %v4534 = vshll.u32 2102212464, %v4522
    %v4535 = vshrl.u32 920167782, %v4523
    %v4536 = vor.u32 %v4534, %v4535
    %v4537 = vshll.u32 920167782, %v4522
    %v4538 = vshrl.u32 1326507024, %v4523
    %v4539 = vor.u32 %v4537, %v4538
    %vm4540 = vcmp.lt.s32.totalorder %v4521, 1
    %vm4541 = vcmp.lt.s32.totalorder %v4521, 2
    %vm4542 = vcmp.lt.s32.totalorder %v4521, 3
    %vm4543 = vcmp.lt.s32.totalorder %v4521, 4
    %v4544 = vsel %vm4540, %v4524, %v4527
    %v4545 = vsel %vm4543, %v4533, 2102212464
    %v4546 = vsel %vm4542, %v4530, %v4545
    %v4547 = vsel %vm4541, %v4544, %v4546
    %v4548 = vsel %vm4540, %v4527, %v4530
    %v4549 = vsel %vm4543, %v4536, 920167782
    %v4550 = vsel %vm4542, %v4533, %v4549
    %v4551 = vsel %vm4541, %v4548, %v4550
    %v4552 = vsel %vm4540, %v4530, %v4533
    %v4553 = vsel %vm4543, %v4539, 1326507024
    %v4554 = vsel %vm4542, %v4536, %v4553
    %v4555 = vsel %vm4541, %v4552, %v4554
    %v4556 = vshll.u32 %v4516, 8
    %v4557 = vand.u32 %v4556, 65535
    %v4558 = vshrl.u32 %v4556, 16
    %v4559 = vand.u32 %v4555, 65535
    %v4560 = vshrl.u32 %v4555, 16
    %v4561 = vmul.u32 %v4557, %v4559
    %v4562 = vmul.u32 %v4557, %v4560
    %v4563 = vmul.u32 %v4558, %v4559
    %v4564 = vmul.u32 %v4558, %v4560
    %v4565 = vshll.u32 %v4562, 16
    %v4566 = vshrl.u32 %v4562, 16
    %v4567 = vshll.u32 %v4563, 16
    %v4568 = vshrl.u32 %v4563, 16
    %vm4569 = vc.u32 %v4561, %v4565
    %v4570 = vsel %vm4569, 1, 0
    %v4571 = vadd.s32 %v4561, %v4565
    %v4572 = vadd.s32 %v4564, %v4570
    %vm4573 = vc.u32 %v4571, %v4567
    %v4574 = vsel %vm4573, 1, 0
    %v4575 = vadd.s32 %v4571, %v4567
    %v4576 = vadd.s32 %v4572, %v4574
    %v4577 = vadd.s32 %v4576, %v4566
    %v4578 = vadd.s32 %v4577, %v4568
    %v4579 = vand.u32 %v4556, 65535
    %v4580 = vshrl.u32 %v4556, 16
    %v4581 = vand.u32 %v4551, 65535
    %v4582 = vshrl.u32 %v4551, 16
    %v4583 = vmul.u32 %v4579, %v4581
    %v4584 = vmul.u32 %v4579, %v4582
    %v4585 = vmul.u32 %v4580, %v4581
    %v4586 = vmul.u32 %v4580, %v4582
    %v4587 = vshll.u32 %v4584, 16
    %v4588 = vshrl.u32 %v4584, 16
    %v4589 = vshll.u32 %v4585, 16
    %v4590 = vshrl.u32 %v4585, 16
    %vm4591 = vc.u32 %v4583, %v4587
    %v4592 = vsel %vm4591, 1, 0
    %v4593 = vadd.s32 %v4583, %v4587
    %v4594 = vadd.s32 %v4586, %v4592
    %vm4595 = vc.u32 %v4593, %v4589
    %v4596 = vsel %vm4595, 1, 0
    %v4597 = vadd.s32 %v4593, %v4589
    %v4598 = vadd.s32 %v4594, %v4596
    %v4599 = vadd.s32 %v4598, %v4588
    %v4600 = vadd.s32 %v4599, %v4590
    %v4601 = vmul.u32 %v4556, %v4547
    %v4602 = vadd.s32 %v4578, %v4597
    %vm4603 = vc.u32 %v4578, %v4597
    %v4604 = vadd.s32 %v4600, 1
    %v4605 = vsel %vm4603, %v4604, %v4600
    %v4606 = vadd.s32 %v4601, %v4605
    %v4607 = vadd.s32 %v4606, 536870912
    %v4608 = vshrl.u32 %v4607, 30
    %v4609 = vshll.u32 %v4608, 30
    %v4610 = vsub.s32 %v4606, %v4609
    %vm4611 = vcmp.lt.s32.totalorder %v4610, 0
    %v4612 = vsub.s32 0, %v4610
    %v4613 = vsel %vm4611, %v4612, %v4610
    %v4614 = vclz %v4613
    %v4615 = vsub.s32 %v4614, 2
    %vm4616 = vcmp.gt.s32.totalorder 0, %v4615
    %v4617 = vsel %vm4616, 0, %v4615
    %v4618 = vsub.s32 32, %v4617
    %v4619 = vshll.u32 %v4610, %v4617
    %v4620 = vshrl.u32 %v4602, %v4618
    %v4621 = vor.u32 %v4619, %v4620
    %v4622 = vsub.s32 4294967266, %v4617
    %v4623 = vadd.s32 %v4622, 127
    %v4624 = vshll.u32 %v4623, 23
    %v4625 = vor.u32 4788187, %v4624
    %v4626 = vand.u32 2147483647, %v4625
    %v4628 = vcvt.s32.f32 %v4621
    %v4629 = vmul.f32 %v4628, %v4626
    %v4630 = vxor.u32 %v4629, 2147483648
    %v4631 = vsel %vm4510, %v4630, %v4629
    %v4632 = vsub.s32 4, %v4608
    %v4633 = vsel %vm4510, %v4632, %v4608
    %v4634 = vsel %vm4509, %v4353, %v4631
    %v4635 = vsel %vm4509, 0, %v4633
    %v4636 = vmul.f32 %v4634, %v4634
    %v4637 = vmul.f32 %v4636, -0.001358992
    %v4638 = vadd.f32 %v4637, 0.041655596
    %v4639 = vmul.f32 %v4636, %v4638
    %v4640 = vadd.f32 %v4639, -0.4999988
    %v4641 = vmul.f32 %v4636, %v4640
    %v4642 = vadd.f32 1.0, %v4641
    %v4643 = vmul.f32 %v4634, %v4634
    %v4644 = vmul.f32 %v4643, -0.00019511016
    %v4645 = vadd.f32 %v4644, 0.008332121
    %v4646 = vmul.f32 %v4643, %v4645
    %v4647 = vadd.f32 %v4646, -0.16666654
    %v4648 = vmul.f32 %v4643, %v4647
    %v4649 = vadd.f32 %v4648, 1.0
    %v4650 = vmul.f32 %v4649, %v4634
    %vm4651 = vweird.f32 %v4353
    %v4652 = vadd.s32 %v4635, 3
    %v4653 = vand.u32 %v4652, 3
    %vm4654 = vcmp.lt.s32.totalorder %v4653, 2
    %vm4655 = vcmp.eq.s32.totalorder %v4653, 0
    %v4656 = vxor.u32 %v4650, 2147483648
    %v4657 = vsel %vm4655, %v4642, %v4656
    %vm4658 = vcmp.eq.s32.totalorder %v4653, 2
    %v4659 = vxor.u32 %v4642, 2147483648
    %v4660 = vsel %vm4658, %v4659, %v4650
    %v4661 = vsel %vm4654, %v4657, %v4660
    %v4662 = vsel %vm4651, nan, %v4661
    %v4663 = vmul.f32 %v4507, %v2749
    %v4664 = vmul.f32 %v4507, %v2750
    %v4665 = vmul.f32 %v4662, %v2753
    %v4666 = vmul.f32 %v4662, %v2754
    %v4667 = vsub.f32 %v4663, %v4665
    %v4668 = vsub.f32 %v4664, %v4666
    %s4669 = sld [smem:[#allocation2 + $0xd]]
    %v4670 = vstv %s4669
    %v4671 = vmul.f32 %v4670, 0.5
    %v4672 = vand.u32 2147483647, %v4671
    %vm4673 = vcmp.le.f32.partialorder %v4672, 0.7853982
    %vm4674 = vcmp.lt.s32.totalorder %v4671, 0
    %v4675 = vand.u32 %v4671, 2139095040
    %v4676 = vshrl.u32 %v4675, 23
    %v4677 = vsub.s32 %v4676, 127
    %v4678 = vand.u32 2147483647, %v4671
    %v4679 = vand.u32 %v4678, 8388607
    %v4680 = vor.u32 %v4679, 8388608
    %v4681 = vsub.s32 0, %v4680
    %v4682 = vadd.s32 %v4677, 1
    %vm4683 = vcmp.gt.s32.totalorder %v4682, 0
    %v4684 = vsel %vm4683, %v4682, 0
    %v4685 = vshrl.u32 %v4684, 5
    %v4686 = vand.u32 %v4684, 31
    %v4687 = vsub.s32 32, %v4686
    %v4688 = vshrl.u32 683565275, %v4687
    %v4689 = vshll.u32 683565275, %v4686
    %v4690 = vshrl.u32 2475754826, %v4687
    %v4691 = vor.u32 %v4689, %v4690
    %v4692 = vshll.u32 2475754826, %v4686
    %v4693 = vshrl.u32 2131351028, %v4687
    %v4694 = vor.u32 %v4692, %v4693
    %v4695 = vshll.u32 2131351028, %v4686
    %v4696 = vshrl.u32 2102212464, %v4687
    %v4697 = vor.u32 %v4695, %v4696
    %v4698 = vshll.u32 2102212464, %v4686
    %v4699 = vshrl.u32 920167782, %v4687
    %v4700 = vor.u32 %v4698, %v4699
    %v4701 = vshll.u32 920167782, %v4686
    %v4702 = vshrl.u32 1326507024, %v4687
    %v4703 = vor.u32 %v4701, %v4702
    %vm4704 = vcmp.lt.s32.totalorder %v4685, 1
    %vm4705 = vcmp.lt.s32.totalorder %v4685, 2
    %vm4706 = vcmp.lt.s32.totalorder %v4685, 3
    %vm4707 = vcmp.lt.s32.totalorder %v4685, 4
    %v4708 = vsel %vm4704, %v4688, %v4691
    %v4709 = vsel %vm4707, %v4697, 2102212464
    %v4710 = vsel %vm4706, %v4694, %v4709
    %v4711 = vsel %vm4705, %v4708, %v4710
    %v4712 = vsel %vm4704, %v4691, %v4694
    %v4713 = vsel %vm4707, %v4700, 920167782
    %v4714 = vsel %vm4706, %v4697, %v4713
    %v4715 = vsel %vm4705, %v4712, %v4714
    %v4716 = vsel %vm4704, %v4694, %v4697
    %v4717 = vsel %vm4707, %v4703, 1326507024
    %v4718 = vsel %vm4706, %v4700, %v4717
    %v4719 = vsel %vm4705, %v4716, %v4718
    %v4720 = vshll.u32 %v4680, 8
    %v4721 = vand.u32 %v4720, 65535
    %v4722 = vshrl.u32 %v4720, 16
    %v4723 = vand.u32 %v4719, 65535
    %v4724 = vshrl.u32 %v4719, 16
    %v4725 = vmul.u32 %v4721, %v4723
    %v4726 = vmul.u32 %v4721, %v4724
    %v4727 = vmul.u32 %v4722, %v4723
    %v4728 = vmul.u32 %v4722, %v4724
    %v4729 = vshll.u32 %v4726, 16
    %v4730 = vshrl.u32 %v4726, 16
    %v4731 = vshll.u32 %v4727, 16
    %v4732 = vshrl.u32 %v4727, 16
    %vm4733 = vc.u32 %v4725, %v4729
    %v4734 = vsel %vm4733, 1, 0
    %v4735 = vadd.s32 %v4725, %v4729
    %v4736 = vadd.s32 %v4728, %v4734
    %vm4737 = vc.u32 %v4735, %v4731
    %v4738 = vsel %vm4737, 1, 0
    %v4739 = vadd.s32 %v4735, %v4731
    %v4740 = vadd.s32 %v4736, %v4738
    %v4741 = vadd.s32 %v4740, %v4730
    %v4742 = vadd.s32 %v4741, %v4732
    %v4743 = vand.u32 %v4720, 65535
    %v4744 = vshrl.u32 %v4720, 16
    %v4745 = vand.u32 %v4715, 65535
    %v4746 = vshrl.u32 %v4715, 16
    %v4747 = vmul.u32 %v4743, %v4745
    %v4748 = vmul.u32 %v4743, %v4746
    %v4749 = vmul.u32 %v4744, %v4745
    %v4750 = vmul.u32 %v4744, %v4746
    %v4751 = vshll.u32 %v4748, 16
    %v4752 = vshrl.u32 %v4748, 16
    %v4753 = vshll.u32 %v4749, 16
    %v4754 = vshrl.u32 %v4749, 16
    %vm4755 = vc.u32 %v4747, %v4751
    %v4756 = vsel %vm4755, 1, 0
    %v4757 = vadd.s32 %v4747, %v4751
    %v4758 = vadd.s32 %v4750, %v4756
    %vm4759 = vc.u32 %v4757, %v4753
    %v4760 = vsel %vm4759, 1, 0
    %v4761 = vadd.s32 %v4757, %v4753
    %v4762 = vadd.s32 %v4758, %v4760
    %v4763 = vadd.s32 %v4762, %v4752
    %v4764 = vadd.s32 %v4763, %v4754
    %v4765 = vmul.u32 %v4720, %v4711
    %v4766 = vadd.s32 %v4742, %v4761
    %vm4767 = vc.u32 %v4742, %v4761
    %v4768 = vadd.s32 %v4764, 1
    %v4769 = vsel %vm4767, %v4768, %v4764
    %v4770 = vadd.s32 %v4765, %v4769
    %v4771 = vadd.s32 %v4770, 536870912
    %v4772 = vshrl.u32 %v4771, 30
    %v4773 = vshll.u32 %v4772, 30
    %v4774 = vsub.s32 %v4770, %v4773
    %vm4775 = vcmp.lt.s32.totalorder %v4774, 0
    %v4776 = vsub.s32 0, %v4774
    %v4777 = vsel %vm4775, %v4776, %v4774
    %v4778 = vclz %v4777
    %v4779 = vsub.s32 %v4778, 2
    %vm4780 = vcmp.gt.s32.totalorder 0, %v4779
    %v4781 = vsel %vm4780, 0, %v4779
    %v4782 = vsub.s32 32, %v4781
    %v4783 = vshll.u32 %v4774, %v4781
    %v4784 = vshrl.u32 %v4766, %v4782
    %v4785 = vor.u32 %v4783, %v4784
    %v4786 = vsub.s32 4294967266, %v4781
    %v4787 = vadd.s32 %v4786, 127
    %v4788 = vshll.u32 %v4787, 23
    %v4789 = vor.u32 4788187, %v4788
    %v4790 = vand.u32 2147483647, %v4789
    %v4792 = vcvt.s32.f32 %v4785
    %v4793 = vmul.f32 %v4792, %v4790
    %v4794 = vxor.u32 %v4793, 2147483648
    %v4795 = vsel %vm4674, %v4794, %v4793
    %v4796 = vsub.s32 4, %v4772
    %v4797 = vsel %vm4674, %v4796, %v4772
    %v4798 = vsel %vm4673, %v4671, %v4795
    %v4799 = vsel %vm4673, 0, %v4797
    %v4800 = vmul.f32 %v4798, %v4798
    %v4801 = vmul.f32 %v4800, -0.001358992
    %v4802 = vadd.f32 %v4801, 0.041655596
    %v4803 = vmul.f32 %v4800, %v4802
    %v4804 = vadd.f32 %v4803, -0.4999988
    %v4805 = vmul.f32 %v4800, %v4804
    %v4806 = vadd.f32 1.0, %v4805
    %v4807 = vmul.f32 %v4798, %v4798
    %v4808 = vmul.f32 %v4807, -0.00019511016
    %v4809 = vadd.f32 %v4808, 0.008332121
    %v4810 = vmul.f32 %v4807, %v4809
    %v4811 = vadd.f32 %v4810, -0.16666654
    %v4812 = vmul.f32 %v4807, %v4811
    %v4813 = vadd.f32 %v4812, 1.0
    %v4814 = vmul.f32 %v4813, %v4798
    %vm4815 = vweird.f32 %v4671
    %v4816 = vand.u32 %v4799, 3
    %vm4817 = vcmp.lt.s32.totalorder %v4816, 2
    %vm4818 = vcmp.eq.s32.totalorder %v4816, 0
    %v4819 = vxor.u32 %v4814, 2147483648
    %v4820 = vsel %vm4818, %v4806, %v4819
    %vm4821 = vcmp.eq.s32.totalorder %v4816, 2
    %v4822 = vxor.u32 %v4806, 2147483648
    %v4823 = vsel %vm4821, %v4822, %v4814
    %v4824 = vsel %vm4817, %v4820, %v4823
    %v4825 = vsel %vm4815, nan, %v4824
    %v4826 = vand.u32 2147483647, %v4671
    %vm4827 = vcmp.le.f32.partialorder %v4826, 0.7853982
    %vm4828 = vcmp.lt.s32.totalorder %v4671, 0
    %v4829 = vand.u32 %v4671, 2139095040
    %v4830 = vshrl.u32 %v4829, 23
    %v4831 = vsub.s32 %v4830, 127
    %v4832 = vand.u32 2147483647, %v4671
    %v4833 = vand.u32 %v4832, 8388607
    %v4834 = vor.u32 %v4833, 8388608
    %v4835 = vsub.s32 0, %v4834
    %v4836 = vadd.s32 %v4831, 1
    %vm4837 = vcmp.gt.s32.totalorder %v4836, 0
    %v4838 = vsel %vm4837, %v4836, 0
    %v4839 = vshrl.u32 %v4838, 5
    %v4840 = vand.u32 %v4838, 31
    %v4841 = vsub.s32 32, %v4840
    %v4842 = vshrl.u32 683565275, %v4841
    %v4843 = vshll.u32 683565275, %v4840
    %v4844 = vshrl.u32 2475754826, %v4841
    %v4845 = vor.u32 %v4843, %v4844
    %v4846 = vshll.u32 2475754826, %v4840
    %v4847 = vshrl.u32 2131351028, %v4841
    %v4848 = vor.u32 %v4846, %v4847
    %v4849 = vshll.u32 2131351028, %v4840
    %v4850 = vshrl.u32 2102212464, %v4841
    %v4851 = vor.u32 %v4849, %v4850
    %v4852 = vshll.u32 2102212464, %v4840
    %v4853 = vshrl.u32 920167782, %v4841
    %v4854 = vor.u32 %v4852, %v4853
    %v4855 = vshll.u32 920167782, %v4840
    %v4856 = vshrl.u32 1326507024, %v4841
    %v4857 = vor.u32 %v4855, %v4856
    %vm4858 = vcmp.lt.s32.totalorder %v4839, 1
    %vm4859 = vcmp.lt.s32.totalorder %v4839, 2
    %vm4860 = vcmp.lt.s32.totalorder %v4839, 3
    %vm4861 = vcmp.lt.s32.totalorder %v4839, 4
    %v4862 = vsel %vm4858, %v4842, %v4845
    %v4863 = vsel %vm4861, %v4851, 2102212464
    %v4864 = vsel %vm4860, %v4848, %v4863
    %v4865 = vsel %vm4859, %v4862, %v4864
    %v4866 = vsel %vm4858, %v4845, %v4848
    %v4867 = vsel %vm4861, %v4854, 920167782
    %v4868 = vsel %vm4860, %v4851, %v4867
    %v4869 = vsel %vm4859, %v4866, %v4868
    %v4870 = vsel %vm4858, %v4848, %v4851
    %v4871 = vsel %vm4861, %v4857, 1326507024
    %v4872 = vsel %vm4860, %v4854, %v4871
    %v4873 = vsel %vm4859, %v4870, %v4872
    %v4874 = vshll.u32 %v4834, 8
    %v4875 = vand.u32 %v4874, 65535
    %v4876 = vshrl.u32 %v4874, 16
    %v4877 = vand.u32 %v4873, 65535
    %v4878 = vshrl.u32 %v4873, 16
    %v4879 = vmul.u32 %v4875, %v4877
    %v4880 = vmul.u32 %v4875, %v4878
    %v4881 = vmul.u32 %v4876, %v4877
    %v4882 = vmul.u32 %v4876, %v4878
    %v4883 = vshll.u32 %v4880, 16
    %v4884 = vshrl.u32 %v4880, 16
    %v4885 = vshll.u32 %v4881, 16
    %v4886 = vshrl.u32 %v4881, 16
    %vm4887 = vc.u32 %v4879, %v4883
    %v4888 = vsel %vm4887, 1, 0
    %v4889 = vadd.s32 %v4879, %v4883
    %v4890 = vadd.s32 %v4882, %v4888
    %vm4891 = vc.u32 %v4889, %v4885
    %v4892 = vsel %vm4891, 1, 0
    %v4893 = vadd.s32 %v4889, %v4885
    %v4894 = vadd.s32 %v4890, %v4892
    %v4895 = vadd.s32 %v4894, %v4884
    %v4896 = vadd.s32 %v4895, %v4886
    %v4897 = vand.u32 %v4874, 65535
    %v4898 = vshrl.u32 %v4874, 16
    %v4899 = vand.u32 %v4869, 65535
    %v4900 = vshrl.u32 %v4869, 16
    %v4901 = vmul.u32 %v4897, %v4899
    %v4902 = vmul.u32 %v4897, %v4900
    %v4903 = vmul.u32 %v4898, %v4899
    %v4904 = vmul.u32 %v4898, %v4900
    %v4905 = vshll.u32 %v4902, 16
    %v4906 = vshrl.u32 %v4902, 16
    %v4907 = vshll.u32 %v4903, 16
    %v4908 = vshrl.u32 %v4903, 16
    %vm4909 = vc.u32 %v4901, %v4905
    %v4910 = vsel %vm4909, 1, 0
    %v4911 = vadd.s32 %v4901, %v4905
    %v4912 = vadd.s32 %v4904, %v4910
    %vm4913 = vc.u32 %v4911, %v4907
    %v4914 = vsel %vm4913, 1, 0
    %v4915 = vadd.s32 %v4911, %v4907
    %v4916 = vadd.s32 %v4912, %v4914
    %v4917 = vadd.s32 %v4916, %v4906
    %v4918 = vadd.s32 %v4917, %v4908
    %v4919 = vmul.u32 %v4874, %v4865
    %v4920 = vadd.s32 %v4896, %v4915
    %vm4921 = vc.u32 %v4896, %v4915
    %v4922 = vadd.s32 %v4918, 1
    %v4923 = vsel %vm4921, %v4922, %v4918
    %v4924 = vadd.s32 %v4919, %v4923
    %v4925 = vadd.s32 %v4924, 536870912
    %v4926 = vshrl.u32 %v4925, 30
    %v4927 = vshll.u32 %v4926, 30
    %v4928 = vsub.s32 %v4924, %v4927
    %vm4929 = vcmp.lt.s32.totalorder %v4928, 0
    %v4930 = vsub.s32 0, %v4928
    %v4931 = vsel %vm4929, %v4930, %v4928
    %v4932 = vclz %v4931
    %v4933 = vsub.s32 %v4932, 2
    %vm4934 = vcmp.gt.s32.totalorder 0, %v4933
    %v4935 = vsel %vm4934, 0, %v4933
    %v4936 = vsub.s32 32, %v4935
    %v4937 = vshll.u32 %v4928, %v4935
    %v4938 = vshrl.u32 %v4920, %v4936
    %v4939 = vor.u32 %v4937, %v4938
    %v4940 = vsub.s32 4294967266, %v4935
    %v4941 = vadd.s32 %v4940, 127
    %v4942 = vshll.u32 %v4941, 23
    %v4943 = vor.u32 4788187, %v4942
    %v4944 = vand.u32 2147483647, %v4943
    %v4946 = vcvt.s32.f32 %v4939
    %v4947 = vmul.f32 %v4946, %v4944
    %v4948 = vxor.u32 %v4947, 2147483648
    %v4949 = vsel %vm4828, %v4948, %v4947
    %v4950 = vsub.s32 4, %v4926
    %v4951 = vsel %vm4828, %v4950, %v4926
    %v4952 = vsel %vm4827, %v4671, %v4949
    %v4953 = vsel %vm4827, 0, %v4951
    %v4954 = vmul.f32 %v4952, %v4952
    %v4955 = vmul.f32 %v4954, -0.001358992
    %v4956 = vadd.f32 %v4955, 0.041655596
    %v4957 = vmul.f32 %v4954, %v4956
    %v4958 = vadd.f32 %v4957, -0.4999988
    %v4959 = vmul.f32 %v4954, %v4958
    %v4960 = vadd.f32 1.0, %v4959
    %v4961 = vmul.f32 %v4952, %v4952
    %v4962 = vmul.f32 %v4961, -0.00019511016
    %v4963 = vadd.f32 %v4962, 0.008332121
    %v4964 = vmul.f32 %v4961, %v4963
    %v4965 = vadd.f32 %v4964, -0.16666654
    %v4966 = vmul.f32 %v4961, %v4965
    %v4967 = vadd.f32 %v4966, 1.0
    %v4968 = vmul.f32 %v4967, %v4952
    %vm4969 = vweird.f32 %v4671
    %v4970 = vadd.s32 %v4953, 3
    %v4971 = vand.u32 %v4970, 3
    %vm4972 = vcmp.lt.s32.totalorder %v4971, 2
    %vm4973 = vcmp.eq.s32.totalorder %v4971, 0
    %v4974 = vxor.u32 %v4968, 2147483648
    %v4975 = vsel %vm4973, %v4960, %v4974
    %vm4976 = vcmp.eq.s32.totalorder %v4971, 2
    %v4977 = vxor.u32 %v4960, 2147483648
    %v4978 = vsel %vm4976, %v4977, %v4968
    %v4979 = vsel %vm4972, %v4975, %v4978
    %v4980 = vsel %vm4969, nan, %v4979
    %v4981 = vmul.f32 %v4825, %v2749
    %v4982 = vmul.f32 %v4825, %v2750
    %v4983 = vmul.f32 %v4980, %v3073
    %v4984 = vmul.f32 %v4980, %v3074
    %v4985 = vadd.f32 %v4981, %v4983
    %v4986 = vadd.f32 %v4982, %v4984
    %s4987 = sld [smem:[#allocation2 + $0xf]]
    %v4988 = vstv %s4987
    %v4989 = vmul.f32 %v4988, 0.5
    %v4990 = vand.u32 2147483647, %v4989
    %vm4991 = vcmp.le.f32.partialorder %v4990, 0.7853982
    %vm4992 = vcmp.lt.s32.totalorder %v4989, 0
    %v4993 = vand.u32 %v4989, 2139095040
    %v4994 = vshrl.u32 %v4993, 23
    %v4995 = vsub.s32 %v4994, 127
    %v4996 = vand.u32 2147483647, %v4989
    %v4997 = vand.u32 %v4996, 8388607
    %v4998 = vor.u32 %v4997, 8388608
    %v4999 = vsub.s32 0, %v4998
    %v5000 = vadd.s32 %v4995, 1
    %vm5001 = vcmp.gt.s32.totalorder %v5000, 0
    %v5002 = vsel %vm5001, %v5000, 0
    %v5003 = vshrl.u32 %v5002, 5
    %v5004 = vand.u32 %v5002, 31
    %v5005 = vsub.s32 32, %v5004
    %v5006 = vshrl.u32 683565275, %v5005
    %v5007 = vshll.u32 683565275, %v5004
    %v5008 = vshrl.u32 2475754826, %v5005
    %v5009 = vor.u32 %v5007, %v5008
    %v5010 = vshll.u32 2475754826, %v5004
    %v5011 = vshrl.u32 2131351028, %v5005
    %v5012 = vor.u32 %v5010, %v5011
    %v5013 = vshll.u32 2131351028, %v5004
    %v5014 = vshrl.u32 2102212464, %v5005
    %v5015 = vor.u32 %v5013, %v5014
    %v5016 = vshll.u32 2102212464, %v5004
    %v5017 = vshrl.u32 920167782, %v5005
    %v5018 = vor.u32 %v5016, %v5017
    %v5019 = vshll.u32 920167782, %v5004
    %v5020 = vshrl.u32 1326507024, %v5005
    %v5021 = vor.u32 %v5019, %v5020
    %vm5022 = vcmp.lt.s32.totalorder %v5003, 1
    %vm5023 = vcmp.lt.s32.totalorder %v5003, 2
    %vm5024 = vcmp.lt.s32.totalorder %v5003, 3
    %vm5025 = vcmp.lt.s32.totalorder %v5003, 4
    %v5026 = vsel %vm5022, %v5006, %v5009
    %v5027 = vsel %vm5025, %v5015, 2102212464
    %v5028 = vsel %vm5024, %v5012, %v5027
    %v5029 = vsel %vm5023, %v5026, %v5028
    %v5030 = vsel %vm5022, %v5009, %v5012
    %v5031 = vsel %vm5025, %v5018, 920167782
    %v5032 = vsel %vm5024, %v5015, %v5031
    %v5033 = vsel %vm5023, %v5030, %v5032
    %v5034 = vsel %vm5022, %v5012, %v5015
    %v5035 = vsel %vm5025, %v5021, 1326507024
    %v5036 = vsel %vm5024, %v5018, %v5035
    %v5037 = vsel %vm5023, %v5034, %v5036
    %v5038 = vshll.u32 %v4998, 8
    %v5039 = vand.u32 %v5038, 65535
    %v5040 = vshrl.u32 %v5038, 16
    %v5041 = vand.u32 %v5037, 65535
    %v5042 = vshrl.u32 %v5037, 16
    %v5043 = vmul.u32 %v5039, %v5041
    %v5044 = vmul.u32 %v5039, %v5042
    %v5045 = vmul.u32 %v5040, %v5041
    %v5046 = vmul.u32 %v5040, %v5042
    %v5047 = vshll.u32 %v5044, 16
    %v5048 = vshrl.u32 %v5044, 16
    %v5049 = vshll.u32 %v5045, 16
    %v5050 = vshrl.u32 %v5045, 16
    %vm5051 = vc.u32 %v5043, %v5047
    %v5052 = vsel %vm5051, 1, 0
    %v5053 = vadd.s32 %v5043, %v5047
    %v5054 = vadd.s32 %v5046, %v5052
    %vm5055 = vc.u32 %v5053, %v5049
    %v5056 = vsel %vm5055, 1, 0
    %v5057 = vadd.s32 %v5053, %v5049
    %v5058 = vadd.s32 %v5054, %v5056
    %v5059 = vadd.s32 %v5058, %v5048
    %v5060 = vadd.s32 %v5059, %v5050
    %v5061 = vand.u32 %v5038, 65535
    %v5062 = vshrl.u32 %v5038, 16
    %v5063 = vand.u32 %v5033, 65535
    %v5064 = vshrl.u32 %v5033, 16
    %v5065 = vmul.u32 %v5061, %v5063
    %v5066 = vmul.u32 %v5061, %v5064
    %v5067 = vmul.u32 %v5062, %v5063
    %v5068 = vmul.u32 %v5062, %v5064
    %v5069 = vshll.u32 %v5066, 16
    %v5070 = vshrl.u32 %v5066, 16
    %v5071 = vshll.u32 %v5067, 16
    %v5072 = vshrl.u32 %v5067, 16
    %vm5073 = vc.u32 %v5065, %v5069
    %v5074 = vsel %vm5073, 1, 0
    %v5075 = vadd.s32 %v5065, %v5069
    %v5076 = vadd.s32 %v5068, %v5074
    %vm5077 = vc.u32 %v5075, %v5071
    %v5078 = vsel %vm5077, 1, 0
    %v5079 = vadd.s32 %v5075, %v5071
    %v5080 = vadd.s32 %v5076, %v5078
    %v5081 = vadd.s32 %v5080, %v5070
    %v5082 = vadd.s32 %v5081, %v5072
    %v5083 = vmul.u32 %v5038, %v5029
    %v5084 = vadd.s32 %v5060, %v5079
    %vm5085 = vc.u32 %v5060, %v5079
    %v5086 = vadd.s32 %v5082, 1
    %v5087 = vsel %vm5085, %v5086, %v5082
    %v5088 = vadd.s32 %v5083, %v5087
    %v5089 = vadd.s32 %v5088, 536870912
    %v5090 = vshrl.u32 %v5089, 30
    %v5091 = vshll.u32 %v5090, 30
    %v5092 = vsub.s32 %v5088, %v5091
    %vm5093 = vcmp.lt.s32.totalorder %v5092, 0
    %v5094 = vsub.s32 0, %v5092
    %v5095 = vsel %vm5093, %v5094, %v5092
    %v5096 = vclz %v5095
    %v5097 = vsub.s32 %v5096, 2
    %vm5098 = vcmp.gt.s32.totalorder 0, %v5097
    %v5099 = vsel %vm5098, 0, %v5097
    %v5100 = vsub.s32 32, %v5099
    %v5101 = vshll.u32 %v5092, %v5099
    %v5102 = vshrl.u32 %v5084, %v5100
    %v5103 = vor.u32 %v5101, %v5102
    %v5104 = vsub.s32 4294967266, %v5099
    %v5105 = vadd.s32 %v5104, 127
    %v5106 = vshll.u32 %v5105, 23
    %v5107 = vor.u32 4788187, %v5106
    %v5108 = vand.u32 2147483647, %v5107
    %v5110 = vcvt.s32.f32 %v5103
    %v5111 = vmul.f32 %v5110, %v5108
    %v5112 = vxor.u32 %v5111, 2147483648
    %v5113 = vsel %vm4992, %v5112, %v5111
    %v5114 = vsub.s32 4, %v5090
    %v5115 = vsel %vm4992, %v5114, %v5090
    %v5116 = vsel %vm4991, %v4989, %v5113
    %v5117 = vsel %vm4991, 0, %v5115
    %v5118 = vmul.f32 %v5116, %v5116
    %v5119 = vmul.f32 %v5118, -0.001358992
    %v5120 = vadd.f32 %v5119, 0.041655596
    %v5121 = vmul.f32 %v5118, %v5120
    %v5122 = vadd.f32 %v5121, -0.4999988
    %v5123 = vmul.f32 %v5118, %v5122
    %v5124 = vadd.f32 1.0, %v5123
    %v5125 = vmul.f32 %v5116, %v5116
    %v5126 = vmul.f32 %v5125, -0.00019511016
    %v5127 = vadd.f32 %v5126, 0.008332121
    %v5128 = vmul.f32 %v5125, %v5127
    %v5129 = vadd.f32 %v5128, -0.16666654
    %v5130 = vmul.f32 %v5125, %v5129
    %v5131 = vadd.f32 %v5130, 1.0
    %v5132 = vmul.f32 %v5131, %v5116
    %vm5133 = vweird.f32 %v4989
    %v5134 = vand.u32 %v5117, 3
    %vm5135 = vcmp.lt.s32.totalorder %v5134, 2
    %vm5136 = vcmp.eq.s32.totalorder %v5134, 0
    %v5137 = vxor.u32 %v5132, 2147483648
    %v5138 = vsel %vm5136, %v5124, %v5137
    %vm5139 = vcmp.eq.s32.totalorder %v5134, 2
    %v5140 = vxor.u32 %v5124, 2147483648
    %v5141 = vsel %vm5139, %v5140, %v5132
    %v5142 = vsel %vm5135, %v5138, %v5141
    %v5143 = vsel %vm5133, nan, %v5142
    %v5144 = vand.u32 2147483647, %v4989
    %vm5145 = vcmp.le.f32.partialorder %v5144, 0.7853982
    %vm5146 = vcmp.lt.s32.totalorder %v4989, 0
    %v5147 = vand.u32 %v4989, 2139095040
    %v5148 = vshrl.u32 %v5147, 23
    %v5149 = vsub.s32 %v5148, 127
    %v5150 = vand.u32 2147483647, %v4989
    %v5151 = vand.u32 %v5150, 8388607
    %v5152 = vor.u32 %v5151, 8388608
    %v5153 = vsub.s32 0, %v5152
    %v5154 = vadd.s32 %v5149, 1
    %vm5155 = vcmp.gt.s32.totalorder %v5154, 0
    %v5156 = vsel %vm5155, %v5154, 0
    %v5157 = vshrl.u32 %v5156, 5
    %v5158 = vand.u32 %v5156, 31
    %v5159 = vsub.s32 32, %v5158
    %v5160 = vshrl.u32 683565275, %v5159
    %v5161 = vshll.u32 683565275, %v5158
    %v5162 = vshrl.u32 2475754826, %v5159
    %v5163 = vor.u32 %v5161, %v5162
    %v5164 = vshll.u32 2475754826, %v5158
    %v5165 = vshrl.u32 2131351028, %v5159
    %v5166 = vor.u32 %v5164, %v5165
    %v5167 = vshll.u32 2131351028, %v5158
    %v5168 = vshrl.u32 2102212464, %v5159
    %v5169 = vor.u32 %v5167, %v5168
    %v5170 = vshll.u32 2102212464, %v5158
    %v5171 = vshrl.u32 920167782, %v5159
    %v5172 = vor.u32 %v5170, %v5171
    %v5173 = vshll.u32 920167782, %v5158
    %v5174 = vshrl.u32 1326507024, %v5159
    %v5175 = vor.u32 %v5173, %v5174
    %vm5176 = vcmp.lt.s32.totalorder %v5157, 1
    %vm5177 = vcmp.lt.s32.totalorder %v5157, 2
    %vm5178 = vcmp.lt.s32.totalorder %v5157, 3
    %vm5179 = vcmp.lt.s32.totalorder %v5157, 4
    %v5180 = vsel %vm5176, %v5160, %v5163
    %v5181 = vsel %vm5179, %v5169, 2102212464
    %v5182 = vsel %vm5178, %v5166, %v5181
    %v5183 = vsel %vm5177, %v5180, %v5182
    %v5184 = vsel %vm5176, %v5163, %v5166
    %v5185 = vsel %vm5179, %v5172, 920167782
    %v5186 = vsel %vm5178, %v5169, %v5185
    %v5187 = vsel %vm5177, %v5184, %v5186
    %v5188 = vsel %vm5176, %v5166, %v5169
    %v5189 = vsel %vm5179, %v5175, 1326507024
    %v5190 = vsel %vm5178, %v5172, %v5189
    %v5191 = vsel %vm5177, %v5188, %v5190
    %v5192 = vshll.u32 %v5152, 8
    %v5193 = vand.u32 %v5192, 65535
    %v5194 = vshrl.u32 %v5192, 16
    %v5195 = vand.u32 %v5191, 65535
    %v5196 = vshrl.u32 %v5191, 16
    %v5197 = vmul.u32 %v5193, %v5195
    %v5198 = vmul.u32 %v5193, %v5196
    %v5199 = vmul.u32 %v5194, %v5195
    %v5200 = vmul.u32 %v5194, %v5196
    %v5201 = vshll.u32 %v5198, 16
    %v5202 = vshrl.u32 %v5198, 16
    %v5203 = vshll.u32 %v5199, 16
    %v5204 = vshrl.u32 %v5199, 16
    %vm5205 = vc.u32 %v5197, %v5201
    %v5206 = vsel %vm5205, 1, 0
    %v5207 = vadd.s32 %v5197, %v5201
    %v5208 = vadd.s32 %v5200, %v5206
    %vm5209 = vc.u32 %v5207, %v5203
    %v5210 = vsel %vm5209, 1, 0
    %v5211 = vadd.s32 %v5207, %v5203
    %v5212 = vadd.s32 %v5208, %v5210
    %v5213 = vadd.s32 %v5212, %v5202
    %v5214 = vadd.s32 %v5213, %v5204
    %v5215 = vand.u32 %v5192, 65535
    %v5216 = vshrl.u32 %v5192, 16
    %v5217 = vand.u32 %v5187, 65535
    %v5218 = vshrl.u32 %v5187, 16
    %v5219 = vmul.u32 %v5215, %v5217
    %v5220 = vmul.u32 %v5215, %v5218
    %v5221 = vmul.u32 %v5216, %v5217
    %v5222 = vmul.u32 %v5216, %v5218
    %v5223 = vshll.u32 %v5220, 16
    %v5224 = vshrl.u32 %v5220, 16
    %v5225 = vshll.u32 %v5221, 16
    %v5226 = vshrl.u32 %v5221, 16
    %vm5227 = vc.u32 %v5219, %v5223
    %v5228 = vsel %vm5227, 1, 0
    %v5229 = vadd.s32 %v5219, %v5223
    %v5230 = vadd.s32 %v5222, %v5228
    %vm5231 = vc.u32 %v5229, %v5225
    %v5232 = vsel %vm5231, 1, 0
    %v5233 = vadd.s32 %v5229, %v5225
    %v5234 = vadd.s32 %v5230, %v5232
    %v5235 = vadd.s32 %v5234, %v5224
    %v5236 = vadd.s32 %v5235, %v5226
    %v5237 = vmul.u32 %v5192, %v5183
    %v5238 = vadd.s32 %v5214, %v5233
    %vm5239 = vc.u32 %v5214, %v5233
    %v5240 = vadd.s32 %v5236, 1
    %v5241 = vsel %vm5239, %v5240, %v5236
    %v5242 = vadd.s32 %v5237, %v5241
    %v5243 = vadd.s32 %v5242, 536870912
    %v5244 = vshrl.u32 %v5243, 30
    %v5245 = vshll.u32 %v5244, 30
    %v5246 = vsub.s32 %v5242, %v5245
    %vm5247 = vcmp.lt.s32.totalorder %v5246, 0
    %v5248 = vsub.s32 0, %v5246
    %v5249 = vsel %vm5247, %v5248, %v5246
    %v5250 = vclz %v5249
    %v5251 = vsub.s32 %v5250, 2
    %vm5252 = vcmp.gt.s32.totalorder 0, %v5251
    %v5253 = vsel %vm5252, 0, %v5251
    %v5254 = vsub.s32 32, %v5253
    %v5255 = vshll.u32 %v5246, %v5253
    %v5256 = vshrl.u32 %v5238, %v5254
    %v5257 = vor.u32 %v5255, %v5256
    %v5258 = vsub.s32 4294967266, %v5253
    %v5259 = vadd.s32 %v5258, 127
    %v5260 = vshll.u32 %v5259, 23
    %v5261 = vor.u32 4788187, %v5260
    %v5262 = vand.u32 2147483647, %v5261
    %v5264 = vcvt.s32.f32 %v5257
    %v5265 = vmul.f32 %v5264, %v5262
    %v5266 = vxor.u32 %v5265, 2147483648
    %v5267 = vsel %vm5146, %v5266, %v5265
    %v5268 = vsub.s32 4, %v5244
    %v5269 = vsel %vm5146, %v5268, %v5244
    %v5270 = vsel %vm5145, %v4989, %v5267
    %v5271 = vsel %vm5145, 0, %v5269
    %v5272 = vmul.f32 %v5270, %v5270
    %v5273 = vmul.f32 %v5272, -0.001358992
    %v5274 = vadd.f32 %v5273, 0.041655596
    %v5275 = vmul.f32 %v5272, %v5274
    %v5276 = vadd.f32 %v5275, -0.4999988
    %v5277 = vmul.f32 %v5272, %v5276
    %v5278 = vadd.f32 1.0, %v5277
    %v5279 = vmul.f32 %v5270, %v5270
    %v5280 = vmul.f32 %v5279, -0.00019511016
    %v5281 = vadd.f32 %v5280, 0.008332121
    %v5282 = vmul.f32 %v5279, %v5281
    %v5283 = vadd.f32 %v5282, -0.16666654
    %v5284 = vmul.f32 %v5279, %v5283
    %v5285 = vadd.f32 %v5284, 1.0
    %v5286 = vmul.f32 %v5285, %v5270
    %vm5287 = vweird.f32 %v4989
    %v5288 = vadd.s32 %v5271, 3
    %v5289 = vand.u32 %v5288, 3
    %vm5290 = vcmp.lt.s32.totalorder %v5289, 2
    %vm5291 = vcmp.eq.s32.totalorder %v5289, 0
    %v5292 = vxor.u32 %v5286, 2147483648
    %v5293 = vsel %vm5291, %v5278, %v5292
    %vm5294 = vcmp.eq.s32.totalorder %v5289, 2
    %v5295 = vxor.u32 %v5278, 2147483648
    %v5296 = vsel %vm5294, %v5295, %v5286
    %v5297 = vsel %vm5290, %v5293, %v5296
    %v5298 = vsel %vm5287, nan, %v5297
    %v5299 = vmul.f32 %v5143, %v2749
    %v5300 = vmul.f32 %v5143, %v2750
    %v5301 = vmul.f32 %v5298, %v2753
    %v5302 = vmul.f32 %v5298, %v2754
    %v5303 = vsub.f32 %v5299, %v5301
    %v5304 = vsub.f32 %v5300, %v5302
    %vm5305 = vcmask 130048
    %v5307 = vsel %vm5305, %v1451, 0
    %v5310 = vsel %vm5305, %v1452, 0
    %5312 = vmatpush.msra.mxu0 0.0
    %5313 = vmatpush.msra.mxu0 0.0
    %5314 = vmatpush.msra.mxu0 0.0
    %5315 = vmatpush.msra.mxu0 0.0
    %5316 = vmatpush.msra.mxu0 0.0
    %5317 = vmatpush.msra.mxu0 0.0
    %5318 = vmatpush.msra.mxu0 0.0
    %5319 = vmatpush.msra.mxu0 0.0
    %5320 = vmatpush.msra.mxu0 0.0
    %5321 = vmatpush.msra.mxu0 0.0
    %5322 = vmatpush.msra.mxu0 0.0
    %5323 = vmatpush.msra.mxu0 0.0
    %5324 = vmatpush.msra.mxu0 0.0
    %5325 = vmatpush.msra.mxu0 0.0
    %5326 = vmatpush.msra.mxu0 %v803
    %5327 = vmatpush.msra.mxu0 %v802
    %5328 = vmatmul.f32.gmra.mxu0 %v5307
    %v5329 = vpop.f32.mrf.mxu0
    %v5330 = vadd.f32 0.0, %v5329
    %5331 = vmatmul.f32.gmra.mxu0 %v5310
    %v5332 = vpop.f32.mrf.mxu0
    %v5333 = vadd.f32 0.0, %v5332
    %5334 = vdwg.mxu0
    %v5336 = vsel %vm5305, %v2117, 0
    %v5339 = vsel %vm5305, %v2118, 0
    %5341 = vmatpush.msra.mxu0 0.0
    %5342 = vmatpush.msra.mxu0 0.0
    %5343 = vmatpush.msra.mxu0 0.0
    %5344 = vmatpush.msra.mxu0 0.0
    %5345 = vmatpush.msra.mxu0 0.0
    %5346 = vmatpush.msra.mxu0 0.0
    %5347 = vmatpush.msra.mxu0 0.0
    %5348 = vmatpush.msra.mxu0 0.0
    %5349 = vmatpush.msra.mxu0 0.0
    %5350 = vmatpush.msra.mxu0 0.0
    %5351 = vmatpush.msra.mxu0 0.0
    %5352 = vmatpush.msra.mxu0 0.0
    %5353 = vmatpush.msra.mxu0 0.0
    %5354 = vmatpush.msra.mxu0 0.0
    %5355 = vmatpush.msra.mxu0 %v1798
    %5356 = vmatpush.msra.mxu0 %v1797
    %5357 = vmatmul.f32.gmra.mxu0 %v5336
    %v5358 = vpop.f32.mrf.mxu0
    %v5359 = vadd.f32 0.0, %v5358
    %5360 = vmatmul.f32.gmra.mxu0 %v5339
    %v5361 = vpop.f32.mrf.mxu0
    %v5362 = vadd.f32 0.0, %v5361
    %5363 = vdwg.mxu0
    %v5365 = vsel %vm5305, %v2757, 0
    %v5368 = vsel %vm5305, %v2758, 0
    %5370 = vmatpush.msra.mxu0 0.0
    %5371 = vmatpush.msra.mxu0 0.0
    %5372 = vmatpush.msra.mxu0 0.0
    %5373 = vmatpush.msra.mxu0 0.0
    %5374 = vmatpush.msra.mxu0 0.0
    %5375 = vmatpush.msra.mxu0 0.0
    %5376 = vmatpush.msra.mxu0 0.0
    %5377 = vmatpush.msra.mxu0 0.0
    %5378 = vmatpush.msra.mxu0 0.0
    %5379 = vmatpush.msra.mxu0 0.0
    %5380 = vmatpush.msra.mxu0 0.0
    %5381 = vmatpush.msra.mxu0 0.0
    %5382 = vmatpush.msra.mxu0 0.0
    %5383 = vmatpush.msra.mxu0 0.0
    %5384 = vmatpush.msra.mxu0 %v2436
    %5385 = vmatpush.msra.mxu0 %v2435
    %5386 = vmatmul.f32.gmra.mxu0 %v5365
    %v5387 = vpop.f32.mrf.mxu0
    %v5388 = vadd.f32 0.0, %v5387
    %5389 = vmatmul.f32.gmra.mxu0 %v5368
    %v5390 = vpop.f32.mrf.mxu0
    %v5391 = vadd.f32 0.0, %v5390
    %5392 = vdwg.mxu0
    %v5394 = vsel %vm5305, %v3395, 0
    %v5397 = vsel %vm5305, %v3396, 0
    %5399 = vmatpush.msra.mxu0 0.0
    %5400 = vmatpush.msra.mxu0 0.0
    %5401 = vmatpush.msra.mxu0 0.0
    %5402 = vmatpush.msra.mxu0 0.0
    %5403 = vmatpush.msra.mxu0 0.0
    %5404 = vmatpush.msra.mxu0 0.0
    %5405 = vmatpush.msra.mxu0 0.0
    %5406 = vmatpush.msra.mxu0 0.0
    %5407 = vmatpush.msra.mxu0 0.0
    %5408 = vmatpush.msra.mxu0 0.0
    %5409 = vmatpush.msra.mxu0 0.0
    %5410 = vmatpush.msra.mxu0 0.0
    %5411 = vmatpush.msra.mxu0 0.0
    %5412 = vmatpush.msra.mxu0 0.0
    %5413 = vmatpush.msra.mxu0 %v3078
    %5414 = vmatpush.msra.mxu0 %v3077
    %5415 = vmatmul.f32.gmra.mxu0 %v5394
    %v5416 = vpop.f32.mrf.mxu0
    %v5417 = vadd.f32 0.0, %v5416
    %5418 = vmatmul.f32.gmra.mxu0 %v5397
    %v5419 = vpop.f32.mrf.mxu0
    %v5420 = vadd.f32 0.0, %v5419
    %5421 = vdwg.mxu0
    %v5423 = vsel %vm5305, %v3713, 0
    %v5426 = vsel %vm5305, %v3714, 0
    %5428 = vmatpush.msra.mxu0 0.0
    %5429 = vmatpush.msra.mxu0 0.0
    %5430 = vmatpush.msra.mxu0 0.0
    %5431 = vmatpush.msra.mxu0 0.0
    %5432 = vmatpush.msra.mxu0 0.0
    %5433 = vmatpush.msra.mxu0 0.0
    %5434 = vmatpush.msra.mxu0 0.0
    %5435 = vmatpush.msra.mxu0 0.0
    %5436 = vmatpush.msra.mxu0 0.0
    %5437 = vmatpush.msra.mxu0 0.0
    %5438 = vmatpush.msra.mxu0 0.0
    %5439 = vmatpush.msra.mxu0 0.0
    %5440 = vmatpush.msra.mxu0 0.0
    %5441 = vmatpush.msra.mxu0 0.0
    %5442 = vmatpush.msra.mxu0 %v1476
    %5443 = vmatpush.msra.mxu0 %v1475
    %5444 = vmatmul.f32.gmra.mxu0 %v5423
    %v5445 = vpop.f32.mrf.mxu0
    %v5446 = vadd.f32 0.0, %v5445
    %5447 = vmatmul.f32.gmra.mxu0 %v5426
    %v5448 = vpop.f32.mrf.mxu0
    %v5449 = vadd.f32 0.0, %v5448
    %5450 = vdwg.mxu0
    %v5452 = vsel %vm5305, %v4349, 0
    %v5455 = vsel %vm5305, %v4350, 0
    %5457 = vmatpush.msra.mxu0 0.0
    %5458 = vmatpush.msra.mxu0 0.0
    %5459 = vmatpush.msra.mxu0 0.0
    %5460 = vmatpush.msra.mxu0 0.0
    %5461 = vmatpush.msra.mxu0 0.0
    %5462 = vmatpush.msra.mxu0 0.0
    %5463 = vmatpush.msra.mxu0 0.0
    %5464 = vmatpush.msra.mxu0 0.0
    %5465 = vmatpush.msra.mxu0 0.0
    %5466 = vmatpush.msra.mxu0 0.0
    %5467 = vmatpush.msra.mxu0 0.0
    %5468 = vmatpush.msra.mxu0 0.0
    %5469 = vmatpush.msra.mxu0 0.0
    %5470 = vmatpush.msra.mxu0 0.0
    %5471 = vmatpush.msra.mxu0 %v4032
    %5472 = vmatpush.msra.mxu0 %v4031
    %5473 = vmatmul.f32.gmra.mxu0 %v5452
    %v5474 = vpop.f32.mrf.mxu0
    %v5475 = vadd.f32 0.0, %v5474
    %5476 = vmatmul.f32.gmra.mxu0 %v5455
    %v5477 = vpop.f32.mrf.mxu0
    %v5478 = vadd.f32 0.0, %v5477
    %5479 = vdwg.mxu0
    %v5481 = vsel %vm5305, %v4985, 0
    %v5484 = vsel %vm5305, %v4986, 0
    %5486 = vmatpush.msra.mxu0 0.0
    %5487 = vmatpush.msra.mxu0 0.0
    %5488 = vmatpush.msra.mxu0 0.0
    %5489 = vmatpush.msra.mxu0 0.0
    %5490 = vmatpush.msra.mxu0 0.0
    %5491 = vmatpush.msra.mxu0 0.0
    %5492 = vmatpush.msra.mxu0 0.0
    %5493 = vmatpush.msra.mxu0 0.0
    %5494 = vmatpush.msra.mxu0 0.0
    %5495 = vmatpush.msra.mxu0 0.0
    %5496 = vmatpush.msra.mxu0 0.0
    %5497 = vmatpush.msra.mxu0 0.0
    %5498 = vmatpush.msra.mxu0 0.0
    %5499 = vmatpush.msra.mxu0 0.0
    %5500 = vmatpush.msra.mxu0 %v4668
    %5501 = vmatpush.msra.mxu0 %v4667
    %5502 = vmatmul.f32.gmra.mxu0 %v5481
    %v5503 = vpop.f32.mrf.mxu0
    %v5504 = vadd.f32 0.0, %v5503
    %5505 = vmatmul.f32.gmra.mxu0 %v5484
    %v5506 = vpop.f32.mrf.mxu0
    %v5507 = vadd.f32 0.0, %v5506
    %5508 = vdwg.mxu0
    %v5510 = vsel %vm5305, %v1475, 0
    %v5513 = vsel %vm5305, %v1476, 0
    %5515 = vmatpush.msra.mxu0 0.0
    %5516 = vmatpush.msra.mxu0 0.0
    %5517 = vmatpush.msra.mxu0 0.0
    %5518 = vmatpush.msra.mxu0 0.0
    %5519 = vmatpush.msra.mxu0 0.0
    %5520 = vmatpush.msra.mxu0 0.0
    %5521 = vmatpush.msra.mxu0 0.0
    %5522 = vmatpush.msra.mxu0 0.0
    %5523 = vmatpush.msra.mxu0 0.0
    %5524 = vmatpush.msra.mxu0 0.0
    %5525 = vmatpush.msra.mxu0 0.0
    %5526 = vmatpush.msra.mxu0 0.0
    %5527 = vmatpush.msra.mxu0 0.0
    %5528 = vmatpush.msra.mxu0 0.0
    %5529 = vmatpush.msra.mxu0 %v5304
    %5530 = vmatpush.msra.mxu0 %v5303
    %5531 = vmatmul.f32.gmra.mxu0 %v5510
    %v5532 = vpop.f32.mrf.mxu0
    %v5533 = vadd.f32 0.0, %v5532
    %5534 = vmatmul.f32.gmra.mxu0 %v5513
    %v5535 = vpop.f32.mrf.mxu0
    %v5536 = vadd.f32 0.0, %v5535
    %5537 = vdwg.mxu0
    %v5539 = vsel %vm5305, %v5359, 0
    %v5542 = vsel %vm5305, %v5362, 0
    %5544 = vmatpush.msra.mxu0 0.0
    %5545 = vmatpush.msra.mxu0 0.0
    %5546 = vmatpush.msra.mxu0 0.0
    %5547 = vmatpush.msra.mxu0 0.0
    %5548 = vmatpush.msra.mxu0 0.0
    %5549 = vmatpush.msra.mxu0 0.0
    %5550 = vmatpush.msra.mxu0 0.0
    %5551 = vmatpush.msra.mxu0 0.0
    %5552 = vmatpush.msra.mxu0 0.0
    %5553 = vmatpush.msra.mxu0 0.0
    %5554 = vmatpush.msra.mxu0 0.0
    %5555 = vmatpush.msra.mxu0 0.0
    %5556 = vmatpush.msra.mxu0 0.0
    %5557 = vmatpush.msra.mxu0 0.0
    %5558 = vmatpush.msra.mxu0 %v5333
    %5559 = vmatpush.msra.mxu0 %v5330
    %5560 = vmatmul.f32.gmra.mxu0 %v5539
    %v5561 = vpop.f32.mrf.mxu0
    %v5562 = vadd.f32 0.0, %v5561
    %5563 = vmatmul.f32.gmra.mxu0 %v5542
    %v5564 = vpop.f32.mrf.mxu0
    %v5565 = vadd.f32 0.0, %v5564
    %5566 = vdwg.mxu0
    %v5568 = vsel %vm5305, %v5417, 0
    %v5571 = vsel %vm5305, %v5420, 0
    %5573 = vmatpush.msra.mxu0 0.0
    %5574 = vmatpush.msra.mxu0 0.0
    %5575 = vmatpush.msra.mxu0 0.0
    %5576 = vmatpush.msra.mxu0 0.0
    %5577 = vmatpush.msra.mxu0 0.0
    %5578 = vmatpush.msra.mxu0 0.0
    %5579 = vmatpush.msra.mxu0 0.0
    %5580 = vmatpush.msra.mxu0 0.0
    %5581 = vmatpush.msra.mxu0 0.0
    %5582 = vmatpush.msra.mxu0 0.0
    %5583 = vmatpush.msra.mxu0 0.0
    %5584 = vmatpush.msra.mxu0 0.0
    %5585 = vmatpush.msra.mxu0 0.0
    %5586 = vmatpush.msra.mxu0 0.0
    %5587 = vmatpush.msra.mxu0 %v5391
    %5588 = vmatpush.msra.mxu0 %v5388
    %5589 = vmatmul.f32.gmra.mxu0 %v5568
    %v5590 = vpop.f32.mrf.mxu0
    %v5591 = vadd.f32 0.0, %v5590
    %5592 = vmatmul.f32.gmra.mxu0 %v5571
    %v5593 = vpop.f32.mrf.mxu0
    %v5594 = vadd.f32 0.0, %v5593
    %5595 = vdwg.mxu0
    %v5597 = vsel %vm5305, %v5475, 0
    %v5600 = vsel %vm5305, %v5478, 0
    %5602 = vmatpush.msra.mxu0 0.0
    %5603 = vmatpush.msra.mxu0 0.0
    %5604 = vmatpush.msra.mxu0 0.0
    %5605 = vmatpush.msra.mxu0 0.0
    %5606 = vmatpush.msra.mxu0 0.0
    %5607 = vmatpush.msra.mxu0 0.0
    %5608 = vmatpush.msra.mxu0 0.0
    %5609 = vmatpush.msra.mxu0 0.0
    %5610 = vmatpush.msra.mxu0 0.0
    %5611 = vmatpush.msra.mxu0 0.0
    %5612 = vmatpush.msra.mxu0 0.0
    %5613 = vmatpush.msra.mxu0 0.0
    %5614 = vmatpush.msra.mxu0 0.0
    %5615 = vmatpush.msra.mxu0 0.0
    %5616 = vmatpush.msra.mxu0 %v5449
    %5617 = vmatpush.msra.mxu0 %v5446
    %5618 = vmatmul.f32.gmra.mxu0 %v5597
    %v5619 = vpop.f32.mrf.mxu0
    %v5620 = vadd.f32 0.0, %v5619
    %5621 = vmatmul.f32.gmra.mxu0 %v5600
    %v5622 = vpop.f32.mrf.mxu0
    %v5623 = vadd.f32 0.0, %v5622
    %5624 = vdwg.mxu0
    %v5626 = vsel %vm5305, %v5533, 0
    %v5629 = vsel %vm5305, %v5536, 0
    %5631 = vmatpush.msra.mxu0 0.0
    %5632 = vmatpush.msra.mxu0 0.0
    %5633 = vmatpush.msra.mxu0 0.0
    %5634 = vmatpush.msra.mxu0 0.0
    %5635 = vmatpush.msra.mxu0 0.0
    %5636 = vmatpush.msra.mxu0 0.0
    %5637 = vmatpush.msra.mxu0 0.0
    %5638 = vmatpush.msra.mxu0 0.0
    %5639 = vmatpush.msra.mxu0 0.0
    %5640 = vmatpush.msra.mxu0 0.0
    %5641 = vmatpush.msra.mxu0 0.0
    %5642 = vmatpush.msra.mxu0 0.0
    %5643 = vmatpush.msra.mxu0 0.0
    %5644 = vmatpush.msra.mxu0 0.0
    %5645 = vmatpush.msra.mxu0 %v5507
    %5646 = vmatpush.msra.mxu0 %v5504
    %5647 = vmatmul.f32.gmra.mxu0 %v5626
    %v5648 = vpop.f32.mrf.mxu0
    %v5649 = vadd.f32 0.0, %v5648
    %5650 = vmatmul.f32.gmra.mxu0 %v5629
    %v5651 = vpop.f32.mrf.mxu0
    %v5652 = vadd.f32 0.0, %v5651
    %5653 = vdwg.mxu0
    %v5655 = vsel %vm5305, %v5591, 0
    %v5658 = vsel %vm5305, %v5594, 0
    %5660 = vmatpush.msra.mxu0 0.0
    %5661 = vmatpush.msra.mxu0 0.0
    %5662 = vmatpush.msra.mxu0 0.0
    %5663 = vmatpush.msra.mxu0 0.0
    %5664 = vmatpush.msra.mxu0 0.0
    %5665 = vmatpush.msra.mxu0 0.0
    %5666 = vmatpush.msra.mxu0 0.0
    %5667 = vmatpush.msra.mxu0 0.0
    %5668 = vmatpush.msra.mxu0 0.0
    %5669 = vmatpush.msra.mxu0 0.0
    %5670 = vmatpush.msra.mxu0 0.0
    %5671 = vmatpush.msra.mxu0 0.0
    %5672 = vmatpush.msra.mxu0 0.0
    %5673 = vmatpush.msra.mxu0 0.0
    %5674 = vmatpush.msra.mxu0 %v5565
    %5675 = vmatpush.msra.mxu0 %v5562
    %5676 = vmatmul.f32.gmra.mxu0 %v5655
    %v5677 = vpop.f32.mrf.mxu0
    %v5678 = vadd.f32 0.0, %v5677
    %5679 = vmatmul.f32.gmra.mxu0 %v5658
    %v5680 = vpop.f32.mrf.mxu0
    %v5681 = vadd.f32 0.0, %v5680
    %5682 = vdwg.mxu0
    %v5684 = vsel %vm5305, %v5649, 0
    %v5687 = vsel %vm5305, %v5652, 0
    %5689 = vmatpush.msra.mxu0 0.0
    %5690 = vmatpush.msra.mxu0 0.0
    %5691 = vmatpush.msra.mxu0 0.0
    %5692 = vmatpush.msra.mxu0 0.0
    %5693 = vmatpush.msra.mxu0 0.0
    %5694 = vmatpush.msra.mxu0 0.0
    %5695 = vmatpush.msra.mxu0 0.0
    %5696 = vmatpush.msra.mxu0 0.0
    %5697 = vmatpush.msra.mxu0 0.0
    %5698 = vmatpush.msra.mxu0 0.0
    %5699 = vmatpush.msra.mxu0 0.0
    %5700 = vmatpush.msra.mxu0 0.0
    %5701 = vmatpush.msra.mxu0 0.0
    %5702 = vmatpush.msra.mxu0 0.0
    %5703 = vmatpush.msra.mxu0 %v5623
    %5704 = vmatpush.msra.mxu0 %v5620
    %5705 = vmatmul.f32.gmra.mxu0 %v5684
    %v5706 = vpop.f32.mrf.mxu0
    %v5707 = vadd.f32 0.0, %v5706
    %5708 = vmatmul.f32.gmra.mxu0 %v5687
    %v5709 = vpop.f32.mrf.mxu0
    %v5710 = vadd.f32 0.0, %v5709
    %5711 = vdwg.mxu0
    %v5713 = vsel %vm5305, %v5707, 0
    %v5716 = vsel %vm5305, %v5710, 0
    %5718 = vmatpush.msra.mxu0 0.0
    %5719 = vmatpush.msra.mxu0 0.0
    %5720 = vmatpush.msra.mxu0 0.0
    %5721 = vmatpush.msra.mxu0 0.0
    %5722 = vmatpush.msra.mxu0 0.0
    %5723 = vmatpush.msra.mxu0 0.0
    %5724 = vmatpush.msra.mxu0 0.0
    %5725 = vmatpush.msra.mxu0 0.0
    %5726 = vmatpush.msra.mxu0 0.0
    %5727 = vmatpush.msra.mxu0 0.0
    %5728 = vmatpush.msra.mxu0 0.0
    %5729 = vmatpush.msra.mxu0 0.0
    %5730 = vmatpush.msra.mxu0 0.0
    %5731 = vmatpush.msra.mxu0 0.0
    %5732 = vmatpush.msra.mxu0 %v5681
    %5733 = vmatpush.msra.mxu0 %v5678
    %5734 = vmatmul.f32.gmra.mxu0 %v5713
    %v5735 = vpop.f32.mrf.mxu0
    %v5736 = vadd.f32 0.0, %v5735
    %5737 = vmatmul.f32.gmra.mxu0 %v5716
    %v5738 = vpop.f32.mrf.mxu0
    %v5739 = vadd.f32 0.0, %v5738
    %5740 = vdwg.mxu0
    %v5741 = vmul.f32 %v5736, %v5736
    %v5742 = vmul.f32 %v5739, %v5739
    %v5743 = vadd.f32 %v5741, %v5742
    %5745 = vset.pattern.permute.xlu0 0
    %5746 = vperm.xlu0 %5745, %v5743
    %v5747 = vpop.permute.xlu0 %5746
    %5749 = vst [vmem:[%s1] sm:$0xff] %v5747
    // Predicated region
    $region10: #{diffq_forward.1} parent=1 // pred_check
      _
    $region11: #{diffq_forward.1} parent=1 // pred_check_branch
      %5751 = sbr.rel (0) target = $region13
    $region12: #{diffq_forward.1} parent=1 // pred_region
      _
    $region13: #{diffq_forward.1} parent=1 // pred_fallthru
      _
    // Predicated region
    $region14: #{diffq_forward.1} parent=1 // pred_check
      _
    $region15: #{diffq_forward.1} parent=1 // pred_check_branch
      %5753 = sbr.rel (0) target = $region17
    $region16: #{diffq_forward.1} parent=1 // pred_region
      _
    $region17: #{diffq_forward.1} parent=1 // pred_fallthru
      _
    %5754 = vsyncpa [#allocation3], 1

</llo_original>
